<compile_context>
chip_gen: v7x
topology: tpu7x:2x2x1
jax: 0.10.0
libtpu: 0.0.40
codegen_flags: <defaults>
</compile_context>

<pallas_src>
import functools

import jax
import jax.numpy as jnp
from jax.experimental import pallas as pl
from jax.experimental.pallas import tpu as pltpu


def _round_up(x, m):
    return (x + m - 1) // m * m


def _fused_kernel(x1_ref, w1_ref, gamma_ref, beta_ref, res_ref, w2_ref, out_ref,
                  z_ref, *, inv_p, eps):
    """One grid step = one 256-row tile of the second conv's output.

    Step 0 additionally computes conv1 + BN(train) + residual add + ReLU once into the z_ref
    VMEM scratch (bf16); later steps reuse it while their w2 / out tile DMAs are pipelined.
    """

    @pl.when(pl.program_id(0) == 0)
    def _():
        # conv2d24 (1x1, stride handled by subsampling in the wrapper):
        # (C2p, C1p) @ (C1p, Pp) on the MXU, bf16 operands, f32 accumulation.
        y = jnp.dot(w1_ref[...], x1_ref[...], preferred_element_type=jnp.float32)

        # batchnorm2d24, training-mode batch statistics over the true P pixels.
        # Padded pixel columns / padded channel rows of y are exactly zero -> they contribute
        # nothing to the sums, so mean/var are exact.  Padded channel rows get scale = 0 because
        # their gamma pad is zero, so z stays zero there (safe for the 2nd matmul contraction).
        s1 = jnp.sum(y, axis=1, keepdims=True) * inv_p          # E[y]    (C2p, 1)
        s2 = jnp.sum(y * y, axis=1, keepdims=True) * inv_p      # E[y^2]  (C2p, 1)
        var = s2 - s1 * s1                                      # biased variance
        scale = gamma_ref[...] * jax.lax.rsqrt(var + eps)
        shift = beta_ref[...] - s1 * scale
        z = y * scale + shift + res_ref[...].astype(jnp.float32)   # folded BN + residual (f32 VPU)
        z_ref[...] = jnp.maximum(z, 0.0).astype(jnp.bfloat16)      # ReLU, stored bf16 for the MXU

    # conv2d28 (1x1): (TR, C2p) @ (C2p, Pp) row tile on the MXU, bf16 operands / f32 acc.
    out_ref[...] = jnp.dot(w2_ref[...], z_ref[...], preferred_element_type=jnp.float32)


def prepare_params(w1_oihw, gamma, beta, w2_oihw):
    """One-time parameter prep (hoisted out of the per-call path).

    Zero padding of weight rows/cols and of gamma/beta keeps the result exact; bf16 cast of the
    matmul operands halves their DMA bytes.
    """
    C2, C1 = w1_oihw.shape[0], w1_oihw.shape[1]
    C1p = _round_up(C1, 128)
    C2p = _round_up(C2, 256)
    w1p = jnp.pad(w1_oihw.reshape(C2, C1).astype(jnp.float32),
                  ((0, C2p - C2), (0, C1p - C1))).astype(jnp.bfloat16)
    w2p = jnp.pad(w2_oihw.reshape(C2, C2).astype(jnp.float32),
                  ((0, C2p - C2), (0, C2p - C2))).astype(jnp.bfloat16)
    gp = jnp.pad(gamma.astype(jnp.float32), (0, C2p - C2)).reshape(C2p, 1)
    bp = jnp.pad(beta.astype(jnp.float32), (0, C2p - C2)).reshape(C2p, 1)
    return (w1p, gp, bp, w2p)


@jax.jit
def fused_forward(x77, x87, params):
    """x77: (N,240,28,28) NCHW, x87: (N,720,14,14) NCHW -> (N,720,14,14) NCHW."""
    w1p, gp, bp, w2p = params
    N, C1, H, W = x77.shape
    C2 = x87.shape[1]
    C2p, C1p = w1p.shape
    Ho, Wo = H // 2, W // 2
    P = N * Ho * Wo
    Pp = _round_up(P, 256)     # lane-dense pixel axis
    TR = 256                   # output-row tile for the second conv
    assert C2p % TR == 0

    # Channels-major flattening (N=1 -> the transposes are pure reshapes).  Under jit each of these
    # is a single fused HBM pass that directly produces the padded / bf16 kernel operand.
    x1 = x77[:, :, ::2, ::2].transpose(1, 0, 2, 3).reshape(C1, P)           # stride-2 subsample
    x1 = jnp.pad(x1, ((0, C1p - C1), (0, Pp - P))).astype(jnp.bfloat16)

    res = x87.transpose(1, 0, 2, 3).reshape(C2, P)
    res = jnp.pad(res, ((0, C2p - C2), (0, Pp - P))).astype(jnp.bfloat16)

    kernel = functools.partial(_fused_kernel, inv_p=1.0 / float(P), eps=1e-5)

    out = pl.pallas_call(
        kernel,
        out_shape=jax.ShapeDtypeStruct((C2p, Pp), jnp.float32),
        grid=(C2p // TR,),
        in_specs=[
            pl.BlockSpec((C1p, Pp), lambda i: (0, 0)),    # x1     (fetched once, stays resident)
            pl.BlockSpec((C2p, C1p), lambda i: (0, 0)),   # w1
            pl.BlockSpec((C2p, 1), lambda i: (0, 0)),     # gamma
            pl.BlockSpec((C2p, 1), lambda i: (0, 0)),     # beta
            pl.BlockSpec((C2p, Pp), lambda i: (0, 0)),    # residual
            pl.BlockSpec((TR, C2p), lambda i: (i, 0)),    # w2 row tile (double-buffered per step)
        ],
        out_specs=pl.BlockSpec((TR, Pp), lambda i: (i, 0)),
        scratch_shapes=[pltpu.VMEM((C2p, Pp), jnp.bfloat16)],   # z = relu(BN(conv1(x)) + res)
        compiler_params=pltpu.CompilerParams(
            dimension_semantics=("arbitrary",)),
    )(x1, w1p, gp, bp, res, w2p)

    # TODO(synk): on v7x, add a leading "parallel" grid axis of 2 so each TensorCore takes half of
    # the w2/out row tiles (recomputing the cheap conv1+BN per core); single-TC chips are unaffected.

    out = out[:C2, :P]                                   # drop channel / pixel padding
    return out.reshape(C2, N, Ho, Wo).transpose(1, 0, 2, 3)


def reference_forward(x77, x87, w1_oihw, gamma, beta, w2_oihw):
    """Pure-JAX f32 reference mirroring the PyTorch module (training-mode BN)."""
    N, C1, H, W = x77.shape
    C2 = w1_oihw.shape[0]
    x1 = x77[:, :, ::2, ::2]                                     # stride-2 1x1 conv
    y = jnp.einsum("nchw,oc->nohw", x1, w1_oihw.reshape(C2, C1))
    mean = jnp.mean(y, axis=(0, 2, 3), keepdims=True)
    var = jnp.mean((y - mean) ** 2, axis=(0, 2, 3), keepdims=True)
    y = (y - mean) * jax.lax.rsqrt(var + 1e-5)
    y = y * gamma.reshape(1, C2, 1, 1) + beta.reshape(1, C2, 1, 1)
    y = jnp.maximum(y + x87, 0.0)
    return jnp.einsum("nchw,oc->nohw", y, w2_oihw.reshape(C2, C2))


if __name__ == "__main__":
    key = jax.random.PRNGKey(0)
    k1, k2, k3, k4, k5, k6 = jax.random.split(key, 6)

    N, C1, C2, H, W = 1, 240, 720, 28, 28

    x77 = jax.random.normal(k1, (N, C1, H, W), dtype=jnp.float32)
    x87 = jax.random.normal(k2, (N, C2, H // 2, W // 2), dtype=jnp.float32)

    # deterministic parameter init (shapes from the module's __init__)
    w1 = jax.random.normal(k3, (C2, C1, 1, 1), dtype=jnp.float32) / jnp.sqrt(C1)
    w2 = jax.random.normal(k4, (C2, C2, 1, 1), dtype=jnp.float32) / jnp.sqrt(C2)
    gamma = 1.0 + 0.1 * jax.random.normal(k5, (C2,), dtype=jnp.float32)
    beta = 0.1 * jax.random.normal(k6, (C2,), dtype=jnp.float32)

    params = jax.block_until_ready(prepare_params(w1, gamma, beta, w2))   # one-time prep
    out = jax.block_until_ready(fused_forward(x77, x87, params))
    ref = reference_forward(x77, x87, w1, gamma, beta, w2)

    assert out.shape == (N, C2, H // 2, W // 2), out.shape
    max_err = float(jnp.max(jnp.abs(out - ref)))
    assert jnp.allclose(out, ref, rtol=2e-2, atol=2e-2), max_err

    print("KERNEL_OK")
</pallas_src>

<mosaic_0001>
module attributes {stable_mosaic.version = 11 : i64} {
  func.func @_fused_kernel(%arg0: i32, %arg1: memref<256x256xbf16, #tpu.memory_space<vmem>>, %arg2: memref<768x256xbf16, #tpu.memory_space<vmem>>, %arg3: memref<768x1xf32, #tpu.memory_space<vmem>>, %arg4: memref<768x1xf32, #tpu.memory_space<vmem>>, %arg5: memref<768x256xbf16, #tpu.memory_space<vmem>>, %arg6: memref<256x768xbf16, #tpu.memory_space<vmem>>, %arg7: memref<256x256xf32, #tpu.memory_space<vmem>>, %arg8: memref<768x256xbf16, #tpu.memory_space<vmem>>) attributes {dimension_semantics = [#tpu.dimension_semantics<arbitrary>], iteration_bounds = array<i64: 3>, scalar_prefetch = 0 : i64, scratch_operands = 1 : i64, tpu.core_type = #tpu.core_type<tc>, window_params = [{pipeline_mode = #tpu.pipeline_mode<synchronous>, transform_indices = @transform_0, window_bounds = array<i64: 256, 256>}, {pipeline_mode = #tpu.pipeline_mode<synchronous>, transform_indices = @transform_1, window_bounds = array<i64: 768, 256>}, {pipeline_mode = #tpu.pipeline_mode<synchronous>, transform_indices = @transform_2, window_bounds = array<i64: 768, 1>}, {pipeline_mode = #tpu.pipeline_mode<synchronous>, transform_indices = @transform_3, window_bounds = array<i64: 768, 1>}, {pipeline_mode = #tpu.pipeline_mode<synchronous>, transform_indices = @transform_4, window_bounds = array<i64: 768, 256>}, {transform_indices = @transform_5, window_bounds = array<i64: 256, 768>}, {transform_indices = @transform_6, window_bounds = array<i64: 256, 256>}]} {
    %c0_i32 = arith.constant 0 : i32
    %0 = arith.cmpi eq, %arg0, %c0_i32 : i32
    %1 = arith.extui %0 : i1 to i32
    %c0_i32_0 = arith.constant 0 : i32
    %2 = arith.cmpi ne, %1, %c0_i32_0 : i32
    scf.if %2 {
      %c0_6 = arith.constant 0 : index
      %c0_7 = arith.constant 0 : index
      %7 = vector.load %arg2[%c0_6, %c0_7] : memref<768x256xbf16, #tpu.memory_space<vmem>>, vector<768x256xbf16>
      %c0_8 = arith.constant 0 : index
      %c0_9 = arith.constant 0 : index
      %8 = vector.load %arg1[%c0_8, %c0_9] : memref<256x256xbf16, #tpu.memory_space<vmem>>, vector<256x256xbf16>
      %cst_10 = arith.constant dense<0.000000e+00> : vector<768x256xf32>
      %9 = tpu.matmul %7, %8, %cst_10 {dimension_numbers = #tpu.dot_dimension_numbers<[1], [0], [0], [1], [0, 0, 1, 1], [], []>} : vector<768x256xbf16>, vector<256x256xbf16>, vector<768x256xf32> -> vector<768x256xf32>
      %cst_11 = arith.constant dense<0.000000e+00> : vector<768xf32>
      %10 = vector.multi_reduction <add>, %9, %cst_11 [1] : vector<768x256xf32> to vector<768xf32>
      %11 = vector.shape_cast %10 : vector<768xf32> to vector<768x1xf32>
      %cst_12 = arith.constant 0.00510204071 : f32
      %12 = vector.broadcast %cst_12 : f32 to vector<768x1xf32>
      %13 = arith.mulf %11, %12 : vector<768x1xf32>
      %14 = arith.mulf %9, %9 : vector<768x256xf32>
      %cst_13 = arith.constant dense<0.000000e+00> : vector<768xf32>
      %15 = vector.multi_reduction <add>, %14, %cst_13 [1] : vector<768x256xf32> to vector<768xf32>
      %16 = vector.shape_cast %15 : vector<768xf32> to vector<768x1xf32>
      %cst_14 = arith.constant 0.00510204071 : f32
      %17 = vector.broadcast %cst_14 : f32 to vector<768x1xf32>
      %18 = arith.mulf %16, %17 : vector<768x1xf32>
      %19 = arith.mulf %13, %13 : vector<768x1xf32>
      %20 = arith.subf %18, %19 : vector<768x1xf32>
      %c0_15 = arith.constant 0 : index
      %c0_16 = arith.constant 0 : index
      %21 = vector.load %arg3[%c0_15, %c0_16] : memref<768x1xf32, #tpu.memory_space<vmem>>, vector<768x1xf32>
      %cst_17 = arith.constant 9.99999974E-6 : f32
      %22 = vector.broadcast %cst_17 : f32 to vector<768x1xf32>
      %23 = arith.addf %20, %22 : vector<768x1xf32>
      %24 = math.rsqrt %23 : vector<768x1xf32>
      %25 = arith.mulf %21, %24 : vector<768x1xf32>
      %c0_18 = arith.constant 0 : index
      %c0_19 = arith.constant 0 : index
      %26 = vector.load %arg4[%c0_18, %c0_19] : memref<768x1xf32, #tpu.memory_space<vmem>>, vector<768x1xf32>
      %27 = arith.mulf %13, %25 : vector<768x1xf32>
      %28 = arith.subf %26, %27 : vector<768x1xf32>
      %29 = vector.broadcast %25 : vector<768x1xf32> to vector<768x256xf32>
      %30 = arith.mulf %9, %29 : vector<768x256xf32>
      %31 = vector.broadcast %28 : vector<768x1xf32> to vector<768x256xf32>
      %32 = arith.addf %30, %31 : vector<768x256xf32>
      %c0_20 = arith.constant 0 : index
      %c0_21 = arith.constant 0 : index
      %33 = vector.load %arg5[%c0_20, %c0_21] : memref<768x256xbf16, #tpu.memory_space<vmem>>, vector<768x256xbf16>
      %34 = arith.extf %33 : vector<768x256xbf16> to vector<768x256xf32>
      %35 = arith.addf %32, %34 : vector<768x256xf32>
      %cst_22 = arith.constant 0.000000e+00 : f32
      %36 = vector.broadcast %cst_22 : f32 to vector<768x256xf32>
      %37 = arith.maximumf %35, %36 : vector<768x256xf32>
      %38 = arith.truncf %37 : vector<768x256xf32> to vector<768x256xbf16>
      %c0_23 = arith.constant 0 : index
      %c0_24 = arith.constant 0 : index
      %39 = vector.load %arg8[%c0_23, %c0_24] : memref<768x256xbf16, #tpu.memory_space<vmem>>, vector<768x256xbf16>
      tpu.vector_store %arg8[%c0_23, %c0_24], %38 {strides = array<i32>} : memref<768x256xbf16, #tpu.memory_space<vmem>>, vector<768x256xbf16>,
    } else {
    }
    %c0 = arith.constant 0 : index
    %c0_1 = arith.constant 0 : index
    %3 = vector.load %arg6[%c0, %c0_1] : memref<256x768xbf16, #tpu.memory_space<vmem>>, vector<256x768xbf16>
    %c0_2 = arith.constant 0 : index
    %c0_3 = arith.constant 0 : index
    %4 = vector.load %arg8[%c0_2, %c0_3] : memref<768x256xbf16, #tpu.memory_space<vmem>>, vector<768x256xbf16>
    %cst = arith.constant dense<0.000000e+00> : vector<256x256xf32>
    %5 = tpu.matmul %3, %4, %cst {dimension_numbers = #tpu.dot_dimension_numbers<[1], [0], [0], [1], [0, 0, 1, 1], [], []>} : vector<256x768xbf16>, vector<768x256xbf16>, vector<256x256xf32> -> vector<256x256xf32>
    %c0_4 = arith.constant 0 : index
    %c0_5 = arith.constant 0 : index
    %6 = vector.load %arg7[%c0_4, %c0_5] : memref<256x256xf32, #tpu.memory_space<vmem>>, vector<256x256xf32>
    tpu.vector_store %arg7[%c0_4, %c0_5], %5 {strides = array<i32>} : memref<256x256xf32, #tpu.memory_space<vmem>>, vector<256x256xf32>,
    return
  }
  func.func @transform_0(%arg0: i32) -> (i32, i32) {
    %c0_i32 = arith.constant 0 : i32
    %c0_i32_0 = arith.constant 0 : i32
    %c0_i32_1 = arith.constant 0 : i32
    return %c0_i32, %c0_i32_0 : i32, i32
  }
  func.func @transform_1(%arg0: i32) -> (i32, i32) {
    %c0_i32 = arith.constant 0 : i32
    %c0_i32_0 = arith.constant 0 : i32
    %c0_i32_1 = arith.constant 0 : i32
    return %c0_i32, %c0_i32_0 : i32, i32
  }
  func.func @transform_2(%arg0: i32) -> (i32, i32) {
    %c0_i32 = arith.constant 0 : i32
    %c0_i32_0 = arith.constant 0 : i32
    %c0_i32_1 = arith.constant 0 : i32
    return %c0_i32, %c0_i32_0 : i32, i32
  }
  func.func @transform_3(%arg0: i32) -> (i32, i32) {
    %c0_i32 = arith.constant 0 : i32
    %c0_i32_0 = arith.constant 0 : i32
    %c0_i32_1 = arith.constant 0 : i32
    return %c0_i32, %c0_i32_0 : i32, i32
  }
  func.func @transform_4(%arg0: i32) -> (i32, i32) {
    %c0_i32 = arith.constant 0 : i32
    %c0_i32_0 = arith.constant 0 : i32
    %c0_i32_1 = arith.constant 0 : i32
    return %c0_i32, %c0_i32_0 : i32, i32
  }
  func.func @transform_5(%arg0: i32) -> (i32, i32) {
    %c0_i32 = arith.constant 0 : i32
    %c0_i32_0 = arith.constant 0 : i32
    return %arg0, %c0_i32 : i32, i32
  }
  func.func @transform_6(%arg0: i32) -> (i32, i32) {
    %c0_i32 = arith.constant 0 : i32
    %c0_i32_0 = arith.constant 0 : i32
    return %arg0, %c0_i32 : i32, i32
  }
}

</mosaic_0001>

<llo_original>
// kernel: fused_forward.1
$region0: #{fused_forward.1}
  #allocation0 [shape = 'u32[]', space=smem, size = 0x4, offset = 0x4, fixed_abs, tag = 'smem constant byte address 0x4 - core index']
  #allocation1 [shape = 'u32[144,128]{1,0:T(1,128)}', space=vmem, size = 0x12000, scoped, tag = 'internal scratch']
  #allocation2 [shape = 'bf16[768,256]{1,0:T(16,128)(2,1)}', space=vmem, size = 0x60000, scoped, tag = 'scratch operand']
  %s0 = inlined_call_operand.vmem [shape: bf16[256,256], index: 0, kind: input, shape index: {}]
  %s1 = inlined_call_operand.vmem [shape: bf16[768,256], index: 1, kind: input, shape index: {}]
  %s2 = inlined_call_operand.vmem [shape: f32[768,1], index: 2, kind: input, shape index: {}]
  %s3 = inlined_call_operand.vmem [shape: f32[768,1], index: 3, kind: input, shape index: {}]
  %s4 = inlined_call_operand.vmem [shape: bf16[768,256], index: 4, kind: input, shape index: {}]
  %s5 = inlined_call_operand.vmem [shape: bf16[768,768], index: 5, kind: input, shape index: {}]
  %s6 = inlined_call_operand.vmem [shape: f32[768,256], index: 6, kind: output, shape index: {}]
  %s7 = sld [smem:[#allocation0]]
  $region61: #{fused_forward.1} parent=0
    _
  %s9 = ssub.s32 1, %s7
  %s10 = scalar_select 0, %s9, %s7
  loop: start=0, step=1, limit=5
  $region2: #{fused_forward.1} parent=0 // loop_pre_header
    _
  $region3: #{fused_forward.1} parent=0 // loop_header
    %s12 = sphi 0, %s16
    %p13 = scmp.ge.s32.totalorder %s12, 5
    %s20 = sphi 0, %s20
    %s22 = sphi 0, %s20
    %s23 = sphi 0, %s22
    %s37 = sphi 0, %s23
    %s41 = sphi 0, %s41
    %s43 = sphi 0, %s41
    %s44 = sphi 0, %s43
    %s58 = sphi 0, %s44
    %s62 = sphi 0, %s62
    %s64 = sphi 0, %s62
    %s65 = sphi 0, %s64
    %s79 = sphi 0, %s65
    %s83 = sphi 0, %s83
    %s85 = sphi 0, %s83
    %s86 = sphi 0, %s85
    %s100 = sphi 0, %s86
    %s104 = sphi 0, %s104
    %s106 = sphi 0, %s104
    %s107 = sphi 0, %s106
    %s121 = sphi 0, %s107
    %s127 = sphi 0, %s129
    %s130 = sphi 0, %s127
    %s131 = sphi 0, %s130
    %s147 = sphi 0, %s131
    %s153 = sphi 0, %s155
    %s156 = sphi 0, %s153
    %s157 = sphi 0, %s156
    %s173 = sphi 0, %s157
  $region4: #{fused_forward.1} parent=0 // loop_header_branch
    %15 = sbr.rel (%p13) target = $region8
  $region5: #{fused_forward.1} parent=0 // loop_body
    %s17 = ssub.s32 %s12, 1
    %s18 = ssub.s32 %s12, 2
    %s19 = sadd.s32 %s12, 1
    %s21 = sadd.s32 %s20, 1
    %p24 = scmp.eq.s32.totalorder %s12, 2
    %p25 = scmp.ne.s32.totalorder %s20, %s22
    %p26 = scmp.eq.s32.totalorder %s12, 0
    %p27 = por %p25, %p26
    %p28 = scmp.ne.s32.totalorder %s20, %s22
    %p29 = scmp.eq.s32.totalorder %s17, 2
    %p30 = por %p28, %p29
    %p31 = scmp.ne.s32.totalorder %s22, %s23
    %p32 = scmp.eq.s32.totalorder %s17, 0
    %p33 = por %p31, %p32
    %p34 = scmp.ne.s32.totalorder %s22, %s23
    %p35 = scmp.eq.s32.totalorder %s18, 2
    %p36 = por %p34, %p35
    %p38 = scmp.ne.s32.totalorder %s23, %s37
    %p39 = scmp.eq.s32.totalorder %s18, 0
    %p40 = por %p38, %p39
    %s42 = sadd.s32 %s41, 1
    %p45 = scmp.eq.s32.totalorder %s12, 2
    %p46 = scmp.ne.s32.totalorder %s41, %s43
    %p47 = scmp.eq.s32.totalorder %s12, 0
    %p48 = por %p46, %p47
    %p49 = scmp.ne.s32.totalorder %s41, %s43
    %p50 = scmp.eq.s32.totalorder %s17, 2
    %p51 = por %p49, %p50
    %p52 = scmp.ne.s32.totalorder %s43, %s44
    %p53 = scmp.eq.s32.totalorder %s17, 0
    %p54 = por %p52, %p53
    %p55 = scmp.ne.s32.totalorder %s43, %s44
    %p56 = scmp.eq.s32.totalorder %s18, 2
    %p57 = por %p55, %p56
    %p59 = scmp.ne.s32.totalorder %s44, %s58
    %p60 = scmp.eq.s32.totalorder %s18, 0
    %p61 = por %p59, %p60
    %s63 = sadd.s32 %s62, 1
    %p66 = scmp.eq.s32.totalorder %s12, 2
    %p67 = scmp.ne.s32.totalorder %s62, %s64
    %p68 = scmp.eq.s32.totalorder %s12, 0
    %p69 = por %p67, %p68
    %p70 = scmp.ne.s32.totalorder %s62, %s64
    %p71 = scmp.eq.s32.totalorder %s17, 2
    %p72 = por %p70, %p71
    %p73 = scmp.ne.s32.totalorder %s64, %s65
    %p74 = scmp.eq.s32.totalorder %s17, 0
    %p75 = por %p73, %p74
    %p76 = scmp.ne.s32.totalorder %s64, %s65
    %p77 = scmp.eq.s32.totalorder %s18, 2
    %p78 = por %p76, %p77
    %p80 = scmp.ne.s32.totalorder %s65, %s79
    %p81 = scmp.eq.s32.totalorder %s18, 0
    %p82 = por %p80, %p81
    %s84 = sadd.s32 %s83, 1
    %p87 = scmp.eq.s32.totalorder %s12, 2
    %p88 = scmp.ne.s32.totalorder %s83, %s85
    %p89 = scmp.eq.s32.totalorder %s12, 0
    %p90 = por %p88, %p89
    %p91 = scmp.ne.s32.totalorder %s83, %s85
    %p92 = scmp.eq.s32.totalorder %s17, 2
    %p93 = por %p91, %p92
    %p94 = scmp.ne.s32.totalorder %s85, %s86
    %p95 = scmp.eq.s32.totalorder %s17, 0
    %p96 = por %p94, %p95
    %p97 = scmp.ne.s32.totalorder %s85, %s86
    %p98 = scmp.eq.s32.totalorder %s18, 2
    %p99 = por %p97, %p98
    %p101 = scmp.ne.s32.totalorder %s86, %s100
    %p102 = scmp.eq.s32.totalorder %s18, 0
    %p103 = por %p101, %p102
    %s105 = sadd.s32 %s104, 1
    %p108 = scmp.eq.s32.totalorder %s12, 2
    %p109 = scmp.ne.s32.totalorder %s104, %s106
    %p110 = scmp.eq.s32.totalorder %s12, 0
    %p111 = por %p109, %p110
    %p112 = scmp.ne.s32.totalorder %s104, %s106
    %p113 = scmp.eq.s32.totalorder %s17, 2
    %p114 = por %p112, %p113
    %p115 = scmp.ne.s32.totalorder %s106, %s107
    %p116 = scmp.eq.s32.totalorder %s17, 0
    %p117 = por %p115, %p116
    %p118 = scmp.ne.s32.totalorder %s106, %s107
    %p119 = scmp.eq.s32.totalorder %s18, 2
    %p120 = por %p118, %p119
    %p122 = scmp.ne.s32.totalorder %s107, %s121
    %p123 = scmp.eq.s32.totalorder %s18, 0
    %p124 = por %p122, %p123
    %s125 = ssub.s32 %s12, %s19
    %p126 = scmp.eq.s32.totalorder %s125, 0
    %s128 = sadd.s32 %s127, 1
    %s129 = scalar_select %p126, %s127, %s128
    %p132 = pneg %p126
    %p133 = scmp.eq.s32.totalorder %s12, 2
    %p134 = por %p132, %p133
    %p135 = scmp.ne.s32.totalorder %s127, %s130
    %p136 = scmp.eq.s32.totalorder %s12, 0
    %p137 = por %p135, %p136
    %p138 = scmp.ne.s32.totalorder %s127, %s130
    %p139 = scmp.eq.s32.totalorder %s17, 2
    %p140 = por %p138, %p139
    %p141 = scmp.ne.s32.totalorder %s130, %s131
    %p142 = scmp.eq.s32.totalorder %s17, 0
    %p143 = por %p141, %p142
    %p144 = scmp.ne.s32.totalorder %s130, %s131
    %p145 = scmp.eq.s32.totalorder %s18, 2
    %p146 = por %p144, %p145
    %p148 = scmp.ne.s32.totalorder %s131, %s147
    %p149 = scmp.eq.s32.totalorder %s18, 0
    %p150 = por %p148, %p149
    %s151 = ssub.s32 %s12, %s19
    %p152 = scmp.eq.s32.totalorder %s151, 0
    %s154 = sadd.s32 %s153, 1
    %s155 = scalar_select %p152, %s153, %s154
    %p158 = pneg %p152
    %p159 = scmp.eq.s32.totalorder %s12, 2
    %p160 = por %p158, %p159
    %p161 = scmp.ne.s32.totalorder %s153, %s156
    %p162 = scmp.eq.s32.totalorder %s12, 0
    %p163 = por %p161, %p162
    %p164 = scmp.ne.s32.totalorder %s153, %s156
    %p165 = scmp.eq.s32.totalorder %s17, 2
    %p166 = por %p164, %p165
    %p167 = scmp.ne.s32.totalorder %s156, %s157
    %p168 = scmp.eq.s32.totalorder %s17, 0
    %p169 = por %p167, %p168
    %p170 = scmp.ne.s32.totalorder %s156, %s157
    %p171 = scmp.eq.s32.totalorder %s18, 2
    %p172 = por %p170, %p171
    %p174 = scmp.ne.s32.totalorder %s157, %s173
    %p175 = scmp.eq.s32.totalorder %s18, 0
    %p176 = por %p174, %p175
    %p177 = scmp.le.s32.totalorder 1, %s12
    %p178 = scmp.lt.s32.totalorder %s12, 4
    %p179 = pnand %p177, %p178
    %p180 = pneg %p179
    // Predicated region
    $region9: #{fused_forward.1} parent=5 // pred_check
      _
    $region10: #{fused_forward.1} parent=5 // pred_check_branch
      %182 = sbr.rel (%p179) target = $region12
    $region11: #{fused_forward.1} parent=5 // pred_region
      %s183 = ssub.s32 %s12, 1
      // Predicated region
      $region13: #{fused_forward.1} parent=11 // pred_check
        %p184 = pneg %p33
      $region14: #{fused_forward.1} parent=11 // pred_check_branch
        %186 = sbr.rel (%p184) target = $region16
      $region15: #{fused_forward.1} parent=11 // pred_region
        _
      $region16: #{fused_forward.1} parent=11 // pred_fallthru
        _
      // Predicated region
      $region17: #{fused_forward.1} parent=11 // pred_check
        %p187 = pneg %p54
      $region18: #{fused_forward.1} parent=11 // pred_check_branch
        %189 = sbr.rel (%p187) target = $region20
      $region19: #{fused_forward.1} parent=11 // pred_region
        _
      $region20: #{fused_forward.1} parent=11 // pred_fallthru
        _
      // Predicated region
      $region21: #{fused_forward.1} parent=11 // pred_check
        %p190 = pneg %p75
      $region22: #{fused_forward.1} parent=11 // pred_check_branch
        %192 = sbr.rel (%p190) target = $region24
      $region23: #{fused_forward.1} parent=11 // pred_region
        _
      $region24: #{fused_forward.1} parent=11 // pred_fallthru
        _
      // Predicated region
      $region25: #{fused_forward.1} parent=11 // pred_check
        %p193 = pneg %p96
      $region26: #{fused_forward.1} parent=11 // pred_check_branch
        %195 = sbr.rel (%p193) target = $region28
      $region27: #{fused_forward.1} parent=11 // pred_region
        _
      $region28: #{fused_forward.1} parent=11 // pred_fallthru
        _
      // Predicated region
      $region29: #{fused_forward.1} parent=11 // pred_check
        %p196 = pneg %p117
      $region30: #{fused_forward.1} parent=11 // pred_check_branch
        %198 = sbr.rel (%p196) target = $region32
      $region31: #{fused_forward.1} parent=11 // pred_region
        _
      $region32: #{fused_forward.1} parent=11 // pred_fallthru
        _
    $region12: #{fused_forward.1} parent=5 // pred_fallthru
      _
    %p199 = scmp.lt.s32.totalorder %s12, 3
    // Predicated region
    $region33: #{fused_forward.1} parent=5 // pred_check
      %p200 = pneg %p199
    $region34: #{fused_forward.1} parent=5 // pred_check_branch
      %202 = sbr.rel (%p200) target = $region36
    $region35: #{fused_forward.1} parent=5 // pred_region
      // Predicated region
      $region37: #{fused_forward.1} parent=35 // pred_check
        %p203 = pneg %p137
      $region38: #{fused_forward.1} parent=35 // pred_check_branch
        %205 = sbr.rel (%p203) target = $region40
      $region39: #{fused_forward.1} parent=35 // pred_region
        %s206 = smul.u32 32, %s12
        %p207 = scmp.lt.s32.totalorder %s206, 95
        %s208 = scalar_select %p207, %s206, 95
        %s209 = smul.addr %s208, 6
        %s210 = smul.addr %s209, 4
        %s211 = scalar_lea.vmem %s5, %s210
        %s212 = smul.u32 32, %s12
      $region40: #{fused_forward.1} parent=35 // pred_fallthru
        _
    $region36: #{fused_forward.1} parent=5 // pred_fallthru
      _
    %p213 = scmp.le.s32.totalorder 1, %s12
    %p214 = scmp.lt.s32.totalorder %s12, 4
    %p215 = pnand %p213, %p214
    %p216 = pneg %p215
    // Predicated region
    $region41: #{fused_forward.1} parent=5 // pred_check
      _
    $region42: #{fused_forward.1} parent=5 // pred_check_branch
      %218 = sbr.rel (%p215) target = $region44
    $region43: #{fused_forward.1} parent=5 // pred_region
      %s219 = ssub.s32 %s12, 1
      %p220 = pneg %p33
      %p221 = pneg %p30
      %p222 = pneg %p54
      %p223 = pneg %p51
      %p224 = pneg %p75
      %p225 = pneg %p72
      %p226 = pneg %p96
      %p227 = pneg %p93
      %p228 = pneg %p117
      %p229 = pneg %p114
      %s230 = smul.u32 32, %s17
      %p231 = scmp.lt.s32.totalorder %s230, 95
      %s232 = scalar_select %p231, %s230, 95
      %s233 = smul.addr %s232, 6
      %s234 = smul.addr %s233, 4
      %s235 = scalar_lea.vmem %s5, %s234
      %p236 = pneg %p143
      %p237 = pneg %p140
      %p238 = pneg %p169
      %p239 = pneg %p166
      %s240 = smul.u32 32, %s17
      %p241 = scmp.lt.s32.totalorder %s240, 95
      %s242 = scalar_select %p241, %s240, 95
      %s243 = smul.addr %s242, 2
      %s244 = smul.addr %s243, 8
      %s245 = scalar_lea.vmem %s6, %s244
      %s246 = smul.u32 32, %s17
      %p247 = scmp.lt.s32.totalorder %s246, 95
      %s248 = scalar_select %p247, %s246, 95
      %s249 = smul.addr %s248, 6
      %s250 = smul.addr %s249, 4
      %s251 = scalar_lea.vmem %s5, %s250
      %s252 = smul.u32 32, %s17
      %s253 = smul.u32 32, %s17
      %p254 = scmp.lt.s32.totalorder %s253, 95
      %s255 = scalar_select %p254, %s253, 95
      %s256 = smul.addr %s255, 2
      %s257 = smul.addr %s256, 8
      %s258 = scalar_lea.vmem %s6, %s257
      %s259 = smul.u32 32, %s17
      %p260 = scmp.eq.s32.totalorder %s17, 0
      // Predicated region
      $region45: #{fused_forward.1} parent=43 // pred_check
        %p261 = pneg %p260
      $region46: #{fused_forward.1} parent=43 // pred_check_branch
        %263 = sbr.rel (%p261) target = $region48
      $region47: #{fused_forward.1} parent=43 // pred_region
        %v264 = vld [vmem:[%s1] sm:$0xff]
        %v265 = vld [vmem:[%s1 + $0x8] sm:$0xff]
        %v266 = vld [vmem:[%s1 + $0x10] sm:$0xff]
        %v267 = vld [vmem:[%s1 + $0x18] sm:$0xff]
        %v268 = vld [vmem:[%s1 + $0x20] sm:$0xff]
        %v269 = vld [vmem:[%s1 + $0x28] sm:$0xff]
        %v270 = vld [vmem:[%s1 + $0x30] sm:$0xff]
        %v271 = vld [vmem:[%s1 + $0x38] sm:$0xff]
        %v272 = vld [vmem:[%s1 + $0x40] sm:$0xff]
        %v273 = vld [vmem:[%s1 + $0x48] sm:$0xff]
        %v274 = vld [vmem:[%s1 + $0x50] sm:$0xff]
        %v275 = vld [vmem:[%s1 + $0x58] sm:$0xff]
        %v276 = vld [vmem:[%s1 + $0x60] sm:$0xff]
        %v277 = vld [vmem:[%s1 + $0x68] sm:$0xff]
        %v278 = vld [vmem:[%s1 + $0x70] sm:$0xff]
        %v279 = vld [vmem:[%s1 + $0x78] sm:$0xff]
        %v280 = vld [vmem:[%s1 + $0x80] sm:$0xff]
        %v281 = vld [vmem:[%s1 + $0x88] sm:$0xff]
        %v282 = vld [vmem:[%s1 + $0x90] sm:$0xff]
        %v283 = vld [vmem:[%s1 + $0x98] sm:$0xff]
        %v284 = vld [vmem:[%s1 + $0xa0] sm:$0xff]
        %v285 = vld [vmem:[%s1 + $0xa8] sm:$0xff]
        %v286 = vld [vmem:[%s1 + $0xb0] sm:$0xff]
        %v287 = vld [vmem:[%s1 + $0xb8] sm:$0xff]
        %v288 = vld [vmem:[%s1 + $0xc0] sm:$0xff]
        %v289 = vld [vmem:[%s1 + $0xc8] sm:$0xff]
        %v290 = vld [vmem:[%s1 + $0xd0] sm:$0xff]
        %v291 = vld [vmem:[%s1 + $0xd8] sm:$0xff]
        %v292 = vld [vmem:[%s1 + $0xe0] sm:$0xff]
        %v293 = vld [vmem:[%s1 + $0xe8] sm:$0xff]
        %v294 = vld [vmem:[%s1 + $0xf0] sm:$0xff]
        %v295 = vld [vmem:[%s1 + $0xf8] sm:$0xff]
        %v296 = vld [vmem:[%s1 + $0x100] sm:$0xff]
        %v297 = vld [vmem:[%s1 + $0x108] sm:$0xff]
        %v298 = vld [vmem:[%s1 + $0x110] sm:$0xff]
        %v299 = vld [vmem:[%s1 + $0x118] sm:$0xff]
        %v300 = vld [vmem:[%s1 + $0x120] sm:$0xff]
        %v301 = vld [vmem:[%s1 + $0x128] sm:$0xff]
        %v302 = vld [vmem:[%s1 + $0x130] sm:$0xff]
        %v303 = vld [vmem:[%s1 + $0x138] sm:$0xff]
        %v304 = vld [vmem:[%s1 + $0x140] sm:$0xff]
        %v305 = vld [vmem:[%s1 + $0x148] sm:$0xff]
        %v306 = vld [vmem:[%s1 + $0x150] sm:$0xff]
        %v307 = vld [vmem:[%s1 + $0x158] sm:$0xff]
        %v308 = vld [vmem:[%s1 + $0x160] sm:$0xff]
        %v309 = vld [vmem:[%s1 + $0x168] sm:$0xff]
        %v310 = vld [vmem:[%s1 + $0x170] sm:$0xff]
        %v311 = vld [vmem:[%s1 + $0x178] sm:$0xff]
        %v312 = vld [vmem:[%s1 + $0x180] sm:$0xff]
        %v313 = vld [vmem:[%s1 + $0x188] sm:$0xff]
        %v314 = vld [vmem:[%s1 + $0x190] sm:$0xff]
        %v315 = vld [vmem:[%s1 + $0x198] sm:$0xff]
        %v316 = vld [vmem:[%s1 + $0x1a0] sm:$0xff]
        %v317 = vld [vmem:[%s1 + $0x1a8] sm:$0xff]
        %v318 = vld [vmem:[%s1 + $0x1b0] sm:$0xff]
        %v319 = vld [vmem:[%s1 + $0x1b8] sm:$0xff]
        %v320 = vld [vmem:[%s1 + $0x1c0] sm:$0xff]
        %v321 = vld [vmem:[%s1 + $0x1c8] sm:$0xff]
        %v322 = vld [vmem:[%s1 + $0x1d0] sm:$0xff]
        %v323 = vld [vmem:[%s1 + $0x1d8] sm:$0xff]
        %v324 = vld [vmem:[%s1 + $0x1e0] sm:$0xff]
        %v325 = vld [vmem:[%s1 + $0x1e8] sm:$0xff]
        %v326 = vld [vmem:[%s1 + $0x1f0] sm:$0xff]
        %v327 = vld [vmem:[%s1 + $0x1f8] sm:$0xff]
        %v328 = vld [vmem:[%s1 + $0x200] sm:$0xff]
        %v329 = vld [vmem:[%s1 + $0x208] sm:$0xff]
        %v330 = vld [vmem:[%s1 + $0x210] sm:$0xff]
        %v331 = vld [vmem:[%s1 + $0x218] sm:$0xff]
        %v332 = vld [vmem:[%s1 + $0x220] sm:$0xff]
        %v333 = vld [vmem:[%s1 + $0x228] sm:$0xff]
        %v334 = vld [vmem:[%s1 + $0x230] sm:$0xff]
        %v335 = vld [vmem:[%s1 + $0x238] sm:$0xff]
        %v336 = vld [vmem:[%s1 + $0x240] sm:$0xff]
        %v337 = vld [vmem:[%s1 + $0x248] sm:$0xff]
        %v338 = vld [vmem:[%s1 + $0x250] sm:$0xff]
        %v339 = vld [vmem:[%s1 + $0x258] sm:$0xff]
        %v340 = vld [vmem:[%s1 + $0x260] sm:$0xff]
        %v341 = vld [vmem:[%s1 + $0x268] sm:$0xff]
        %v342 = vld [vmem:[%s1 + $0x270] sm:$0xff]
        %v343 = vld [vmem:[%s1 + $0x278] sm:$0xff]
        %v344 = vld [vmem:[%s1 + $0x280] sm:$0xff]
        %v345 = vld [vmem:[%s1 + $0x288] sm:$0xff]
        %v346 = vld [vmem:[%s1 + $0x290] sm:$0xff]
        %v347 = vld [vmem:[%s1 + $0x298] sm:$0xff]
        %v348 = vld [vmem:[%s1 + $0x2a0] sm:$0xff]
        %v349 = vld [vmem:[%s1 + $0x2a8] sm:$0xff]
        %v350 = vld [vmem:[%s1 + $0x2b0] sm:$0xff]
        %v351 = vld [vmem:[%s1 + $0x2b8] sm:$0xff]
        %v352 = vld [vmem:[%s1 + $0x2c0] sm:$0xff]
        %v353 = vld [vmem:[%s1 + $0x2c8] sm:$0xff]
        %v354 = vld [vmem:[%s1 + $0x2d0] sm:$0xff]
        %v355 = vld [vmem:[%s1 + $0x2d8] sm:$0xff]
        %v356 = vld [vmem:[%s1 + $0x2e0] sm:$0xff]
        %v357 = vld [vmem:[%s1 + $0x2e8] sm:$0xff]
        %v358 = vld [vmem:[%s1 + $0x2f0] sm:$0xff]
        %v359 = vld [vmem:[%s1 + $0x2f8] sm:$0xff]
        %v360 = vld [vmem:[%s0] sm:$0xff]
        %v361 = vld [vmem:[%s0 + $0x8] sm:$0xff]
        %v362 = vld [vmem:[%s0 + $0x10] sm:$0xff]
        %v363 = vld [vmem:[%s0 + $0x18] sm:$0xff]
        %v364 = vld [vmem:[%s0 + $0x20] sm:$0xff]
        %v365 = vld [vmem:[%s0 + $0x28] sm:$0xff]
        %v366 = vld [vmem:[%s0 + $0x30] sm:$0xff]
        %v367 = vld [vmem:[%s0 + $0x38] sm:$0xff]
        %v368 = vld [vmem:[%s0 + $0x40] sm:$0xff]
        %v369 = vld [vmem:[%s0 + $0x48] sm:$0xff]
        %v370 = vld [vmem:[%s0 + $0x50] sm:$0xff]
        %v371 = vld [vmem:[%s0 + $0x58] sm:$0xff]
        %v372 = vld [vmem:[%s0 + $0x60] sm:$0xff]
        %v373 = vld [vmem:[%s0 + $0x68] sm:$0xff]
        %v374 = vld [vmem:[%s0 + $0x70] sm:$0xff]
        %v375 = vld [vmem:[%s0 + $0x78] sm:$0xff]
        %v376 = vld [vmem:[%s0 + $0x80] sm:$0xff]
        %v377 = vld [vmem:[%s0 + $0x88] sm:$0xff]
        %v378 = vld [vmem:[%s0 + $0x90] sm:$0xff]
        %v379 = vld [vmem:[%s0 + $0x98] sm:$0xff]
        %v380 = vld [vmem:[%s0 + $0xa0] sm:$0xff]
        %v381 = vld [vmem:[%s0 + $0xa8] sm:$0xff]
        %v382 = vld [vmem:[%s0 + $0xb0] sm:$0xff]
        %v383 = vld [vmem:[%s0 + $0xb8] sm:$0xff]
        %v384 = vld [vmem:[%s0 + $0xc0] sm:$0xff]
        %v385 = vld [vmem:[%s0 + $0xc8] sm:$0xff]
        %v386 = vld [vmem:[%s0 + $0xd0] sm:$0xff]
        %v387 = vld [vmem:[%s0 + $0xd8] sm:$0xff]
        %v388 = vld [vmem:[%s0 + $0xe0] sm:$0xff]
        %v389 = vld [vmem:[%s0 + $0xe8] sm:$0xff]
        %v390 = vld [vmem:[%s0 + $0xf0] sm:$0xff]
        %v391 = vld [vmem:[%s0 + $0xf8] sm:$0xff]
        %v488 = vunpack.c.l.b16 %v264
        %v489 = vunpack.c.h.b16 %v264
        %v490 = vunpack.c.l.b16 %v265
        %v491 = vunpack.c.h.b16 %v265
        %v492 = vunpack.c.l.b16 %v266
        %v493 = vunpack.c.h.b16 %v266
        %v494 = vunpack.c.l.b16 %v267
        %v495 = vunpack.c.h.b16 %v267
        %v496 = vunpack.c.l.b16 %v268
        %v497 = vunpack.c.h.b16 %v268
        %v498 = vunpack.c.l.b16 %v269
        %v499 = vunpack.c.h.b16 %v269
        %v500 = vunpack.c.l.b16 %v270
        %v501 = vunpack.c.h.b16 %v270
        %v502 = vunpack.c.l.b16 %v271
        %v503 = vunpack.c.h.b16 %v271
        %v504 = vunpack.c.l.b16 %v272
        %v505 = vunpack.c.h.b16 %v272
        %v506 = vunpack.c.l.b16 %v273
        %v507 = vunpack.c.h.b16 %v273
        %v508 = vunpack.c.l.b16 %v274
        %v509 = vunpack.c.h.b16 %v274
        %v510 = vunpack.c.l.b16 %v275
        %v511 = vunpack.c.h.b16 %v275
        %v512 = vunpack.c.l.b16 %v276
        %v513 = vunpack.c.h.b16 %v276
        %v514 = vunpack.c.l.b16 %v277
        %v515 = vunpack.c.h.b16 %v277
        %v516 = vunpack.c.l.b16 %v278
        %v517 = vunpack.c.h.b16 %v278
        %v518 = vunpack.c.l.b16 %v279
        %v519 = vunpack.c.h.b16 %v279
        %v520 = vunpack.c.l.b16 %v280
        %v521 = vunpack.c.h.b16 %v280
        %v522 = vunpack.c.l.b16 %v281
        %v523 = vunpack.c.h.b16 %v281
        %v524 = vunpack.c.l.b16 %v282
        %v525 = vunpack.c.h.b16 %v282
        %v526 = vunpack.c.l.b16 %v283
        %v527 = vunpack.c.h.b16 %v283
        %v528 = vunpack.c.l.b16 %v284
        %v529 = vunpack.c.h.b16 %v284
        %v530 = vunpack.c.l.b16 %v285
        %v531 = vunpack.c.h.b16 %v285
        %v532 = vunpack.c.l.b16 %v286
        %v533 = vunpack.c.h.b16 %v286
        %v534 = vunpack.c.l.b16 %v287
        %v535 = vunpack.c.h.b16 %v287
        %v536 = vunpack.c.l.b16 %v288
        %v537 = vunpack.c.h.b16 %v288
        %v538 = vunpack.c.l.b16 %v289
        %v539 = vunpack.c.h.b16 %v289
        %v540 = vunpack.c.l.b16 %v290
        %v541 = vunpack.c.h.b16 %v290
        %v542 = vunpack.c.l.b16 %v291
        %v543 = vunpack.c.h.b16 %v291
        %v544 = vunpack.c.l.b16 %v292
        %v545 = vunpack.c.h.b16 %v292
        %v546 = vunpack.c.l.b16 %v293
        %v547 = vunpack.c.h.b16 %v293
        %v548 = vunpack.c.l.b16 %v294
        %v549 = vunpack.c.h.b16 %v294
        %v550 = vunpack.c.l.b16 %v295
        %v551 = vunpack.c.h.b16 %v295
        %v552 = vunpack.c.l.b16 %v296
        %v553 = vunpack.c.h.b16 %v296
        %v554 = vunpack.c.l.b16 %v297
        %v555 = vunpack.c.h.b16 %v297
        %v556 = vunpack.c.l.b16 %v298
        %v557 = vunpack.c.h.b16 %v298
        %v558 = vunpack.c.l.b16 %v299
        %v559 = vunpack.c.h.b16 %v299
        %v560 = vunpack.c.l.b16 %v300
        %v561 = vunpack.c.h.b16 %v300
        %v562 = vunpack.c.l.b16 %v301
        %v563 = vunpack.c.h.b16 %v301
        %v564 = vunpack.c.l.b16 %v302
        %v565 = vunpack.c.h.b16 %v302
        %v566 = vunpack.c.l.b16 %v303
        %v567 = vunpack.c.h.b16 %v303
        %v568 = vunpack.c.l.b16 %v304
        %v569 = vunpack.c.h.b16 %v304
        %v570 = vunpack.c.l.b16 %v305
        %v571 = vunpack.c.h.b16 %v305
        %v572 = vunpack.c.l.b16 %v306
        %v573 = vunpack.c.h.b16 %v306
        %v574 = vunpack.c.l.b16 %v307
        %v575 = vunpack.c.h.b16 %v307
        %v576 = vunpack.c.l.b16 %v308
        %v577 = vunpack.c.h.b16 %v308
        %v578 = vunpack.c.l.b16 %v309
        %v579 = vunpack.c.h.b16 %v309
        %v580 = vunpack.c.l.b16 %v310
        %v581 = vunpack.c.h.b16 %v310
        %v582 = vunpack.c.l.b16 %v311
        %v583 = vunpack.c.h.b16 %v311
        %v584 = vunpack.c.l.b16 %v312
        %v585 = vunpack.c.h.b16 %v312
        %v586 = vunpack.c.l.b16 %v313
        %v587 = vunpack.c.h.b16 %v313
        %v588 = vunpack.c.l.b16 %v314
        %v589 = vunpack.c.h.b16 %v314
        %v590 = vunpack.c.l.b16 %v315
        %v591 = vunpack.c.h.b16 %v315
        %v592 = vunpack.c.l.b16 %v316
        %v593 = vunpack.c.h.b16 %v316
        %v594 = vunpack.c.l.b16 %v317
        %v595 = vunpack.c.h.b16 %v317
        %v596 = vunpack.c.l.b16 %v318
        %v597 = vunpack.c.h.b16 %v318
        %v598 = vunpack.c.l.b16 %v319
        %v599 = vunpack.c.h.b16 %v319
        %v600 = vunpack.c.l.b16 %v320
        %v601 = vunpack.c.h.b16 %v320
        %v602 = vunpack.c.l.b16 %v321
        %v603 = vunpack.c.h.b16 %v321
        %v604 = vunpack.c.l.b16 %v322
        %v605 = vunpack.c.h.b16 %v322
        %v606 = vunpack.c.l.b16 %v323
        %v607 = vunpack.c.h.b16 %v323
        %v608 = vunpack.c.l.b16 %v324
        %v609 = vunpack.c.h.b16 %v324
        %v610 = vunpack.c.l.b16 %v325
        %v611 = vunpack.c.h.b16 %v325
        %v612 = vunpack.c.l.b16 %v326
        %v613 = vunpack.c.h.b16 %v326
        %v614 = vunpack.c.l.b16 %v327
        %v615 = vunpack.c.h.b16 %v327
        %v616 = vunpack.c.l.b16 %v328
        %v617 = vunpack.c.h.b16 %v328
        %v618 = vunpack.c.l.b16 %v329
        %v619 = vunpack.c.h.b16 %v329
        %v620 = vunpack.c.l.b16 %v330
        %v621 = vunpack.c.h.b16 %v330
        %v622 = vunpack.c.l.b16 %v331
        %v623 = vunpack.c.h.b16 %v331
        %v624 = vunpack.c.l.b16 %v332
        %v625 = vunpack.c.h.b16 %v332
        %v626 = vunpack.c.l.b16 %v333
        %v627 = vunpack.c.h.b16 %v333
        %v628 = vunpack.c.l.b16 %v334
        %v629 = vunpack.c.h.b16 %v334
        %v630 = vunpack.c.l.b16 %v335
        %v631 = vunpack.c.h.b16 %v335
        %v632 = vunpack.c.l.b16 %v336
        %v633 = vunpack.c.h.b16 %v336
        %v634 = vunpack.c.l.b16 %v337
        %v635 = vunpack.c.h.b16 %v337
        %v636 = vunpack.c.l.b16 %v338
        %v637 = vunpack.c.h.b16 %v338
        %v638 = vunpack.c.l.b16 %v339
        %v639 = vunpack.c.h.b16 %v339
        %v640 = vunpack.c.l.b16 %v340
        %v641 = vunpack.c.h.b16 %v340
        %v642 = vunpack.c.l.b16 %v341
        %v643 = vunpack.c.h.b16 %v341
        %v644 = vunpack.c.l.b16 %v342
        %v645 = vunpack.c.h.b16 %v342
        %v646 = vunpack.c.l.b16 %v343
        %v647 = vunpack.c.h.b16 %v343
        %v648 = vunpack.c.l.b16 %v344
        %v649 = vunpack.c.h.b16 %v344
        %v650 = vunpack.c.l.b16 %v345
        %v651 = vunpack.c.h.b16 %v345
        %v652 = vunpack.c.l.b16 %v346
        %v653 = vunpack.c.h.b16 %v346
        %v654 = vunpack.c.l.b16 %v347
        %v655 = vunpack.c.h.b16 %v347
        %v656 = vunpack.c.l.b16 %v348
        %v657 = vunpack.c.h.b16 %v348
        %v658 = vunpack.c.l.b16 %v349
        %v659 = vunpack.c.h.b16 %v349
        %v660 = vunpack.c.l.b16 %v350
        %v661 = vunpack.c.h.b16 %v350
        %v662 = vunpack.c.l.b16 %v351
        %v663 = vunpack.c.h.b16 %v351
        %v664 = vunpack.c.l.b16 %v352
        %v665 = vunpack.c.h.b16 %v352
        %v666 = vunpack.c.l.b16 %v353
        %v667 = vunpack.c.h.b16 %v353
        %v668 = vunpack.c.l.b16 %v354
        %v669 = vunpack.c.h.b16 %v354
        %v670 = vunpack.c.l.b16 %v355
        %v671 = vunpack.c.h.b16 %v355
        %v672 = vunpack.c.l.b16 %v356
        %v673 = vunpack.c.h.b16 %v356
        %v674 = vunpack.c.l.b16 %v357
        %v675 = vunpack.c.h.b16 %v357
        %v676 = vunpack.c.l.b16 %v358
        %v677 = vunpack.c.h.b16 %v358
        %v678 = vunpack.c.l.b16 %v359
        %v679 = vunpack.c.h.b16 %v359
        %v680 = vpack.c.b16 %v490, %v488
        %v681 = vpack.c.b16 %v491, %v489
        %v682 = vpack.c.b16 %v494, %v492
        %v683 = vpack.c.b16 %v495, %v493
        %v684 = vpack.c.b16 %v498, %v496
        %v685 = vpack.c.b16 %v499, %v497
        %v686 = vpack.c.b16 %v502, %v500
        %v687 = vpack.c.b16 %v503, %v501
        %v688 = vpack.c.b16 %v506, %v504
        %v689 = vpack.c.b16 %v507, %v505
        %v690 = vpack.c.b16 %v510, %v508
        %v691 = vpack.c.b16 %v511, %v509
        %v692 = vpack.c.b16 %v514, %v512
        %v693 = vpack.c.b16 %v515, %v513
        %v694 = vpack.c.b16 %v518, %v516
        %v695 = vpack.c.b16 %v519, %v517
        %v696 = vpack.c.b16 %v522, %v520
        %v697 = vpack.c.b16 %v523, %v521
        %v698 = vpack.c.b16 %v526, %v524
        %v699 = vpack.c.b16 %v527, %v525
        %v700 = vpack.c.b16 %v530, %v528
        %v701 = vpack.c.b16 %v531, %v529
        %v702 = vpack.c.b16 %v534, %v532
        %v703 = vpack.c.b16 %v535, %v533
        %v704 = vpack.c.b16 %v538, %v536
        %v705 = vpack.c.b16 %v539, %v537
        %v706 = vpack.c.b16 %v542, %v540
        %v707 = vpack.c.b16 %v543, %v541
        %v708 = vpack.c.b16 %v546, %v544
        %v709 = vpack.c.b16 %v547, %v545
        %v710 = vpack.c.b16 %v550, %v548
        %v711 = vpack.c.b16 %v551, %v549
        %v712 = vpack.c.b16 %v554, %v552
        %v713 = vpack.c.b16 %v555, %v553
        %v714 = vpack.c.b16 %v558, %v556
        %v715 = vpack.c.b16 %v559, %v557
        %v716 = vpack.c.b16 %v562, %v560
        %v717 = vpack.c.b16 %v563, %v561
        %v718 = vpack.c.b16 %v566, %v564
        %v719 = vpack.c.b16 %v567, %v565
        %v720 = vpack.c.b16 %v570, %v568
        %v721 = vpack.c.b16 %v571, %v569
        %v722 = vpack.c.b16 %v574, %v572
        %v723 = vpack.c.b16 %v575, %v573
        %v724 = vpack.c.b16 %v578, %v576
        %v725 = vpack.c.b16 %v579, %v577
        %v726 = vpack.c.b16 %v582, %v580
        %v727 = vpack.c.b16 %v583, %v581
        %v728 = vpack.c.b16 %v586, %v584
        %v729 = vpack.c.b16 %v587, %v585
        %v730 = vpack.c.b16 %v590, %v588
        %v731 = vpack.c.b16 %v591, %v589
        %v732 = vpack.c.b16 %v594, %v592
        %v733 = vpack.c.b16 %v595, %v593
        %v734 = vpack.c.b16 %v598, %v596
        %v735 = vpack.c.b16 %v599, %v597
        %v736 = vpack.c.b16 %v602, %v600
        %v737 = vpack.c.b16 %v603, %v601
        %v738 = vpack.c.b16 %v606, %v604
        %v739 = vpack.c.b16 %v607, %v605
        %v740 = vpack.c.b16 %v610, %v608
        %v741 = vpack.c.b16 %v611, %v609
        %v742 = vpack.c.b16 %v614, %v612
        %v743 = vpack.c.b16 %v615, %v613
        %v744 = vpack.c.b16 %v618, %v616
        %v745 = vpack.c.b16 %v619, %v617
        %v746 = vpack.c.b16 %v622, %v620
        %v747 = vpack.c.b16 %v623, %v621
        %v748 = vpack.c.b16 %v626, %v624
        %v749 = vpack.c.b16 %v627, %v625
        %v750 = vpack.c.b16 %v630, %v628
        %v751 = vpack.c.b16 %v631, %v629
        %v752 = vpack.c.b16 %v634, %v632
        %v753 = vpack.c.b16 %v635, %v633
        %v754 = vpack.c.b16 %v638, %v636
        %v755 = vpack.c.b16 %v639, %v637
        %v756 = vpack.c.b16 %v642, %v640
        %v757 = vpack.c.b16 %v643, %v641
        %v758 = vpack.c.b16 %v646, %v644
        %v759 = vpack.c.b16 %v647, %v645
        %v760 = vpack.c.b16 %v650, %v648
        %v761 = vpack.c.b16 %v651, %v649
        %v762 = vpack.c.b16 %v654, %v652
        %v763 = vpack.c.b16 %v655, %v653
        %v764 = vpack.c.b16 %v658, %v656
        %v765 = vpack.c.b16 %v659, %v657
        %v766 = vpack.c.b16 %v662, %v660
        %v767 = vpack.c.b16 %v663, %v661
        %v768 = vpack.c.b16 %v666, %v664
        %v769 = vpack.c.b16 %v667, %v665
        %v770 = vpack.c.b16 %v670, %v668
        %v771 = vpack.c.b16 %v671, %v669
        %v772 = vpack.c.b16 %v674, %v672
        %v773 = vpack.c.b16 %v675, %v673
        %v774 = vpack.c.b16 %v678, %v676
        %v775 = vpack.c.b16 %v679, %v677
        %v904 = vunpack.c.l.b16 %v360
        %v905 = vunpack.c.h.b16 %v360
        %v906 = vunpack.c.l.b16 %v361
        %v907 = vunpack.c.h.b16 %v361
        %v908 = vunpack.c.l.b16 %v362
        %v909 = vunpack.c.h.b16 %v362
        %v910 = vunpack.c.l.b16 %v363
        %v911 = vunpack.c.h.b16 %v363
        %v912 = vunpack.c.l.b16 %v364
        %v913 = vunpack.c.h.b16 %v364
        %v914 = vunpack.c.l.b16 %v365
        %v915 = vunpack.c.h.b16 %v365
        %v916 = vunpack.c.l.b16 %v366
        %v917 = vunpack.c.h.b16 %v366
        %v918 = vunpack.c.l.b16 %v367
        %v919 = vunpack.c.h.b16 %v367
        %v920 = vunpack.c.l.b16 %v368
        %v921 = vunpack.c.h.b16 %v368
        %v922 = vunpack.c.l.b16 %v369
        %v923 = vunpack.c.h.b16 %v369
        %v924 = vunpack.c.l.b16 %v370
        %v925 = vunpack.c.h.b16 %v370
        %v926 = vunpack.c.l.b16 %v371
        %v927 = vunpack.c.h.b16 %v371
        %v928 = vunpack.c.l.b16 %v372
        %v929 = vunpack.c.h.b16 %v372
        %v930 = vunpack.c.l.b16 %v373
        %v931 = vunpack.c.h.b16 %v373
        %v932 = vunpack.c.l.b16 %v374
        %v933 = vunpack.c.h.b16 %v374
        %v934 = vunpack.c.l.b16 %v375
        %v935 = vunpack.c.h.b16 %v375
        %v936 = vunpack.c.l.b16 %v376
        %v937 = vunpack.c.h.b16 %v376
        %v938 = vunpack.c.l.b16 %v377
        %v939 = vunpack.c.h.b16 %v377
        %v940 = vunpack.c.l.b16 %v378
        %v941 = vunpack.c.h.b16 %v378
        %v942 = vunpack.c.l.b16 %v379
        %v943 = vunpack.c.h.b16 %v379
        %v944 = vunpack.c.l.b16 %v380
        %v945 = vunpack.c.h.b16 %v380
        %v946 = vunpack.c.l.b16 %v381
        %v947 = vunpack.c.h.b16 %v381
        %v948 = vunpack.c.l.b16 %v382
        %v949 = vunpack.c.h.b16 %v382
        %v950 = vunpack.c.l.b16 %v383
        %v951 = vunpack.c.h.b16 %v383
        %v952 = vunpack.c.l.b16 %v384
        %v953 = vunpack.c.h.b16 %v384
        %v954 = vunpack.c.l.b16 %v385
        %v955 = vunpack.c.h.b16 %v385
        %v956 = vunpack.c.l.b16 %v386
        %v957 = vunpack.c.h.b16 %v386
        %v958 = vunpack.c.l.b16 %v387
        %v959 = vunpack.c.h.b16 %v387
        %v960 = vunpack.c.l.b16 %v388
        %v961 = vunpack.c.h.b16 %v388
        %v962 = vunpack.c.l.b16 %v389
        %v963 = vunpack.c.h.b16 %v389
        %v964 = vunpack.c.l.b16 %v390
        %v965 = vunpack.c.h.b16 %v390
        %v966 = vunpack.c.l.b16 %v391
        %v967 = vunpack.c.h.b16 %v391
        %v968 = vpack.c.b16 %v906, %v904
        %v969 = vpack.c.b16 %v907, %v905
        %v970 = vpack.c.b16 %v910, %v908
        %v971 = vpack.c.b16 %v911, %v909
        %v972 = vpack.c.b16 %v914, %v912
        %v973 = vpack.c.b16 %v915, %v913
        %v974 = vpack.c.b16 %v918, %v916
        %v975 = vpack.c.b16 %v919, %v917
        %v976 = vpack.c.b16 %v922, %v920
        %v977 = vpack.c.b16 %v923, %v921
        %v978 = vpack.c.b16 %v926, %v924
        %v979 = vpack.c.b16 %v927, %v925
        %v980 = vpack.c.b16 %v930, %v928
        %v981 = vpack.c.b16 %v931, %v929
        %v982 = vpack.c.b16 %v934, %v932
        %v983 = vpack.c.b16 %v935, %v933
        %v984 = vpack.c.b16 %v938, %v936
        %v985 = vpack.c.b16 %v939, %v937
        %v986 = vpack.c.b16 %v942, %v940
        %v987 = vpack.c.b16 %v943, %v941
        %v988 = vpack.c.b16 %v946, %v944
        %v989 = vpack.c.b16 %v947, %v945
        %v990 = vpack.c.b16 %v950, %v948
        %v991 = vpack.c.b16 %v951, %v949
        %v992 = vpack.c.b16 %v954, %v952
        %v993 = vpack.c.b16 %v955, %v953
        %v994 = vpack.c.b16 %v958, %v956
        %v995 = vpack.c.b16 %v959, %v957
        %v996 = vpack.c.b16 %v962, %v960
        %v997 = vpack.c.b16 %v963, %v961
        %v998 = vpack.c.b16 %v966, %v964
        %v999 = vpack.c.b16 %v967, %v965
        %1032 = vmatprep.subr.bf16.mxu0 %v969
        %1033 = vmatpush1.bf16.msra.mxu0 %v968
        %1034 = vmatprep.subr.bf16.mxu0 %v971
        %1035 = vmatpush1.bf16.msra.mxu0 %v970
        %1036 = vmatprep.subr.bf16.mxu0 %v973
        %1037 = vmatpush1.bf16.msra.mxu0 %v972
        %1038 = vmatprep.subr.bf16.mxu0 %v975
        %1039 = vmatpush1.bf16.msra.mxu0 %v974
        %1040 = vmatprep.subr.bf16.mxu0 %v977
        %1041 = vmatpush1.bf16.msra.mxu0 %v976
        %1042 = vmatprep.subr.bf16.mxu0 %v979
        %1043 = vmatpush1.bf16.msra.mxu0 %v978
        %1044 = vmatprep.subr.bf16.mxu0 %v981
        %1045 = vmatpush1.bf16.msra.mxu0 %v980
        %1046 = vmatprep.subr.bf16.mxu0 %v983
        %1047 = vmatpush1.bf16.msra.mxu0 %v982
        %1048 = vmatprep.subr.bf16.mxu0 %v985
        %1049 = vmatpush1.bf16.msra.mxu0 %v984
        %1050 = vmatprep.subr.bf16.mxu0 %v987
        %1051 = vmatpush1.bf16.msra.mxu0 %v986
        %1052 = vmatprep.subr.bf16.mxu0 %v989
        %1053 = vmatpush1.bf16.msra.mxu0 %v988
        %1054 = vmatprep.subr.bf16.mxu0 %v991
        %1055 = vmatpush1.bf16.msra.mxu0 %v990
        %1056 = vmatprep.subr.bf16.mxu0 %v993
        %1057 = vmatpush1.bf16.msra.mxu0 %v992
        %1058 = vmatprep.subr.bf16.mxu0 %v995
        %1059 = vmatpush1.bf16.msra.mxu0 %v994
        %1060 = vmatprep.subr.bf16.mxu0 %v997
        %1061 = vmatpush1.bf16.msra.mxu0 %v996
        %1062 = vmatprep.subr.bf16.mxu0 %v999
        %1063 = vmatpush1.bf16.msra.mxu0 %v998
        %1064 = vmatprep.mubr.bf16.mxu0 %v681
        %1065 = vmatmul.mubr.bf16.gmra.mrb[0].mxu0 %v680
        %v1066 = vpop.f32.mrb[0].mxu0
        %v1067 = vadd.f32 0.0, %v1066
        %v1068 = vpop.f32.mrb[0].mxu0
        %v1069 = vadd.f32 0.0, %v1068
        %v1070 = vpop.f32.mrb[0].mxu0
        %v1071 = vadd.f32 0.0, %v1070
        %v1072 = vpop.f32.mrb[0].mxu0
        %v1073 = vadd.f32 0.0, %v1072
        %1074 = vmatprep.mubr.bf16.mxu0 %v683
        %1075 = vmatmul.mubr.bf16.gmra.mrb[0].mxu0 %v682
        %v1076 = vpop.f32.mrb[0].mxu0
        %v1077 = vadd.f32 0.0, %v1076
        %v1078 = vpop.f32.mrb[0].mxu0
        %v1079 = vadd.f32 0.0, %v1078
        %v1080 = vpop.f32.mrb[0].mxu0
        %v1081 = vadd.f32 0.0, %v1080
        %v1082 = vpop.f32.mrb[0].mxu0
        %v1083 = vadd.f32 0.0, %v1082
        %1084 = vmatprep.mubr.bf16.mxu0 %v685
        %1085 = vmatmul.mubr.bf16.gmra.mrb[0].mxu0 %v684
        %v1086 = vpop.f32.mrb[0].mxu0
        %v1087 = vadd.f32 0.0, %v1086
        %v1088 = vpop.f32.mrb[0].mxu0
        %v1089 = vadd.f32 0.0, %v1088
        %v1090 = vpop.f32.mrb[0].mxu0
        %v1091 = vadd.f32 0.0, %v1090
        %v1092 = vpop.f32.mrb[0].mxu0
        %v1093 = vadd.f32 0.0, %v1092
        %1094 = vmatprep.mubr.bf16.mxu0 %v687
        %1095 = vmatmul.mubr.bf16.gmra.mrb[0].mxu0 %v686
        %v1096 = vpop.f32.mrb[0].mxu0
        %v1097 = vadd.f32 0.0, %v1096
        %v1098 = vpop.f32.mrb[0].mxu0
        %v1099 = vadd.f32 0.0, %v1098
        %v1100 = vpop.f32.mrb[0].mxu0
        %v1101 = vadd.f32 0.0, %v1100
        %v1102 = vpop.f32.mrb[0].mxu0
        %v1103 = vadd.f32 0.0, %v1102
        %1104 = vmatprep.mubr.bf16.mxu0 %v689
        %1105 = vmatmul.mubr.bf16.gmra.mrb[0].mxu0 %v688
        %v1106 = vpop.f32.mrb[0].mxu0
        %v1107 = vadd.f32 0.0, %v1106
        %v1108 = vpop.f32.mrb[0].mxu0
        %v1109 = vadd.f32 0.0, %v1108
        %v1110 = vpop.f32.mrb[0].mxu0
        %v1111 = vadd.f32 0.0, %v1110
        %v1112 = vpop.f32.mrb[0].mxu0
        %v1113 = vadd.f32 0.0, %v1112
        %1114 = vmatprep.mubr.bf16.mxu0 %v691
        %1115 = vmatmul.mubr.bf16.gmra.mrb[0].mxu0 %v690
        %v1116 = vpop.f32.mrb[0].mxu0
        %v1117 = vadd.f32 0.0, %v1116
        %v1118 = vpop.f32.mrb[0].mxu0
        %v1119 = vadd.f32 0.0, %v1118
        %v1120 = vpop.f32.mrb[0].mxu0
        %v1121 = vadd.f32 0.0, %v1120
        %v1122 = vpop.f32.mrb[0].mxu0
        %v1123 = vadd.f32 0.0, %v1122
        %1124 = vmatprep.mubr.bf16.mxu0 %v693
        %1125 = vmatmul.mubr.bf16.gmra.mrb[0].mxu0 %v692
        %v1126 = vpop.f32.mrb[0].mxu0
        %v1127 = vadd.f32 0.0, %v1126
        %v1128 = vpop.f32.mrb[0].mxu0
        %v1129 = vadd.f32 0.0, %v1128
        %v1130 = vpop.f32.mrb[0].mxu0
        %v1131 = vadd.f32 0.0, %v1130
        %v1132 = vpop.f32.mrb[0].mxu0
        %v1133 = vadd.f32 0.0, %v1132
        %1134 = vmatprep.mubr.bf16.mxu0 %v695
        %1135 = vmatmul.mubr.bf16.gmra.mrb[0].mxu0 %v694
        %v1136 = vpop.f32.mrb[0].mxu0
        %v1137 = vadd.f32 0.0, %v1136
        %v1138 = vpop.f32.mrb[0].mxu0
        %v1139 = vadd.f32 0.0, %v1138
        %v1140 = vpop.f32.mrb[0].mxu0
        %v1141 = vadd.f32 0.0, %v1140
        %v1142 = vpop.f32.mrb[0].mxu0
        %v1143 = vadd.f32 0.0, %v1142
        %1144 = vmatprep.mubr.bf16.mxu0 %v697
        %1145 = vmatmul.mubr.bf16.gmra.mrb[0].mxu0 %v696
        %v1146 = vpop.f32.mrb[0].mxu0
        %v1147 = vadd.f32 0.0, %v1146
        %v1148 = vpop.f32.mrb[0].mxu0
        %v1149 = vadd.f32 0.0, %v1148
        %v1150 = vpop.f32.mrb[0].mxu0
        %v1151 = vadd.f32 0.0, %v1150
        %v1152 = vpop.f32.mrb[0].mxu0
        %v1153 = vadd.f32 0.0, %v1152
        %1154 = vmatprep.mubr.bf16.mxu0 %v699
        %1155 = vmatmul.mubr.bf16.gmra.mrb[0].mxu0 %v698
        %v1156 = vpop.f32.mrb[0].mxu0
        %v1157 = vadd.f32 0.0, %v1156
        %v1158 = vpop.f32.mrb[0].mxu0
        %v1159 = vadd.f32 0.0, %v1158
        %v1160 = vpop.f32.mrb[0].mxu0
        %v1161 = vadd.f32 0.0, %v1160
        %v1162 = vpop.f32.mrb[0].mxu0
        %v1163 = vadd.f32 0.0, %v1162
        %1164 = vmatprep.mubr.bf16.mxu0 %v701
        %1165 = vmatmul.mubr.bf16.gmra.mrb[0].mxu0 %v700
        %v1166 = vpop.f32.mrb[0].mxu0
        %v1167 = vadd.f32 0.0, %v1166
        %v1168 = vpop.f32.mrb[0].mxu0
        %v1169 = vadd.f32 0.0, %v1168
        %v1170 = vpop.f32.mrb[0].mxu0
        %v1171 = vadd.f32 0.0, %v1170
        %v1172 = vpop.f32.mrb[0].mxu0
        %v1173 = vadd.f32 0.0, %v1172
        %1174 = vmatprep.mubr.bf16.mxu0 %v703
        %1175 = vmatmul.mubr.bf16.gmra.mrb[0].mxu0 %v702
        %v1176 = vpop.f32.mrb[0].mxu0
        %v1177 = vadd.f32 0.0, %v1176
        %v1178 = vpop.f32.mrb[0].mxu0
        %v1179 = vadd.f32 0.0, %v1178
        %v1180 = vpop.f32.mrb[0].mxu0
        %v1181 = vadd.f32 0.0, %v1180
        %v1182 = vpop.f32.mrb[0].mxu0
        %v1183 = vadd.f32 0.0, %v1182
        %1184 = vmatprep.mubr.bf16.mxu0 %v705
        %1185 = vmatmul.mubr.bf16.gmra.mrb[0].mxu0 %v704
        %v1186 = vpop.f32.mrb[0].mxu0
        %v1187 = vadd.f32 0.0, %v1186
        %v1188 = vpop.f32.mrb[0].mxu0
        %v1189 = vadd.f32 0.0, %v1188
        %v1190 = vpop.f32.mrb[0].mxu0
        %v1191 = vadd.f32 0.0, %v1190
        %v1192 = vpop.f32.mrb[0].mxu0
        %v1193 = vadd.f32 0.0, %v1192
        %1194 = vmatprep.mubr.bf16.mxu0 %v707
        %1195 = vmatmul.mubr.bf16.gmra.mrb[0].mxu0 %v706
        %v1196 = vpop.f32.mrb[0].mxu0
        %v1197 = vadd.f32 0.0, %v1196
        %v1198 = vpop.f32.mrb[0].mxu0
        %v1199 = vadd.f32 0.0, %v1198
        %v1200 = vpop.f32.mrb[0].mxu0
        %v1201 = vadd.f32 0.0, %v1200
        %v1202 = vpop.f32.mrb[0].mxu0
        %v1203 = vadd.f32 0.0, %v1202
        %1204 = vmatprep.mubr.bf16.mxu0 %v709
        %1205 = vmatmul.mubr.bf16.gmra.mrb[0].mxu0 %v708
        %v1206 = vpop.f32.mrb[0].mxu0
        %v1207 = vadd.f32 0.0, %v1206
        %v1208 = vpop.f32.mrb[0].mxu0
        %v1209 = vadd.f32 0.0, %v1208
        %v1210 = vpop.f32.mrb[0].mxu0
        %v1211 = vadd.f32 0.0, %v1210
        %v1212 = vpop.f32.mrb[0].mxu0
        %v1213 = vadd.f32 0.0, %v1212
        %1214 = vmatprep.mubr.bf16.mxu0 %v711
        %1215 = vmatmul.mubr.bf16.gmra.mrb[0].mxu0 %v710
        %v1216 = vpop.f32.mrb[0].mxu0
        %v1217 = vadd.f32 0.0, %v1216
        %v1218 = vpop.f32.mrb[0].mxu0
        %v1219 = vadd.f32 0.0, %v1218
        %v1220 = vpop.f32.mrb[0].mxu0
        %v1221 = vadd.f32 0.0, %v1220
        %v1222 = vpop.f32.mrb[0].mxu0
        %v1223 = vadd.f32 0.0, %v1222
        %1224 = vmatprep.mubr.bf16.mxu0 %v713
        %1225 = vmatmul.mubr.bf16.gmra.mrb[0].mxu0 %v712
        %v1226 = vpop.f32.mrb[0].mxu0
        %v1227 = vadd.f32 0.0, %v1226
        %v1228 = vpop.f32.mrb[0].mxu0
        %v1229 = vadd.f32 0.0, %v1228
        %v1230 = vpop.f32.mrb[0].mxu0
        %v1231 = vadd.f32 0.0, %v1230
        %v1232 = vpop.f32.mrb[0].mxu0
        %v1233 = vadd.f32 0.0, %v1232
        %1234 = vmatprep.mubr.bf16.mxu0 %v715
        %1235 = vmatmul.mubr.bf16.gmra.mrb[0].mxu0 %v714
        %v1236 = vpop.f32.mrb[0].mxu0
        %v1237 = vadd.f32 0.0, %v1236
        %v1238 = vpop.f32.mrb[0].mxu0
        %v1239 = vadd.f32 0.0, %v1238
        %v1240 = vpop.f32.mrb[0].mxu0
        %v1241 = vadd.f32 0.0, %v1240
        %v1242 = vpop.f32.mrb[0].mxu0
        %v1243 = vadd.f32 0.0, %v1242
        %1244 = vmatprep.mubr.bf16.mxu0 %v717
        %1245 = vmatmul.mubr.bf16.gmra.mrb[0].mxu0 %v716
        %v1246 = vpop.f32.mrb[0].mxu0
        %v1247 = vadd.f32 0.0, %v1246
        %v1248 = vpop.f32.mrb[0].mxu0
        %v1249 = vadd.f32 0.0, %v1248
        %v1250 = vpop.f32.mrb[0].mxu0
        %v1251 = vadd.f32 0.0, %v1250
        %v1252 = vpop.f32.mrb[0].mxu0
        %v1253 = vadd.f32 0.0, %v1252
        %1254 = vmatprep.mubr.bf16.mxu0 %v719
        %1255 = vmatmul.mubr.bf16.gmra.mrb[0].mxu0 %v718
        %v1256 = vpop.f32.mrb[0].mxu0
        %v1257 = vadd.f32 0.0, %v1256
        %v1258 = vpop.f32.mrb[0].mxu0
        %v1259 = vadd.f32 0.0, %v1258
        %v1260 = vpop.f32.mrb[0].mxu0
        %v1261 = vadd.f32 0.0, %v1260
        %v1262 = vpop.f32.mrb[0].mxu0
        %v1263 = vadd.f32 0.0, %v1262
        %1264 = vmatprep.mubr.bf16.mxu0 %v721
        %1265 = vmatmul.mubr.bf16.gmra.mrb[0].mxu0 %v720
        %v1266 = vpop.f32.mrb[0].mxu0
        %v1267 = vadd.f32 0.0, %v1266
        %v1268 = vpop.f32.mrb[0].mxu0
        %v1269 = vadd.f32 0.0, %v1268
        %v1270 = vpop.f32.mrb[0].mxu0
        %v1271 = vadd.f32 0.0, %v1270
        %v1272 = vpop.f32.mrb[0].mxu0
        %v1273 = vadd.f32 0.0, %v1272
        %1274 = vmatprep.mubr.bf16.mxu0 %v723
        %1275 = vmatmul.mubr.bf16.gmra.mrb[0].mxu0 %v722
        %v1276 = vpop.f32.mrb[0].mxu0
        %v1277 = vadd.f32 0.0, %v1276
        %v1278 = vpop.f32.mrb[0].mxu0
        %v1279 = vadd.f32 0.0, %v1278
        %v1280 = vpop.f32.mrb[0].mxu0
        %v1281 = vadd.f32 0.0, %v1280
        %v1282 = vpop.f32.mrb[0].mxu0
        %v1283 = vadd.f32 0.0, %v1282
        %1284 = vmatprep.mubr.bf16.mxu0 %v725
        %1285 = vmatmul.mubr.bf16.gmra.mrb[0].mxu0 %v724
        %v1286 = vpop.f32.mrb[0].mxu0
        %v1287 = vadd.f32 0.0, %v1286
        %v1288 = vpop.f32.mrb[0].mxu0
        %v1289 = vadd.f32 0.0, %v1288
        %v1290 = vpop.f32.mrb[0].mxu0
        %v1291 = vadd.f32 0.0, %v1290
        %v1292 = vpop.f32.mrb[0].mxu0
        %v1293 = vadd.f32 0.0, %v1292
        %1294 = vmatprep.mubr.bf16.mxu0 %v727
        %1295 = vmatmul.mubr.bf16.gmra.mrb[0].mxu0 %v726
        %v1296 = vpop.f32.mrb[0].mxu0
        %v1297 = vadd.f32 0.0, %v1296
        %v1298 = vpop.f32.mrb[0].mxu0
        %v1299 = vadd.f32 0.0, %v1298
        %v1300 = vpop.f32.mrb[0].mxu0
        %v1301 = vadd.f32 0.0, %v1300
        %v1302 = vpop.f32.mrb[0].mxu0
        %v1303 = vadd.f32 0.0, %v1302
        %1304 = vmatprep.mubr.bf16.mxu0 %v729
        %1305 = vmatmul.mubr.bf16.gmra.mrb[0].mxu0 %v728
        %v1306 = vpop.f32.mrb[0].mxu0
        %v1307 = vadd.f32 0.0, %v1306
        %v1308 = vpop.f32.mrb[0].mxu0
        %v1309 = vadd.f32 0.0, %v1308
        %v1310 = vpop.f32.mrb[0].mxu0
        %v1311 = vadd.f32 0.0, %v1310
        %v1312 = vpop.f32.mrb[0].mxu0
        %v1313 = vadd.f32 0.0, %v1312
        %1314 = vmatprep.mubr.bf16.mxu0 %v731
        %1315 = vmatmul.mubr.bf16.gmra.mrb[0].mxu0 %v730
        %v1316 = vpop.f32.mrb[0].mxu0
        %v1317 = vadd.f32 0.0, %v1316
        %v1318 = vpop.f32.mrb[0].mxu0
        %v1319 = vadd.f32 0.0, %v1318
        %v1320 = vpop.f32.mrb[0].mxu0
        %v1321 = vadd.f32 0.0, %v1320
        %v1322 = vpop.f32.mrb[0].mxu0
        %v1323 = vadd.f32 0.0, %v1322
        %1324 = vmatprep.mubr.bf16.mxu0 %v733
        %1325 = vmatmul.mubr.bf16.gmra.mrb[0].mxu0 %v732
        %v1326 = vpop.f32.mrb[0].mxu0
        %v1327 = vadd.f32 0.0, %v1326
        %v1328 = vpop.f32.mrb[0].mxu0
        %v1329 = vadd.f32 0.0, %v1328
        %v1330 = vpop.f32.mrb[0].mxu0
        %v1331 = vadd.f32 0.0, %v1330
        %v1332 = vpop.f32.mrb[0].mxu0
        %v1333 = vadd.f32 0.0, %v1332
        %1334 = vmatprep.mubr.bf16.mxu0 %v735
        %1335 = vmatmul.mubr.bf16.gmra.mrb[0].mxu0 %v734
        %v1336 = vpop.f32.mrb[0].mxu0
        %v1337 = vadd.f32 0.0, %v1336
        %v1338 = vpop.f32.mrb[0].mxu0
        %v1339 = vadd.f32 0.0, %v1338
        %v1340 = vpop.f32.mrb[0].mxu0
        %v1341 = vadd.f32 0.0, %v1340
        %v1342 = vpop.f32.mrb[0].mxu0
        %v1343 = vadd.f32 0.0, %v1342
        %1344 = vmatprep.mubr.bf16.mxu0 %v737
        %1345 = vmatmul.mubr.bf16.gmra.mrb[0].mxu0 %v736
        %v1346 = vpop.f32.mrb[0].mxu0
        %v1347 = vadd.f32 0.0, %v1346
        %v1348 = vpop.f32.mrb[0].mxu0
        %v1349 = vadd.f32 0.0, %v1348
        %v1350 = vpop.f32.mrb[0].mxu0
        %v1351 = vadd.f32 0.0, %v1350
        %v1352 = vpop.f32.mrb[0].mxu0
        %v1353 = vadd.f32 0.0, %v1352
        %1354 = vmatprep.mubr.bf16.mxu0 %v739
        %1355 = vmatmul.mubr.bf16.gmra.mrb[0].mxu0 %v738
        %v1356 = vpop.f32.mrb[0].mxu0
        %v1357 = vadd.f32 0.0, %v1356
        %v1358 = vpop.f32.mrb[0].mxu0
        %v1359 = vadd.f32 0.0, %v1358
        %v1360 = vpop.f32.mrb[0].mxu0
        %v1361 = vadd.f32 0.0, %v1360
        %v1362 = vpop.f32.mrb[0].mxu0
        %v1363 = vadd.f32 0.0, %v1362
        %1364 = vmatprep.mubr.bf16.mxu0 %v741
        %1365 = vmatmul.mubr.bf16.gmra.mrb[0].mxu0 %v740
        %v1366 = vpop.f32.mrb[0].mxu0
        %v1367 = vadd.f32 0.0, %v1366
        %v1368 = vpop.f32.mrb[0].mxu0
        %v1369 = vadd.f32 0.0, %v1368
        %v1370 = vpop.f32.mrb[0].mxu0
        %v1371 = vadd.f32 0.0, %v1370
        %v1372 = vpop.f32.mrb[0].mxu0
        %v1373 = vadd.f32 0.0, %v1372
        %1374 = vmatprep.mubr.bf16.mxu0 %v743
        %1375 = vmatmul.mubr.bf16.gmra.mrb[0].mxu0 %v742
        %v1376 = vpop.f32.mrb[0].mxu0
        %v1377 = vadd.f32 0.0, %v1376
        %v1378 = vpop.f32.mrb[0].mxu0
        %v1379 = vadd.f32 0.0, %v1378
        %v1380 = vpop.f32.mrb[0].mxu0
        %v1381 = vadd.f32 0.0, %v1380
        %v1382 = vpop.f32.mrb[0].mxu0
        %v1383 = vadd.f32 0.0, %v1382
        %1384 = vmatprep.mubr.bf16.mxu0 %v745
        %1385 = vmatmul.mubr.bf16.gmra.mrb[0].mxu0 %v744
        %v1386 = vpop.f32.mrb[0].mxu0
        %v1387 = vadd.f32 0.0, %v1386
        %v1388 = vpop.f32.mrb[0].mxu0
        %v1389 = vadd.f32 0.0, %v1388
        %v1390 = vpop.f32.mrb[0].mxu0
        %v1391 = vadd.f32 0.0, %v1390
        %v1392 = vpop.f32.mrb[0].mxu0
        %v1393 = vadd.f32 0.0, %v1392
        %1394 = vmatprep.mubr.bf16.mxu0 %v747
        %1395 = vmatmul.mubr.bf16.gmra.mrb[0].mxu0 %v746
        %v1396 = vpop.f32.mrb[0].mxu0
        %v1397 = vadd.f32 0.0, %v1396
        %v1398 = vpop.f32.mrb[0].mxu0
        %v1399 = vadd.f32 0.0, %v1398
        %v1400 = vpop.f32.mrb[0].mxu0
        %v1401 = vadd.f32 0.0, %v1400
        %v1402 = vpop.f32.mrb[0].mxu0
        %v1403 = vadd.f32 0.0, %v1402
        %1404 = vmatprep.mubr.bf16.mxu0 %v749
        %1405 = vmatmul.mubr.bf16.gmra.mrb[0].mxu0 %v748
        %v1406 = vpop.f32.mrb[0].mxu0
        %v1407 = vadd.f32 0.0, %v1406
        %v1408 = vpop.f32.mrb[0].mxu0
        %v1409 = vadd.f32 0.0, %v1408
        %v1410 = vpop.f32.mrb[0].mxu0
        %v1411 = vadd.f32 0.0, %v1410
        %v1412 = vpop.f32.mrb[0].mxu0
        %v1413 = vadd.f32 0.0, %v1412
        %1414 = vmatprep.mubr.bf16.mxu0 %v751
        %1415 = vmatmul.mubr.bf16.gmra.mrb[0].mxu0 %v750
        %v1416 = vpop.f32.mrb[0].mxu0
        %v1417 = vadd.f32 0.0, %v1416
        %v1418 = vpop.f32.mrb[0].mxu0
        %v1419 = vadd.f32 0.0, %v1418
        %v1420 = vpop.f32.mrb[0].mxu0
        %v1421 = vadd.f32 0.0, %v1420
        %v1422 = vpop.f32.mrb[0].mxu0
        %v1423 = vadd.f32 0.0, %v1422
        %1424 = vmatprep.mubr.bf16.mxu0 %v753
        %1425 = vmatmul.mubr.bf16.gmra.mrb[0].mxu0 %v752
        %v1426 = vpop.f32.mrb[0].mxu0
        %v1427 = vadd.f32 0.0, %v1426
        %v1428 = vpop.f32.mrb[0].mxu0
        %v1429 = vadd.f32 0.0, %v1428
        %v1430 = vpop.f32.mrb[0].mxu0
        %v1431 = vadd.f32 0.0, %v1430
        %v1432 = vpop.f32.mrb[0].mxu0
        %v1433 = vadd.f32 0.0, %v1432
        %1434 = vmatprep.mubr.bf16.mxu0 %v755
        %1435 = vmatmul.mubr.bf16.gmra.mrb[0].mxu0 %v754
        %v1436 = vpop.f32.mrb[0].mxu0
        %v1437 = vadd.f32 0.0, %v1436
        %v1438 = vpop.f32.mrb[0].mxu0
        %v1439 = vadd.f32 0.0, %v1438
        %v1440 = vpop.f32.mrb[0].mxu0
        %v1441 = vadd.f32 0.0, %v1440
        %v1442 = vpop.f32.mrb[0].mxu0
        %v1443 = vadd.f32 0.0, %v1442
        %1444 = vmatprep.mubr.bf16.mxu0 %v757
        %1445 = vmatmul.mubr.bf16.gmra.mrb[0].mxu0 %v756
        %v1446 = vpop.f32.mrb[0].mxu0
        %v1447 = vadd.f32 0.0, %v1446
        %v1448 = vpop.f32.mrb[0].mxu0
        %v1449 = vadd.f32 0.0, %v1448
        %v1450 = vpop.f32.mrb[0].mxu0
        %v1451 = vadd.f32 0.0, %v1450
        %v1452 = vpop.f32.mrb[0].mxu0
        %v1453 = vadd.f32 0.0, %v1452
        %1454 = vmatprep.mubr.bf16.mxu0 %v759
        %1455 = vmatmul.mubr.bf16.gmra.mrb[0].mxu0 %v758
        %v1456 = vpop.f32.mrb[0].mxu0
        %v1457 = vadd.f32 0.0, %v1456
        %v1458 = vpop.f32.mrb[0].mxu0
        %v1459 = vadd.f32 0.0, %v1458
        %v1460 = vpop.f32.mrb[0].mxu0
        %v1461 = vadd.f32 0.0, %v1460
        %v1462 = vpop.f32.mrb[0].mxu0
        %v1463 = vadd.f32 0.0, %v1462
        %1464 = vmatprep.mubr.bf16.mxu0 %v761
        %1465 = vmatmul.mubr.bf16.gmra.mrb[0].mxu0 %v760
        %v1466 = vpop.f32.mrb[0].mxu0
        %v1467 = vadd.f32 0.0, %v1466
        %v1468 = vpop.f32.mrb[0].mxu0
        %v1469 = vadd.f32 0.0, %v1468
        %v1470 = vpop.f32.mrb[0].mxu0
        %v1471 = vadd.f32 0.0, %v1470
        %v1472 = vpop.f32.mrb[0].mxu0
        %v1473 = vadd.f32 0.0, %v1472
        %1474 = vmatprep.mubr.bf16.mxu0 %v763
        %1475 = vmatmul.mubr.bf16.gmra.mrb[0].mxu0 %v762
        %v1476 = vpop.f32.mrb[0].mxu0
        %v1477 = vadd.f32 0.0, %v1476
        %v1478 = vpop.f32.mrb[0].mxu0
        %v1479 = vadd.f32 0.0, %v1478
        %v1480 = vpop.f32.mrb[0].mxu0
        %v1481 = vadd.f32 0.0, %v1480
        %v1482 = vpop.f32.mrb[0].mxu0
        %v1483 = vadd.f32 0.0, %v1482
        %1484 = vmatprep.mubr.bf16.mxu0 %v765
        %1485 = vmatmul.mubr.bf16.gmra.mrb[0].mxu0 %v764
        %v1486 = vpop.f32.mrb[0].mxu0
        %v1487 = vadd.f32 0.0, %v1486
        %v1488 = vpop.f32.mrb[0].mxu0
        %v1489 = vadd.f32 0.0, %v1488
        %v1490 = vpop.f32.mrb[0].mxu0
        %v1491 = vadd.f32 0.0, %v1490
        %v1492 = vpop.f32.mrb[0].mxu0
        %v1493 = vadd.f32 0.0, %v1492
        %1494 = vmatprep.mubr.bf16.mxu0 %v767
        %1495 = vmatmul.mubr.bf16.gmra.mrb[0].mxu0 %v766
        %v1496 = vpop.f32.mrb[0].mxu0
        %v1497 = vadd.f32 0.0, %v1496
        %v1498 = vpop.f32.mrb[0].mxu0
        %v1499 = vadd.f32 0.0, %v1498
        %v1500 = vpop.f32.mrb[0].mxu0
        %v1501 = vadd.f32 0.0, %v1500
        %v1502 = vpop.f32.mrb[0].mxu0
        %v1503 = vadd.f32 0.0, %v1502
        %1504 = vmatprep.mubr.bf16.mxu0 %v769
        %1505 = vmatmul.mubr.bf16.gmra.mrb[0].mxu0 %v768
        %v1506 = vpop.f32.mrb[0].mxu0
        %v1507 = vadd.f32 0.0, %v1506
        %v1508 = vpop.f32.mrb[0].mxu0
        %v1509 = vadd.f32 0.0, %v1508
        %v1510 = vpop.f32.mrb[0].mxu0
        %v1511 = vadd.f32 0.0, %v1510
        %v1512 = vpop.f32.mrb[0].mxu0
        %v1513 = vadd.f32 0.0, %v1512
        %1514 = vmatprep.mubr.bf16.mxu0 %v771
        %1515 = vmatmul.mubr.bf16.gmra.mrb[0].mxu0 %v770
        %v1516 = vpop.f32.mrb[0].mxu0
        %v1517 = vadd.f32 0.0, %v1516
        %v1518 = vpop.f32.mrb[0].mxu0
        %v1519 = vadd.f32 0.0, %v1518
        %v1520 = vpop.f32.mrb[0].mxu0
        %v1521 = vadd.f32 0.0, %v1520
        %v1522 = vpop.f32.mrb[0].mxu0
        %v1523 = vadd.f32 0.0, %v1522
        %1524 = vmatprep.mubr.bf16.mxu0 %v773
        %1525 = vmatmul.mubr.bf16.gmra.mrb[0].mxu0 %v772
        %v1526 = vpop.f32.mrb[0].mxu0
        %v1527 = vadd.f32 0.0, %v1526
        %v1528 = vpop.f32.mrb[0].mxu0
        %v1529 = vadd.f32 0.0, %v1528
        %v1530 = vpop.f32.mrb[0].mxu0
        %v1531 = vadd.f32 0.0, %v1530
        %v1532 = vpop.f32.mrb[0].mxu0
        %v1533 = vadd.f32 0.0, %v1532
        %1534 = vmatprep.mubr.bf16.mxu0 %v775
        %1535 = vmatmul.mubr.bf16.gmra.mrb[0].mxu0 %v774
        %v1536 = vpop.f32.mrb[0].mxu0
        %v1537 = vadd.f32 0.0, %v1536
        %v1538 = vpop.f32.mrb[0].mxu0
        %v1539 = vadd.f32 0.0, %v1538
        %v1540 = vpop.f32.mrb[0].mxu0
        %v1541 = vadd.f32 0.0, %v1540
        %v1542 = vpop.f32.mrb[0].mxu0
        %v1543 = vadd.f32 0.0, %v1542
        %1544 = vdwg.mxu0
        %v1545 = vadd.f32 %v1067, %v1069
        %1546 = vadd.xlane.f32.xlu0 %v1545
        %v1547 = vpop.xlane.xlu0 %1546
        %v1548 = vadd.f32 %v1071, %v1073
        %1549 = vadd.xlane.f32.xlu0 %v1548
        %v1550 = vpop.xlane.xlu0 %1549
        %v1551 = vadd.f32 %v1077, %v1079
        %1552 = vadd.xlane.f32.xlu0 %v1551
        %v1553 = vpop.xlane.xlu0 %1552
        %v1554 = vadd.f32 %v1081, %v1083
        %1555 = vadd.xlane.f32.xlu0 %v1554
        %v1556 = vpop.xlane.xlu0 %1555
        %v1557 = vadd.f32 %v1087, %v1089
        %1558 = vadd.xlane.f32.xlu0 %v1557
        %v1559 = vpop.xlane.xlu0 %1558
        %v1560 = vadd.f32 %v1091, %v1093
        %1561 = vadd.xlane.f32.xlu0 %v1560
        %v1562 = vpop.xlane.xlu0 %1561
        %v1563 = vadd.f32 %v1097, %v1099
        %1564 = vadd.xlane.f32.xlu0 %v1563
        %v1565 = vpop.xlane.xlu0 %1564
        %v1566 = vadd.f32 %v1101, %v1103
        %1567 = vadd.xlane.f32.xlu0 %v1566
        %v1568 = vpop.xlane.xlu0 %1567
        %v1569 = vadd.f32 %v1107, %v1109
        %1570 = vadd.xlane.f32.xlu0 %v1569
        %v1571 = vpop.xlane.xlu0 %1570
        %v1572 = vadd.f32 %v1111, %v1113
        %1573 = vadd.xlane.f32.xlu0 %v1572
        %v1574 = vpop.xlane.xlu0 %1573
        %v1575 = vadd.f32 %v1117, %v1119
        %1576 = vadd.xlane.f32.xlu0 %v1575
        %v1577 = vpop.xlane.xlu0 %1576
        %v1578 = vadd.f32 %v1121, %v1123
        %1579 = vadd.xlane.f32.xlu0 %v1578
        %v1580 = vpop.xlane.xlu0 %1579
        %v1581 = vadd.f32 %v1127, %v1129
        %1582 = vadd.xlane.f32.xlu0 %v1581
        %v1583 = vpop.xlane.xlu0 %1582
        %v1584 = vadd.f32 %v1131, %v1133
        %1585 = vadd.xlane.f32.xlu0 %v1584
        %v1586 = vpop.xlane.xlu0 %1585
        %v1587 = vadd.f32 %v1137, %v1139
        %1588 = vadd.xlane.f32.xlu0 %v1587
        %v1589 = vpop.xlane.xlu0 %1588
        %v1590 = vadd.f32 %v1141, %v1143
        %1591 = vadd.xlane.f32.xlu0 %v1590
        %v1592 = vpop.xlane.xlu0 %1591
        %v1593 = vadd.f32 %v1147, %v1149
        %1594 = vadd.xlane.f32.xlu0 %v1593
        %v1595 = vpop.xlane.xlu0 %1594
        %v1596 = vadd.f32 %v1151, %v1153
        %1597 = vadd.xlane.f32.xlu0 %v1596
        %v1598 = vpop.xlane.xlu0 %1597
        %v1599 = vadd.f32 %v1157, %v1159
        %1600 = vadd.xlane.f32.xlu0 %v1599
        %v1601 = vpop.xlane.xlu0 %1600
        %v1602 = vadd.f32 %v1161, %v1163
        %1603 = vadd.xlane.f32.xlu0 %v1602
        %v1604 = vpop.xlane.xlu0 %1603
        %v1605 = vadd.f32 %v1167, %v1169
        %1606 = vadd.xlane.f32.xlu0 %v1605
        %v1607 = vpop.xlane.xlu0 %1606
        %v1608 = vadd.f32 %v1171, %v1173
        %1609 = vadd.xlane.f32.xlu0 %v1608
        %v1610 = vpop.xlane.xlu0 %1609
        %v1611 = vadd.f32 %v1177, %v1179
        %1612 = vadd.xlane.f32.xlu0 %v1611
        %v1613 = vpop.xlane.xlu0 %1612
        %v1614 = vadd.f32 %v1181, %v1183
        %1615 = vadd.xlane.f32.xlu0 %v1614
        %v1616 = vpop.xlane.xlu0 %1615
        %v1617 = vadd.f32 %v1187, %v1189
        %1618 = vadd.xlane.f32.xlu0 %v1617
        %v1619 = vpop.xlane.xlu0 %1618
        %v1620 = vadd.f32 %v1191, %v1193
        %1621 = vadd.xlane.f32.xlu0 %v1620
        %v1622 = vpop.xlane.xlu0 %1621
        %v1623 = vadd.f32 %v1197, %v1199
        %1624 = vadd.xlane.f32.xlu0 %v1623
        %v1625 = vpop.xlane.xlu0 %1624
        %v1626 = vadd.f32 %v1201, %v1203
        %1627 = vadd.xlane.f32.xlu0 %v1626
        %v1628 = vpop.xlane.xlu0 %1627
        %v1629 = vadd.f32 %v1207, %v1209
        %1630 = vadd.xlane.f32.xlu0 %v1629
        %v1631 = vpop.xlane.xlu0 %1630
        %v1632 = vadd.f32 %v1211, %v1213
        %1633 = vadd.xlane.f32.xlu0 %v1632
        %v1634 = vpop.xlane.xlu0 %1633
        %v1635 = vadd.f32 %v1217, %v1219
        %1636 = vadd.xlane.f32.xlu0 %v1635
        %v1637 = vpop.xlane.xlu0 %1636
        %v1638 = vadd.f32 %v1221, %v1223
        %1639 = vadd.xlane.f32.xlu0 %v1638
        %v1640 = vpop.xlane.xlu0 %1639
        %v1641 = vadd.f32 %v1227, %v1229
        %1642 = vadd.xlane.f32.xlu0 %v1641
        %v1643 = vpop.xlane.xlu0 %1642
        %v1644 = vadd.f32 %v1231, %v1233
        %1645 = vadd.xlane.f32.xlu0 %v1644
        %v1646 = vpop.xlane.xlu0 %1645
        %v1647 = vadd.f32 %v1237, %v1239
        %1648 = vadd.xlane.f32.xlu0 %v1647
        %v1649 = vpop.xlane.xlu0 %1648
        %v1650 = vadd.f32 %v1241, %v1243
        %1651 = vadd.xlane.f32.xlu0 %v1650
        %v1652 = vpop.xlane.xlu0 %1651
        %v1653 = vadd.f32 %v1247, %v1249
        %1654 = vadd.xlane.f32.xlu0 %v1653
        %v1655 = vpop.xlane.xlu0 %1654
        %v1656 = vadd.f32 %v1251, %v1253
        %1657 = vadd.xlane.f32.xlu0 %v1656
        %v1658 = vpop.xlane.xlu0 %1657
        %v1659 = vadd.f32 %v1257, %v1259
        %1660 = vadd.xlane.f32.xlu0 %v1659
        %v1661 = vpop.xlane.xlu0 %1660
        %v1662 = vadd.f32 %v1261, %v1263
        %1663 = vadd.xlane.f32.xlu0 %v1662
        %v1664 = vpop.xlane.xlu0 %1663
        %v1665 = vadd.f32 %v1267, %v1269
        %1666 = vadd.xlane.f32.xlu0 %v1665
        %v1667 = vpop.xlane.xlu0 %1666
        %v1668 = vadd.f32 %v1271, %v1273
        %1669 = vadd.xlane.f32.xlu0 %v1668
        %v1670 = vpop.xlane.xlu0 %1669
        %v1671 = vadd.f32 %v1277, %v1279
        %1672 = vadd.xlane.f32.xlu0 %v1671
        %v1673 = vpop.xlane.xlu0 %1672
        %v1674 = vadd.f32 %v1281, %v1283
        %1675 = vadd.xlane.f32.xlu0 %v1674
        %v1676 = vpop.xlane.xlu0 %1675
        %v1677 = vadd.f32 %v1287, %v1289
        %1678 = vadd.xlane.f32.xlu0 %v1677
        %v1679 = vpop.xlane.xlu0 %1678
        %v1680 = vadd.f32 %v1291, %v1293
        %1681 = vadd.xlane.f32.xlu0 %v1680
        %v1682 = vpop.xlane.xlu0 %1681
        %v1683 = vadd.f32 %v1297, %v1299
        %1684 = vadd.xlane.f32.xlu0 %v1683
        %v1685 = vpop.xlane.xlu0 %1684
        %v1686 = vadd.f32 %v1301, %v1303
        %1687 = vadd.xlane.f32.xlu0 %v1686
        %v1688 = vpop.xlane.xlu0 %1687
        %v1689 = vadd.f32 %v1307, %v1309
        %1690 = vadd.xlane.f32.xlu0 %v1689
        %v1691 = vpop.xlane.xlu0 %1690
        %v1692 = vadd.f32 %v1311, %v1313
        %1693 = vadd.xlane.f32.xlu0 %v1692
        %v1694 = vpop.xlane.xlu0 %1693
        %v1695 = vadd.f32 %v1317, %v1319
        %1696 = vadd.xlane.f32.xlu0 %v1695
        %v1697 = vpop.xlane.xlu0 %1696
        %v1698 = vadd.f32 %v1321, %v1323
        %1699 = vadd.xlane.f32.xlu0 %v1698
        %v1700 = vpop.xlane.xlu0 %1699
        %v1701 = vadd.f32 %v1327, %v1329
        %1702 = vadd.xlane.f32.xlu0 %v1701
        %v1703 = vpop.xlane.xlu0 %1702
        %v1704 = vadd.f32 %v1331, %v1333
        %1705 = vadd.xlane.f32.xlu0 %v1704
        %v1706 = vpop.xlane.xlu0 %1705
        %v1707 = vadd.f32 %v1337, %v1339
        %1708 = vadd.xlane.f32.xlu0 %v1707
        %v1709 = vpop.xlane.xlu0 %1708
        %v1710 = vadd.f32 %v1341, %v1343
        %1711 = vadd.xlane.f32.xlu0 %v1710
        %v1712 = vpop.xlane.xlu0 %1711
        %v1713 = vadd.f32 %v1347, %v1349
        %1714 = vadd.xlane.f32.xlu0 %v1713
        %v1715 = vpop.xlane.xlu0 %1714
        %v1716 = vadd.f32 %v1351, %v1353
        %1717 = vadd.xlane.f32.xlu0 %v1716
        %v1718 = vpop.xlane.xlu0 %1717
        %v1719 = vadd.f32 %v1357, %v1359
        %1720 = vadd.xlane.f32.xlu0 %v1719
        %v1721 = vpop.xlane.xlu0 %1720
        %v1722 = vadd.f32 %v1361, %v1363
        %1723 = vadd.xlane.f32.xlu0 %v1722
        %v1724 = vpop.xlane.xlu0 %1723
        %v1725 = vadd.f32 %v1367, %v1369
        %1726 = vadd.xlane.f32.xlu0 %v1725
        %v1727 = vpop.xlane.xlu0 %1726
        %v1728 = vadd.f32 %v1371, %v1373
        %1729 = vadd.xlane.f32.xlu0 %v1728
        %v1730 = vpop.xlane.xlu0 %1729
        %v1731 = vadd.f32 %v1377, %v1379
        %1732 = vadd.xlane.f32.xlu0 %v1731
        %v1733 = vpop.xlane.xlu0 %1732
        %v1734 = vadd.f32 %v1381, %v1383
        %1735 = vadd.xlane.f32.xlu0 %v1734
        %v1736 = vpop.xlane.xlu0 %1735
        %v1737 = vadd.f32 %v1387, %v1389
        %1738 = vadd.xlane.f32.xlu0 %v1737
        %v1739 = vpop.xlane.xlu0 %1738
        %v1740 = vadd.f32 %v1391, %v1393
        %1741 = vadd.xlane.f32.xlu0 %v1740
        %v1742 = vpop.xlane.xlu0 %1741
        %v1743 = vadd.f32 %v1397, %v1399
        %1744 = vadd.xlane.f32.xlu0 %v1743
        %v1745 = vpop.xlane.xlu0 %1744
        %v1746 = vadd.f32 %v1401, %v1403
        %1747 = vadd.xlane.f32.xlu0 %v1746
        %v1748 = vpop.xlane.xlu0 %1747
        %v1749 = vadd.f32 %v1407, %v1409
        %1750 = vadd.xlane.f32.xlu0 %v1749
        %v1751 = vpop.xlane.xlu0 %1750
        %v1752 = vadd.f32 %v1411, %v1413
        %1753 = vadd.xlane.f32.xlu0 %v1752
        %v1754 = vpop.xlane.xlu0 %1753
        %v1755 = vadd.f32 %v1417, %v1419
        %1756 = vadd.xlane.f32.xlu0 %v1755
        %v1757 = vpop.xlane.xlu0 %1756
        %v1758 = vadd.f32 %v1421, %v1423
        %1759 = vadd.xlane.f32.xlu0 %v1758
        %v1760 = vpop.xlane.xlu0 %1759
        %v1761 = vadd.f32 %v1427, %v1429
        %1762 = vadd.xlane.f32.xlu0 %v1761
        %v1763 = vpop.xlane.xlu0 %1762
        %v1764 = vadd.f32 %v1431, %v1433
        %1765 = vadd.xlane.f32.xlu0 %v1764
        %v1766 = vpop.xlane.xlu0 %1765
        %v1767 = vadd.f32 %v1437, %v1439
        %1768 = vadd.xlane.f32.xlu0 %v1767
        %v1769 = vpop.xlane.xlu0 %1768
        %v1770 = vadd.f32 %v1441, %v1443
        %1771 = vadd.xlane.f32.xlu0 %v1770
        %v1772 = vpop.xlane.xlu0 %1771
        %v1773 = vadd.f32 %v1447, %v1449
        %1774 = vadd.xlane.f32.xlu0 %v1773
        %v1775 = vpop.xlane.xlu0 %1774
        %v1776 = vadd.f32 %v1451, %v1453
        %1777 = vadd.xlane.f32.xlu0 %v1776
        %v1778 = vpop.xlane.xlu0 %1777
        %v1779 = vadd.f32 %v1457, %v1459
        %1780 = vadd.xlane.f32.xlu0 %v1779
        %v1781 = vpop.xlane.xlu0 %1780
        %v1782 = vadd.f32 %v1461, %v1463
        %1783 = vadd.xlane.f32.xlu0 %v1782
        %v1784 = vpop.xlane.xlu0 %1783
        %v1785 = vadd.f32 %v1467, %v1469
        %1786 = vadd.xlane.f32.xlu0 %v1785
        %v1787 = vpop.xlane.xlu0 %1786
        %v1788 = vadd.f32 %v1471, %v1473
        %1789 = vadd.xlane.f32.xlu0 %v1788
        %v1790 = vpop.xlane.xlu0 %1789
        %v1791 = vadd.f32 %v1477, %v1479
        %1792 = vadd.xlane.f32.xlu0 %v1791
        %v1793 = vpop.xlane.xlu0 %1792
        %v1794 = vadd.f32 %v1481, %v1483
        %1795 = vadd.xlane.f32.xlu0 %v1794
        %v1796 = vpop.xlane.xlu0 %1795
        %v1797 = vadd.f32 %v1487, %v1489
        %1798 = vadd.xlane.f32.xlu0 %v1797
        %v1799 = vpop.xlane.xlu0 %1798
        %v1800 = vadd.f32 %v1491, %v1493
        %1801 = vadd.xlane.f32.xlu0 %v1800
        %v1802 = vpop.xlane.xlu0 %1801
        %v1803 = vadd.f32 %v1497, %v1499
        %1804 = vadd.xlane.f32.xlu0 %v1803
        %v1805 = vpop.xlane.xlu0 %1804
        %v1806 = vadd.f32 %v1501, %v1503
        %1807 = vadd.xlane.f32.xlu0 %v1806
        %v1808 = vpop.xlane.xlu0 %1807
        %v1809 = vadd.f32 %v1507, %v1509
        %1810 = vadd.xlane.f32.xlu0 %v1809
        %v1811 = vpop.xlane.xlu0 %1810
        %v1812 = vadd.f32 %v1511, %v1513
        %1813 = vadd.xlane.f32.xlu0 %v1812
        %v1814 = vpop.xlane.xlu0 %1813
        %v1815 = vadd.f32 %v1517, %v1519
        %1816 = vadd.xlane.f32.xlu0 %v1815
        %v1817 = vpop.xlane.xlu0 %1816
        %v1818 = vadd.f32 %v1521, %v1523
        %1819 = vadd.xlane.f32.xlu0 %v1818
        %v1820 = vpop.xlane.xlu0 %1819
        %v1821 = vadd.f32 %v1527, %v1529
        %1822 = vadd.xlane.f32.xlu0 %v1821
        %v1823 = vpop.xlane.xlu0 %1822
        %v1824 = vadd.f32 %v1531, %v1533
        %1825 = vadd.xlane.f32.xlu0 %v1824
        %v1826 = vpop.xlane.xlu0 %1825
        %v1827 = vadd.f32 %v1537, %v1539
        %1828 = vadd.xlane.f32.xlu0 %v1827
        %v1829 = vpop.xlane.xlu0 %1828
        %v1830 = vadd.f32 %v1541, %v1543
        %1831 = vadd.xlane.f32.xlu0 %v1830
        %v1832 = vpop.xlane.xlu0 %1831
        %v1833 = vmul.f32 %v1547, 0.0051020407
        %v1834 = vmul.f32 %v1550, 0.0051020407
        %v1835 = vmul.f32 %v1553, 0.0051020407
        %v1836 = vmul.f32 %v1556, 0.0051020407
        %v1837 = vmul.f32 %v1559, 0.0051020407
        %v1838 = vmul.f32 %v1562, 0.0051020407
        %v1839 = vmul.f32 %v1565, 0.0051020407
        %v1840 = vmul.f32 %v1568, 0.0051020407
        %v1841 = vmul.f32 %v1571, 0.0051020407
        %v1842 = vmul.f32 %v1574, 0.0051020407
        %v1843 = vmul.f32 %v1577, 0.0051020407
        %v1844 = vmul.f32 %v1580, 0.0051020407
        %v1845 = vmul.f32 %v1583, 0.0051020407
        %v1846 = vmul.f32 %v1586, 0.0051020407
        %v1847 = vmul.f32 %v1589, 0.0051020407
        %v1848 = vmul.f32 %v1592, 0.0051020407
        %v1849 = vmul.f32 %v1595, 0.0051020407
        %v1850 = vmul.f32 %v1598, 0.0051020407
        %v1851 = vmul.f32 %v1601, 0.0051020407
        %v1852 = vmul.f32 %v1604, 0.0051020407
        %v1853 = vmul.f32 %v1607, 0.0051020407
        %v1854 = vmul.f32 %v1610, 0.0051020407
        %v1855 = vmul.f32 %v1613, 0.0051020407
        %v1856 = vmul.f32 %v1616, 0.0051020407
        %v1857 = vmul.f32 %v1619, 0.0051020407
        %v1858 = vmul.f32 %v1622, 0.0051020407
        %v1859 = vmul.f32 %v1625, 0.0051020407
        %v1860 = vmul.f32 %v1628, 0.0051020407
        %v1861 = vmul.f32 %v1631, 0.0051020407
        %v1862 = vmul.f32 %v1634, 0.0051020407
        %v1863 = vmul.f32 %v1637, 0.0051020407
        %v1864 = vmul.f32 %v1640, 0.0051020407
        %v1865 = vmul.f32 %v1643, 0.0051020407
        %v1866 = vmul.f32 %v1646, 0.0051020407
        %v1867 = vmul.f32 %v1649, 0.0051020407
        %v1868 = vmul.f32 %v1652, 0.0051020407
        %v1869 = vmul.f32 %v1655, 0.0051020407
        %v1870 = vmul.f32 %v1658, 0.0051020407
        %v1871 = vmul.f32 %v1661, 0.0051020407
        %v1872 = vmul.f32 %v1664, 0.0051020407
        %v1873 = vmul.f32 %v1667, 0.0051020407
        %v1874 = vmul.f32 %v1670, 0.0051020407
        %v1875 = vmul.f32 %v1673, 0.0051020407
        %v1876 = vmul.f32 %v1676, 0.0051020407
        %v1877 = vmul.f32 %v1679, 0.0051020407
        %v1878 = vmul.f32 %v1682, 0.0051020407
        %v1879 = vmul.f32 %v1685, 0.0051020407
        %v1880 = vmul.f32 %v1688, 0.0051020407
        %v1881 = vmul.f32 %v1691, 0.0051020407
        %v1882 = vmul.f32 %v1694, 0.0051020407
        %v1883 = vmul.f32 %v1697, 0.0051020407
        %v1884 = vmul.f32 %v1700, 0.0051020407
        %v1885 = vmul.f32 %v1703, 0.0051020407
        %v1886 = vmul.f32 %v1706, 0.0051020407
        %v1887 = vmul.f32 %v1709, 0.0051020407
        %v1888 = vmul.f32 %v1712, 0.0051020407
        %v1889 = vmul.f32 %v1715, 0.0051020407
        %v1890 = vmul.f32 %v1718, 0.0051020407
        %v1891 = vmul.f32 %v1721, 0.0051020407
        %v1892 = vmul.f32 %v1724, 0.0051020407
        %v1893 = vmul.f32 %v1727, 0.0051020407
        %v1894 = vmul.f32 %v1730, 0.0051020407
        %v1895 = vmul.f32 %v1733, 0.0051020407
        %v1896 = vmul.f32 %v1736, 0.0051020407
        %v1897 = vmul.f32 %v1739, 0.0051020407
        %v1898 = vmul.f32 %v1742, 0.0051020407
        %v1899 = vmul.f32 %v1745, 0.0051020407
        %v1900 = vmul.f32 %v1748, 0.0051020407
        %v1901 = vmul.f32 %v1751, 0.0051020407
        %v1902 = vmul.f32 %v1754, 0.0051020407
        %v1903 = vmul.f32 %v1757, 0.0051020407
        %v1904 = vmul.f32 %v1760, 0.0051020407
        %v1905 = vmul.f32 %v1763, 0.0051020407
        %v1906 = vmul.f32 %v1766, 0.0051020407
        %v1907 = vmul.f32 %v1769, 0.0051020407
        %v1908 = vmul.f32 %v1772, 0.0051020407
        %v1909 = vmul.f32 %v1775, 0.0051020407
        %v1910 = vmul.f32 %v1778, 0.0051020407
        %v1911 = vmul.f32 %v1781, 0.0051020407
        %v1912 = vmul.f32 %v1784, 0.0051020407
        %v1913 = vmul.f32 %v1787, 0.0051020407
        %v1914 = vmul.f32 %v1790, 0.0051020407
        %v1915 = vmul.f32 %v1793, 0.0051020407
        %v1916 = vmul.f32 %v1796, 0.0051020407
        %v1917 = vmul.f32 %v1799, 0.0051020407
        %v1918 = vmul.f32 %v1802, 0.0051020407
        %v1919 = vmul.f32 %v1805, 0.0051020407
        %v1920 = vmul.f32 %v1808, 0.0051020407
        %v1921 = vmul.f32 %v1811, 0.0051020407
        %v1922 = vmul.f32 %v1814, 0.0051020407
        %v1923 = vmul.f32 %v1817, 0.0051020407
        %v1924 = vmul.f32 %v1820, 0.0051020407
        %v1925 = vmul.f32 %v1823, 0.0051020407
        %v1926 = vmul.f32 %v1826, 0.0051020407
        %v1927 = vmul.f32 %v1829, 0.0051020407
        %v1928 = vmul.f32 %v1832, 0.0051020407
        %v1929 = vmul.f32 %v1067, %v1067
        %v1930 = vmul.f32 %v1069, %v1069
        %v1931 = vmul.f32 %v1071, %v1071
        %v1932 = vmul.f32 %v1073, %v1073
        %v1933 = vmul.f32 %v1077, %v1077
        %v1934 = vmul.f32 %v1079, %v1079
        %v1935 = vmul.f32 %v1081, %v1081
        %v1936 = vmul.f32 %v1083, %v1083
        %v1937 = vmul.f32 %v1087, %v1087
        %v1938 = vmul.f32 %v1089, %v1089
        %v1939 = vmul.f32 %v1091, %v1091
        %v1940 = vmul.f32 %v1093, %v1093
        %v1941 = vmul.f32 %v1097, %v1097
        %v1942 = vmul.f32 %v1099, %v1099
        %v1943 = vmul.f32 %v1101, %v1101
        %v1944 = vmul.f32 %v1103, %v1103
        %v1945 = vmul.f32 %v1107, %v1107
        %v1946 = vmul.f32 %v1109, %v1109
        %v1947 = vmul.f32 %v1111, %v1111
        %v1948 = vmul.f32 %v1113, %v1113
        %v1949 = vmul.f32 %v1117, %v1117
        %v1950 = vmul.f32 %v1119, %v1119
        %v1951 = vmul.f32 %v1121, %v1121
        %v1952 = vmul.f32 %v1123, %v1123
        %v1953 = vmul.f32 %v1127, %v1127
        %v1954 = vmul.f32 %v1129, %v1129
        %v1955 = vmul.f32 %v1131, %v1131
        %v1956 = vmul.f32 %v1133, %v1133
        %v1957 = vmul.f32 %v1137, %v1137
        %v1958 = vmul.f32 %v1139, %v1139
        %v1959 = vmul.f32 %v1141, %v1141
        %v1960 = vmul.f32 %v1143, %v1143
        %v1961 = vmul.f32 %v1147, %v1147
        %v1962 = vmul.f32 %v1149, %v1149
        %v1963 = vmul.f32 %v1151, %v1151
        %v1964 = vmul.f32 %v1153, %v1153
        %v1965 = vmul.f32 %v1157, %v1157
        %v1966 = vmul.f32 %v1159, %v1159
        %v1967 = vmul.f32 %v1161, %v1161
        %v1968 = vmul.f32 %v1163, %v1163
        %v1969 = vmul.f32 %v1167, %v1167
        %v1970 = vmul.f32 %v1169, %v1169
        %v1971 = vmul.f32 %v1171, %v1171
        %v1972 = vmul.f32 %v1173, %v1173
        %v1973 = vmul.f32 %v1177, %v1177
        %v1974 = vmul.f32 %v1179, %v1179
        %v1975 = vmul.f32 %v1181, %v1181
        %v1976 = vmul.f32 %v1183, %v1183
        %v1977 = vmul.f32 %v1187, %v1187
        %v1978 = vmul.f32 %v1189, %v1189
        %v1979 = vmul.f32 %v1191, %v1191
        %v1980 = vmul.f32 %v1193, %v1193
        %v1981 = vmul.f32 %v1197, %v1197
        %v1982 = vmul.f32 %v1199, %v1199
        %v1983 = vmul.f32 %v1201, %v1201
        %v1984 = vmul.f32 %v1203, %v1203
        %v1985 = vmul.f32 %v1207, %v1207
        %v1986 = vmul.f32 %v1209, %v1209
        %v1987 = vmul.f32 %v1211, %v1211
        %v1988 = vmul.f32 %v1213, %v1213
        %v1989 = vmul.f32 %v1217, %v1217
        %v1990 = vmul.f32 %v1219, %v1219
        %v1991 = vmul.f32 %v1221, %v1221
        %v1992 = vmul.f32 %v1223, %v1223
        %v1993 = vmul.f32 %v1227, %v1227
        %v1994 = vmul.f32 %v1229, %v1229
        %v1995 = vmul.f32 %v1231, %v1231
        %v1996 = vmul.f32 %v1233, %v1233
        %v1997 = vmul.f32 %v1237, %v1237
        %v1998 = vmul.f32 %v1239, %v1239
        %v1999 = vmul.f32 %v1241, %v1241
        %v2000 = vmul.f32 %v1243, %v1243
        %v2001 = vmul.f32 %v1247, %v1247
        %v2002 = vmul.f32 %v1249, %v1249
        %v2003 = vmul.f32 %v1251, %v1251
        %v2004 = vmul.f32 %v1253, %v1253
        %v2005 = vmul.f32 %v1257, %v1257
        %v2006 = vmul.f32 %v1259, %v1259
        %v2007 = vmul.f32 %v1261, %v1261
        %v2008 = vmul.f32 %v1263, %v1263
        %v2009 = vmul.f32 %v1267, %v1267
        %v2010 = vmul.f32 %v1269, %v1269
        %v2011 = vmul.f32 %v1271, %v1271
        %v2012 = vmul.f32 %v1273, %v1273
        %v2013 = vmul.f32 %v1277, %v1277
        %v2014 = vmul.f32 %v1279, %v1279
        %v2015 = vmul.f32 %v1281, %v1281
        %v2016 = vmul.f32 %v1283, %v1283
        %v2017 = vmul.f32 %v1287, %v1287
        %v2018 = vmul.f32 %v1289, %v1289
        %v2019 = vmul.f32 %v1291, %v1291
        %v2020 = vmul.f32 %v1293, %v1293
        %v2021 = vmul.f32 %v1297, %v1297
        %v2022 = vmul.f32 %v1299, %v1299
        %v2023 = vmul.f32 %v1301, %v1301
        %v2024 = vmul.f32 %v1303, %v1303
        %v2025 = vmul.f32 %v1307, %v1307
        %v2026 = vmul.f32 %v1309, %v1309
        %v2027 = vmul.f32 %v1311, %v1311
        %v2028 = vmul.f32 %v1313, %v1313
        %v2029 = vmul.f32 %v1317, %v1317
        %v2030 = vmul.f32 %v1319, %v1319
        %v2031 = vmul.f32 %v1321, %v1321
        %v2032 = vmul.f32 %v1323, %v1323
        %v2033 = vmul.f32 %v1327, %v1327
        %v2034 = vmul.f32 %v1329, %v1329
        %v2035 = vmul.f32 %v1331, %v1331
        %v2036 = vmul.f32 %v1333, %v1333
        %v2037 = vmul.f32 %v1337, %v1337
        %v2038 = vmul.f32 %v1339, %v1339
        %v2039 = vmul.f32 %v1341, %v1341
        %v2040 = vmul.f32 %v1343, %v1343
        %v2041 = vmul.f32 %v1347, %v1347
        %v2042 = vmul.f32 %v1349, %v1349
        %v2043 = vmul.f32 %v1351, %v1351
        %v2044 = vmul.f32 %v1353, %v1353
        %v2045 = vmul.f32 %v1357, %v1357
        %v2046 = vmul.f32 %v1359, %v1359
        %v2047 = vmul.f32 %v1361, %v1361
        %v2048 = vmul.f32 %v1363, %v1363
        %v2049 = vmul.f32 %v1367, %v1367
        %v2050 = vmul.f32 %v1369, %v1369
        %v2051 = vmul.f32 %v1371, %v1371
        %v2052 = vmul.f32 %v1373, %v1373
        %v2053 = vmul.f32 %v1377, %v1377
        %v2054 = vmul.f32 %v1379, %v1379
        %v2055 = vmul.f32 %v1381, %v1381
        %v2056 = vmul.f32 %v1383, %v1383
        %v2057 = vmul.f32 %v1387, %v1387
        %v2058 = vmul.f32 %v1389, %v1389
        %v2059 = vmul.f32 %v1391, %v1391
        %v2060 = vmul.f32 %v1393, %v1393
        %v2061 = vmul.f32 %v1397, %v1397
        %v2062 = vmul.f32 %v1399, %v1399
        %v2063 = vmul.f32 %v1401, %v1401
        %v2064 = vmul.f32 %v1403, %v1403
        %v2065 = vmul.f32 %v1407, %v1407
        %v2066 = vmul.f32 %v1409, %v1409
        %v2067 = vmul.f32 %v1411, %v1411
        %v2068 = vmul.f32 %v1413, %v1413
        %v2069 = vmul.f32 %v1417, %v1417
        %v2070 = vmul.f32 %v1419, %v1419
        %v2071 = vmul.f32 %v1421, %v1421
        %v2072 = vmul.f32 %v1423, %v1423
        %v2073 = vmul.f32 %v1427, %v1427
        %v2074 = vmul.f32 %v1429, %v1429
        %v2075 = vmul.f32 %v1431, %v1431
        %v2076 = vmul.f32 %v1433, %v1433
        %v2077 = vmul.f32 %v1437, %v1437
        %v2078 = vmul.f32 %v1439, %v1439
        %v2079 = vmul.f32 %v1441, %v1441
        %v2080 = vmul.f32 %v1443, %v1443
        %v2081 = vmul.f32 %v1447, %v1447
        %v2082 = vmul.f32 %v1449, %v1449
        %v2083 = vmul.f32 %v1451, %v1451
        %v2084 = vmul.f32 %v1453, %v1453
        %v2085 = vmul.f32 %v1457, %v1457
        %v2086 = vmul.f32 %v1459, %v1459
        %v2087 = vmul.f32 %v1461, %v1461
        %v2088 = vmul.f32 %v1463, %v1463
        %v2089 = vmul.f32 %v1467, %v1467
        %v2090 = vmul.f32 %v1469, %v1469
        %v2091 = vmul.f32 %v1471, %v1471
        %v2092 = vmul.f32 %v1473, %v1473
        %v2093 = vmul.f32 %v1477, %v1477
        %v2094 = vmul.f32 %v1479, %v1479
        %v2095 = vmul.f32 %v1481, %v1481
        %v2096 = vmul.f32 %v1483, %v1483
        %v2097 = vmul.f32 %v1487, %v1487
        %v2098 = vmul.f32 %v1489, %v1489
        %v2099 = vmul.f32 %v1491, %v1491
        %v2100 = vmul.f32 %v1493, %v1493
        %v2101 = vmul.f32 %v1497, %v1497
        %v2102 = vmul.f32 %v1499, %v1499
        %v2103 = vmul.f32 %v1501, %v1501
        %v2104 = vmul.f32 %v1503, %v1503
        %v2105 = vmul.f32 %v1507, %v1507
        %v2106 = vmul.f32 %v1509, %v1509
        %v2107 = vmul.f32 %v1511, %v1511
        %v2108 = vmul.f32 %v1513, %v1513
        %v2109 = vmul.f32 %v1517, %v1517
        %v2110 = vmul.f32 %v1519, %v1519
        %v2111 = vmul.f32 %v1521, %v1521
        %v2112 = vmul.f32 %v1523, %v1523
        %v2113 = vmul.f32 %v1527, %v1527
        %v2114 = vmul.f32 %v1529, %v1529
        %v2115 = vmul.f32 %v1531, %v1531
        %v2116 = vmul.f32 %v1533, %v1533
        %v2117 = vmul.f32 %v1537, %v1537
        %v2118 = vmul.f32 %v1539, %v1539
        %v2119 = vmul.f32 %v1541, %v1541
        %v2120 = vmul.f32 %v1543, %v1543
        %v2121 = vadd.f32 %v1929, %v1930
        %2122 = vadd.xlane.f32.xlu0 %v2121
        %v2123 = vpop.xlane.xlu0 %2122
        %v2124 = vadd.f32 %v1931, %v1932
        %2125 = vadd.xlane.f32.xlu0 %v2124
        %v2126 = vpop.xlane.xlu0 %2125
        %v2127 = vadd.f32 %v1933, %v1934
        %2128 = vadd.xlane.f32.xlu0 %v2127
        %v2129 = vpop.xlane.xlu0 %2128
        %v2130 = vadd.f32 %v1935, %v1936
        %2131 = vadd.xlane.f32.xlu0 %v2130
        %v2132 = vpop.xlane.xlu0 %2131
        %v2133 = vadd.f32 %v1937, %v1938
        %2134 = vadd.xlane.f32.xlu0 %v2133
        %v2135 = vpop.xlane.xlu0 %2134
        %v2136 = vadd.f32 %v1939, %v1940
        %2137 = vadd.xlane.f32.xlu0 %v2136
        %v2138 = vpop.xlane.xlu0 %2137
        %v2139 = vadd.f32 %v1941, %v1942
        %2140 = vadd.xlane.f32.xlu0 %v2139
        %v2141 = vpop.xlane.xlu0 %2140
        %v2142 = vadd.f32 %v1943, %v1944
        %2143 = vadd.xlane.f32.xlu0 %v2142
        %v2144 = vpop.xlane.xlu0 %2143
        %v2145 = vadd.f32 %v1945, %v1946
        %2146 = vadd.xlane.f32.xlu0 %v2145
        %v2147 = vpop.xlane.xlu0 %2146
        %v2148 = vadd.f32 %v1947, %v1948
        %2149 = vadd.xlane.f32.xlu0 %v2148
        %v2150 = vpop.xlane.xlu0 %2149
        %v2151 = vadd.f32 %v1949, %v1950
        %2152 = vadd.xlane.f32.xlu0 %v2151
        %v2153 = vpop.xlane.xlu0 %2152
        %v2154 = vadd.f32 %v1951, %v1952
        %2155 = vadd.xlane.f32.xlu0 %v2154
        %v2156 = vpop.xlane.xlu0 %2155
        %v2157 = vadd.f32 %v1953, %v1954
        %2158 = vadd.xlane.f32.xlu0 %v2157
        %v2159 = vpop.xlane.xlu0 %2158
        %v2160 = vadd.f32 %v1955, %v1956
        %2161 = vadd.xlane.f32.xlu0 %v2160
        %v2162 = vpop.xlane.xlu0 %2161
        %v2163 = vadd.f32 %v1957, %v1958
        %2164 = vadd.xlane.f32.xlu0 %v2163
        %v2165 = vpop.xlane.xlu0 %2164
        %v2166 = vadd.f32 %v1959, %v1960
        %2167 = vadd.xlane.f32.xlu0 %v2166
        %v2168 = vpop.xlane.xlu0 %2167
        %v2169 = vadd.f32 %v1961, %v1962
        %2170 = vadd.xlane.f32.xlu0 %v2169
        %v2171 = vpop.xlane.xlu0 %2170
        %v2172 = vadd.f32 %v1963, %v1964
        %2173 = vadd.xlane.f32.xlu0 %v2172
        %v2174 = vpop.xlane.xlu0 %2173
        %v2175 = vadd.f32 %v1965, %v1966
        %2176 = vadd.xlane.f32.xlu0 %v2175
        %v2177 = vpop.xlane.xlu0 %2176
        %v2178 = vadd.f32 %v1967, %v1968
        %2179 = vadd.xlane.f32.xlu0 %v2178
        %v2180 = vpop.xlane.xlu0 %2179
        %v2181 = vadd.f32 %v1969, %v1970
        %2182 = vadd.xlane.f32.xlu0 %v2181
        %v2183 = vpop.xlane.xlu0 %2182
        %v2184 = vadd.f32 %v1971, %v1972
        %2185 = vadd.xlane.f32.xlu0 %v2184
        %v2186 = vpop.xlane.xlu0 %2185
        %v2187 = vadd.f32 %v1973, %v1974
        %2188 = vadd.xlane.f32.xlu0 %v2187
        %v2189 = vpop.xlane.xlu0 %2188
        %v2190 = vadd.f32 %v1975, %v1976
        %2191 = vadd.xlane.f32.xlu0 %v2190
        %v2192 = vpop.xlane.xlu0 %2191
        %v2193 = vadd.f32 %v1977, %v1978
        %2194 = vadd.xlane.f32.xlu0 %v2193
        %v2195 = vpop.xlane.xlu0 %2194
        %v2196 = vadd.f32 %v1979, %v1980
        %2197 = vadd.xlane.f32.xlu0 %v2196
        %v2198 = vpop.xlane.xlu0 %2197
        %v2199 = vadd.f32 %v1981, %v1982
        %2200 = vadd.xlane.f32.xlu0 %v2199
        %v2201 = vpop.xlane.xlu0 %2200
        %v2202 = vadd.f32 %v1983, %v1984
        %2203 = vadd.xlane.f32.xlu0 %v2202
        %v2204 = vpop.xlane.xlu0 %2203
        %v2205 = vadd.f32 %v1985, %v1986
        %2206 = vadd.xlane.f32.xlu0 %v2205
        %v2207 = vpop.xlane.xlu0 %2206
        %v2208 = vadd.f32 %v1987, %v1988
        %2209 = vadd.xlane.f32.xlu0 %v2208
        %v2210 = vpop.xlane.xlu0 %2209
        %v2211 = vadd.f32 %v1989, %v1990
        %2212 = vadd.xlane.f32.xlu0 %v2211
        %v2213 = vpop.xlane.xlu0 %2212
        %v2214 = vadd.f32 %v1991, %v1992
        %2215 = vadd.xlane.f32.xlu0 %v2214
        %v2216 = vpop.xlane.xlu0 %2215
        %v2217 = vadd.f32 %v1993, %v1994
        %2218 = vadd.xlane.f32.xlu0 %v2217
        %v2219 = vpop.xlane.xlu0 %2218
        %v2220 = vadd.f32 %v1995, %v1996
        %2221 = vadd.xlane.f32.xlu0 %v2220
        %v2222 = vpop.xlane.xlu0 %2221
        %v2223 = vadd.f32 %v1997, %v1998
        %2224 = vadd.xlane.f32.xlu0 %v2223
        %v2225 = vpop.xlane.xlu0 %2224
        %v2226 = vadd.f32 %v1999, %v2000
        %2227 = vadd.xlane.f32.xlu0 %v2226
        %v2228 = vpop.xlane.xlu0 %2227
        %v2229 = vadd.f32 %v2001, %v2002
        %2230 = vadd.xlane.f32.xlu0 %v2229
        %v2231 = vpop.xlane.xlu0 %2230
        %v2232 = vadd.f32 %v2003, %v2004
        %2233 = vadd.xlane.f32.xlu0 %v2232
        %v2234 = vpop.xlane.xlu0 %2233
        %v2235 = vadd.f32 %v2005, %v2006
        %2236 = vadd.xlane.f32.xlu0 %v2235
        %v2237 = vpop.xlane.xlu0 %2236
        %v2238 = vadd.f32 %v2007, %v2008
        %2239 = vadd.xlane.f32.xlu0 %v2238
        %v2240 = vpop.xlane.xlu0 %2239
        %v2241 = vadd.f32 %v2009, %v2010
        %2242 = vadd.xlane.f32.xlu0 %v2241
        %v2243 = vpop.xlane.xlu0 %2242
        %v2244 = vadd.f32 %v2011, %v2012
        %2245 = vadd.xlane.f32.xlu0 %v2244
        %v2246 = vpop.xlane.xlu0 %2245
        %v2247 = vadd.f32 %v2013, %v2014
        %2248 = vadd.xlane.f32.xlu0 %v2247
        %v2249 = vpop.xlane.xlu0 %2248
        %v2250 = vadd.f32 %v2015, %v2016
        %2251 = vadd.xlane.f32.xlu0 %v2250
        %v2252 = vpop.xlane.xlu0 %2251
        %v2253 = vadd.f32 %v2017, %v2018
        %2254 = vadd.xlane.f32.xlu0 %v2253
        %v2255 = vpop.xlane.xlu0 %2254
        %v2256 = vadd.f32 %v2019, %v2020
        %2257 = vadd.xlane.f32.xlu0 %v2256
        %v2258 = vpop.xlane.xlu0 %2257
        %v2259 = vadd.f32 %v2021, %v2022
        %2260 = vadd.xlane.f32.xlu0 %v2259
        %v2261 = vpop.xlane.xlu0 %2260
        %v2262 = vadd.f32 %v2023, %v2024
        %2263 = vadd.xlane.f32.xlu0 %v2262
        %v2264 = vpop.xlane.xlu0 %2263
        %v2265 = vadd.f32 %v2025, %v2026
        %2266 = vadd.xlane.f32.xlu0 %v2265
        %v2267 = vpop.xlane.xlu0 %2266
        %v2268 = vadd.f32 %v2027, %v2028
        %2269 = vadd.xlane.f32.xlu0 %v2268
        %v2270 = vpop.xlane.xlu0 %2269
        %v2271 = vadd.f32 %v2029, %v2030
        %2272 = vadd.xlane.f32.xlu0 %v2271
        %v2273 = vpop.xlane.xlu0 %2272
        %v2274 = vadd.f32 %v2031, %v2032
        %2275 = vadd.xlane.f32.xlu0 %v2274
        %v2276 = vpop.xlane.xlu0 %2275
        %v2277 = vadd.f32 %v2033, %v2034
        %2278 = vadd.xlane.f32.xlu0 %v2277
        %v2279 = vpop.xlane.xlu0 %2278
        %v2280 = vadd.f32 %v2035, %v2036
        %2281 = vadd.xlane.f32.xlu0 %v2280
        %v2282 = vpop.xlane.xlu0 %2281
        %v2283 = vadd.f32 %v2037, %v2038
        %2284 = vadd.xlane.f32.xlu0 %v2283
        %v2285 = vpop.xlane.xlu0 %2284
        %v2286 = vadd.f32 %v2039, %v2040
        %2287 = vadd.xlane.f32.xlu0 %v2286
        %v2288 = vpop.xlane.xlu0 %2287
        %v2289 = vadd.f32 %v2041, %v2042
        %2290 = vadd.xlane.f32.xlu0 %v2289
        %v2291 = vpop.xlane.xlu0 %2290
        %v2292 = vadd.f32 %v2043, %v2044
        %2293 = vadd.xlane.f32.xlu0 %v2292
        %v2294 = vpop.xlane.xlu0 %2293
        %v2295 = vadd.f32 %v2045, %v2046
        %2296 = vadd.xlane.f32.xlu0 %v2295
        %v2297 = vpop.xlane.xlu0 %2296
        %v2298 = vadd.f32 %v2047, %v2048
        %2299 = vadd.xlane.f32.xlu0 %v2298
        %v2300 = vpop.xlane.xlu0 %2299
        %v2301 = vadd.f32 %v2049, %v2050
        %2302 = vadd.xlane.f32.xlu0 %v2301
        %v2303 = vpop.xlane.xlu0 %2302
        %v2304 = vadd.f32 %v2051, %v2052
        %2305 = vadd.xlane.f32.xlu0 %v2304
        %v2306 = vpop.xlane.xlu0 %2305
        %v2307 = vadd.f32 %v2053, %v2054
        %2308 = vadd.xlane.f32.xlu0 %v2307
        %v2309 = vpop.xlane.xlu0 %2308
        %v2310 = vadd.f32 %v2055, %v2056
        %2311 = vadd.xlane.f32.xlu0 %v2310
        %v2312 = vpop.xlane.xlu0 %2311
        %v2313 = vadd.f32 %v2057, %v2058
        %2314 = vadd.xlane.f32.xlu0 %v2313
        %v2315 = vpop.xlane.xlu0 %2314
        %v2316 = vadd.f32 %v2059, %v2060
        %2317 = vadd.xlane.f32.xlu0 %v2316
        %v2318 = vpop.xlane.xlu0 %2317
        %v2319 = vadd.f32 %v2061, %v2062
        %2320 = vadd.xlane.f32.xlu0 %v2319
        %v2321 = vpop.xlane.xlu0 %2320
        %v2322 = vadd.f32 %v2063, %v2064
        %2323 = vadd.xlane.f32.xlu0 %v2322
        %v2324 = vpop.xlane.xlu0 %2323
        %v2325 = vadd.f32 %v2065, %v2066
        %2326 = vadd.xlane.f32.xlu0 %v2325
        %v2327 = vpop.xlane.xlu0 %2326
        %v2328 = vadd.f32 %v2067, %v2068
        %2329 = vadd.xlane.f32.xlu0 %v2328
        %v2330 = vpop.xlane.xlu0 %2329
        %v2331 = vadd.f32 %v2069, %v2070
        %2332 = vadd.xlane.f32.xlu0 %v2331
        %v2333 = vpop.xlane.xlu0 %2332
        %v2334 = vadd.f32 %v2071, %v2072
        %2335 = vadd.xlane.f32.xlu0 %v2334
        %v2336 = vpop.xlane.xlu0 %2335
        %v2337 = vadd.f32 %v2073, %v2074
        %2338 = vadd.xlane.f32.xlu0 %v2337
        %v2339 = vpop.xlane.xlu0 %2338
        %v2340 = vadd.f32 %v2075, %v2076
        %2341 = vadd.xlane.f32.xlu0 %v2340
        %v2342 = vpop.xlane.xlu0 %2341
        %v2343 = vadd.f32 %v2077, %v2078
        %2344 = vadd.xlane.f32.xlu0 %v2343
        %v2345 = vpop.xlane.xlu0 %2344
        %v2346 = vadd.f32 %v2079, %v2080
        %2347 = vadd.xlane.f32.xlu0 %v2346
        %v2348 = vpop.xlane.xlu0 %2347
        %v2349 = vadd.f32 %v2081, %v2082
        %2350 = vadd.xlane.f32.xlu0 %v2349
        %v2351 = vpop.xlane.xlu0 %2350
        %v2352 = vadd.f32 %v2083, %v2084
        %2353 = vadd.xlane.f32.xlu0 %v2352
        %v2354 = vpop.xlane.xlu0 %2353
        %v2355 = vadd.f32 %v2085, %v2086
        %2356 = vadd.xlane.f32.xlu0 %v2355
        %v2357 = vpop.xlane.xlu0 %2356
        %v2358 = vadd.f32 %v2087, %v2088
        %2359 = vadd.xlane.f32.xlu0 %v2358
        %v2360 = vpop.xlane.xlu0 %2359
        %v2361 = vadd.f32 %v2089, %v2090
        %2362 = vadd.xlane.f32.xlu0 %v2361
        %v2363 = vpop.xlane.xlu0 %2362
        %v2364 = vadd.f32 %v2091, %v2092
        %2365 = vadd.xlane.f32.xlu0 %v2364
        %v2366 = vpop.xlane.xlu0 %2365
        %v2367 = vadd.f32 %v2093, %v2094
        %2368 = vadd.xlane.f32.xlu0 %v2367
        %v2369 = vpop.xlane.xlu0 %2368
        %v2370 = vadd.f32 %v2095, %v2096
        %2371 = vadd.xlane.f32.xlu0 %v2370
        %v2372 = vpop.xlane.xlu0 %2371
        %v2373 = vadd.f32 %v2097, %v2098
        %2374 = vadd.xlane.f32.xlu0 %v2373
        %v2375 = vpop.xlane.xlu0 %2374
        %v2376 = vadd.f32 %v2099, %v2100
        %2377 = vadd.xlane.f32.xlu0 %v2376
        %v2378 = vpop.xlane.xlu0 %2377
        %v2379 = vadd.f32 %v2101, %v2102
        %2380 = vadd.xlane.f32.xlu0 %v2379
        %v2381 = vpop.xlane.xlu0 %2380
        %v2382 = vadd.f32 %v2103, %v2104
        %2383 = vadd.xlane.f32.xlu0 %v2382
        %v2384 = vpop.xlane.xlu0 %2383
        %v2385 = vadd.f32 %v2105, %v2106
        %2386 = vadd.xlane.f32.xlu0 %v2385
        %v2387 = vpop.xlane.xlu0 %2386
        %v2388 = vadd.f32 %v2107, %v2108
        %2389 = vadd.xlane.f32.xlu0 %v2388
        %v2390 = vpop.xlane.xlu0 %2389
        %v2391 = vadd.f32 %v2109, %v2110
        %2392 = vadd.xlane.f32.xlu0 %v2391
        %v2393 = vpop.xlane.xlu0 %2392
        %v2394 = vadd.f32 %v2111, %v2112
        %2395 = vadd.xlane.f32.xlu0 %v2394
        %v2396 = vpop.xlane.xlu0 %2395
        %v2397 = vadd.f32 %v2113, %v2114
        %2398 = vadd.xlane.f32.xlu0 %v2397
        %v2399 = vpop.xlane.xlu0 %2398
        %v2400 = vadd.f32 %v2115, %v2116
        %2401 = vadd.xlane.f32.xlu0 %v2400
        %v2402 = vpop.xlane.xlu0 %2401
        %v2403 = vadd.f32 %v2117, %v2118
        %2404 = vadd.xlane.f32.xlu0 %v2403
        %v2405 = vpop.xlane.xlu0 %2404
        %v2406 = vadd.f32 %v2119, %v2120
        %2407 = vadd.xlane.f32.xlu0 %v2406
        %v2408 = vpop.xlane.xlu0 %2407
        %v2409 = vmul.f32 %v2123, 0.0051020407
        %v2410 = vmul.f32 %v2126, 0.0051020407
        %v2411 = vmul.f32 %v2129, 0.0051020407
        %v2412 = vmul.f32 %v2132, 0.0051020407
        %v2413 = vmul.f32 %v2135, 0.0051020407
        %v2414 = vmul.f32 %v2138, 0.0051020407
        %v2415 = vmul.f32 %v2141, 0.0051020407
        %v2416 = vmul.f32 %v2144, 0.0051020407
        %v2417 = vmul.f32 %v2147, 0.0051020407
        %v2418 = vmul.f32 %v2150, 0.0051020407
        %v2419 = vmul.f32 %v2153, 0.0051020407
        %v2420 = vmul.f32 %v2156, 0.0051020407
        %v2421 = vmul.f32 %v2159, 0.0051020407
        %v2422 = vmul.f32 %v2162, 0.0051020407
        %v2423 = vmul.f32 %v2165, 0.0051020407
        %v2424 = vmul.f32 %v2168, 0.0051020407
        %v2425 = vmul.f32 %v2171, 0.0051020407
        %v2426 = vmul.f32 %v2174, 0.0051020407
        %v2427 = vmul.f32 %v2177, 0.0051020407
        %v2428 = vmul.f32 %v2180, 0.0051020407
        %v2429 = vmul.f32 %v2183, 0.0051020407
        %v2430 = vmul.f32 %v2186, 0.0051020407
        %v2431 = vmul.f32 %v2189, 0.0051020407
        %v2432 = vmul.f32 %v2192, 0.0051020407
        %v2433 = vmul.f32 %v2195, 0.0051020407
        %v2434 = vmul.f32 %v2198, 0.0051020407
        %v2435 = vmul.f32 %v2201, 0.0051020407
        %v2436 = vmul.f32 %v2204, 0.0051020407
        %v2437 = vmul.f32 %v2207, 0.0051020407
        %v2438 = vmul.f32 %v2210, 0.0051020407
        %v2439 = vmul.f32 %v2213, 0.0051020407
        %v2440 = vmul.f32 %v2216, 0.0051020407
        %v2441 = vmul.f32 %v2219, 0.0051020407
        %v2442 = vmul.f32 %v2222, 0.0051020407
        %v2443 = vmul.f32 %v2225, 0.0051020407
        %v2444 = vmul.f32 %v2228, 0.0051020407
        %v2445 = vmul.f32 %v2231, 0.0051020407
        %v2446 = vmul.f32 %v2234, 0.0051020407
        %v2447 = vmul.f32 %v2237, 0.0051020407
        %v2448 = vmul.f32 %v2240, 0.0051020407
        %v2449 = vmul.f32 %v2243, 0.0051020407
        %v2450 = vmul.f32 %v2246, 0.0051020407
        %v2451 = vmul.f32 %v2249, 0.0051020407
        %v2452 = vmul.f32 %v2252, 0.0051020407
        %v2453 = vmul.f32 %v2255, 0.0051020407
        %v2454 = vmul.f32 %v2258, 0.0051020407
        %v2455 = vmul.f32 %v2261, 0.0051020407
        %v2456 = vmul.f32 %v2264, 0.0051020407
        %v2457 = vmul.f32 %v2267, 0.0051020407
        %v2458 = vmul.f32 %v2270, 0.0051020407
        %v2459 = vmul.f32 %v2273, 0.0051020407
        %v2460 = vmul.f32 %v2276, 0.0051020407
        %v2461 = vmul.f32 %v2279, 0.0051020407
        %v2462 = vmul.f32 %v2282, 0.0051020407
        %v2463 = vmul.f32 %v2285, 0.0051020407
        %v2464 = vmul.f32 %v2288, 0.0051020407
        %v2465 = vmul.f32 %v2291, 0.0051020407
        %v2466 = vmul.f32 %v2294, 0.0051020407
        %v2467 = vmul.f32 %v2297, 0.0051020407
        %v2468 = vmul.f32 %v2300, 0.0051020407
        %v2469 = vmul.f32 %v2303, 0.0051020407
        %v2470 = vmul.f32 %v2306, 0.0051020407
        %v2471 = vmul.f32 %v2309, 0.0051020407
        %v2472 = vmul.f32 %v2312, 0.0051020407
        %v2473 = vmul.f32 %v2315, 0.0051020407
        %v2474 = vmul.f32 %v2318, 0.0051020407
        %v2475 = vmul.f32 %v2321, 0.0051020407
        %v2476 = vmul.f32 %v2324, 0.0051020407
        %v2477 = vmul.f32 %v2327, 0.0051020407
        %v2478 = vmul.f32 %v2330, 0.0051020407
        %v2479 = vmul.f32 %v2333, 0.0051020407
        %v2480 = vmul.f32 %v2336, 0.0051020407
        %v2481 = vmul.f32 %v2339, 0.0051020407
        %v2482 = vmul.f32 %v2342, 0.0051020407
        %v2483 = vmul.f32 %v2345, 0.0051020407
        %v2484 = vmul.f32 %v2348, 0.0051020407
        %v2485 = vmul.f32 %v2351, 0.0051020407
        %v2486 = vmul.f32 %v2354, 0.0051020407
        %v2487 = vmul.f32 %v2357, 0.0051020407
        %v2488 = vmul.f32 %v2360, 0.0051020407
        %v2489 = vmul.f32 %v2363, 0.0051020407
        %v2490 = vmul.f32 %v2366, 0.0051020407
        %v2491 = vmul.f32 %v2369, 0.0051020407
        %v2492 = vmul.f32 %v2372, 0.0051020407
        %v2493 = vmul.f32 %v2375, 0.0051020407
        %v2494 = vmul.f32 %v2378, 0.0051020407
        %v2495 = vmul.f32 %v2381, 0.0051020407
        %v2496 = vmul.f32 %v2384, 0.0051020407
        %v2497 = vmul.f32 %v2387, 0.0051020407
        %v2498 = vmul.f32 %v2390, 0.0051020407
        %v2499 = vmul.f32 %v2393, 0.0051020407
        %v2500 = vmul.f32 %v2396, 0.0051020407
        %v2501 = vmul.f32 %v2399, 0.0051020407
        %v2502 = vmul.f32 %v2402, 0.0051020407
        %v2503 = vmul.f32 %v2405, 0.0051020407
        %v2504 = vmul.f32 %v2408, 0.0051020407
        %v2505 = vmul.f32 %v1833, %v1833
        %v2506 = vmul.f32 %v1834, %v1834
        %v2507 = vmul.f32 %v1835, %v1835
        %v2508 = vmul.f32 %v1836, %v1836
        %v2509 = vmul.f32 %v1837, %v1837
        %v2510 = vmul.f32 %v1838, %v1838
        %v2511 = vmul.f32 %v1839, %v1839
        %v2512 = vmul.f32 %v1840, %v1840
        %v2513 = vmul.f32 %v1841, %v1841
        %v2514 = vmul.f32 %v1842, %v1842
        %v2515 = vmul.f32 %v1843, %v1843
        %v2516 = vmul.f32 %v1844, %v1844
        %v2517 = vmul.f32 %v1845, %v1845
        %v2518 = vmul.f32 %v1846, %v1846
        %v2519 = vmul.f32 %v1847, %v1847
        %v2520 = vmul.f32 %v1848, %v1848
        %v2521 = vmul.f32 %v1849, %v1849
        %v2522 = vmul.f32 %v1850, %v1850
        %v2523 = vmul.f32 %v1851, %v1851
        %v2524 = vmul.f32 %v1852, %v1852
        %v2525 = vmul.f32 %v1853, %v1853
        %v2526 = vmul.f32 %v1854, %v1854
        %v2527 = vmul.f32 %v1855, %v1855
        %v2528 = vmul.f32 %v1856, %v1856
        %v2529 = vmul.f32 %v1857, %v1857
        %v2530 = vmul.f32 %v1858, %v1858
        %v2531 = vmul.f32 %v1859, %v1859
        %v2532 = vmul.f32 %v1860, %v1860
        %v2533 = vmul.f32 %v1861, %v1861
        %v2534 = vmul.f32 %v1862, %v1862
        %v2535 = vmul.f32 %v1863, %v1863
        %v2536 = vmul.f32 %v1864, %v1864
        %v2537 = vmul.f32 %v1865, %v1865
        %v2538 = vmul.f32 %v1866, %v1866
        %v2539 = vmul.f32 %v1867, %v1867
        %v2540 = vmul.f32 %v1868, %v1868
        %v2541 = vmul.f32 %v1869, %v1869
        %v2542 = vmul.f32 %v1870, %v1870
        %v2543 = vmul.f32 %v1871, %v1871
        %v2544 = vmul.f32 %v1872, %v1872
        %v2545 = vmul.f32 %v1873, %v1873
        %v2546 = vmul.f32 %v1874, %v1874
        %v2547 = vmul.f32 %v1875, %v1875
        %v2548 = vmul.f32 %v1876, %v1876
        %v2549 = vmul.f32 %v1877, %v1877
        %v2550 = vmul.f32 %v1878, %v1878
        %v2551 = vmul.f32 %v1879, %v1879
        %v2552 = vmul.f32 %v1880, %v1880
        %v2553 = vmul.f32 %v1881, %v1881
        %v2554 = vmul.f32 %v1882, %v1882
        %v2555 = vmul.f32 %v1883, %v1883
        %v2556 = vmul.f32 %v1884, %v1884
        %v2557 = vmul.f32 %v1885, %v1885
        %v2558 = vmul.f32 %v1886, %v1886
        %v2559 = vmul.f32 %v1887, %v1887
        %v2560 = vmul.f32 %v1888, %v1888
        %v2561 = vmul.f32 %v1889, %v1889
        %v2562 = vmul.f32 %v1890, %v1890
        %v2563 = vmul.f32 %v1891, %v1891
        %v2564 = vmul.f32 %v1892, %v1892
        %v2565 = vmul.f32 %v1893, %v1893
        %v2566 = vmul.f32 %v1894, %v1894
        %v2567 = vmul.f32 %v1895, %v1895
        %v2568 = vmul.f32 %v1896, %v1896
        %v2569 = vmul.f32 %v1897, %v1897
        %v2570 = vmul.f32 %v1898, %v1898
        %v2571 = vmul.f32 %v1899, %v1899
        %v2572 = vmul.f32 %v1900, %v1900
        %v2573 = vmul.f32 %v1901, %v1901
        %v2574 = vmul.f32 %v1902, %v1902
        %v2575 = vmul.f32 %v1903, %v1903
        %v2576 = vmul.f32 %v1904, %v1904
        %v2577 = vmul.f32 %v1905, %v1905
        %v2578 = vmul.f32 %v1906, %v1906
        %v2579 = vmul.f32 %v1907, %v1907
        %v2580 = vmul.f32 %v1908, %v1908
        %v2581 = vmul.f32 %v1909, %v1909
        %v2582 = vmul.f32 %v1910, %v1910
        %v2583 = vmul.f32 %v1911, %v1911
        %v2584 = vmul.f32 %v1912, %v1912
        %v2585 = vmul.f32 %v1913, %v1913
        %v2586 = vmul.f32 %v1914, %v1914
        %v2587 = vmul.f32 %v1915, %v1915
        %v2588 = vmul.f32 %v1916, %v1916
        %v2589 = vmul.f32 %v1917, %v1917
        %v2590 = vmul.f32 %v1918, %v1918
        %v2591 = vmul.f32 %v1919, %v1919
        %v2592 = vmul.f32 %v1920, %v1920
        %v2593 = vmul.f32 %v1921, %v1921
        %v2594 = vmul.f32 %v1922, %v1922
        %v2595 = vmul.f32 %v1923, %v1923
        %v2596 = vmul.f32 %v1924, %v1924
        %v2597 = vmul.f32 %v1925, %v1925
        %v2598 = vmul.f32 %v1926, %v1926
        %v2599 = vmul.f32 %v1927, %v1927
        %v2600 = vmul.f32 %v1928, %v1928
        %v2601 = vsub.f32 %v2409, %v2505
        %v2602 = vsub.f32 %v2410, %v2506
        %v2603 = vsub.f32 %v2411, %v2507
        %v2604 = vsub.f32 %v2412, %v2508
        %v2605 = vsub.f32 %v2413, %v2509
        %v2606 = vsub.f32 %v2414, %v2510
        %v2607 = vsub.f32 %v2415, %v2511
        %v2608 = vsub.f32 %v2416, %v2512
        %v2609 = vsub.f32 %v2417, %v2513
        %v2610 = vsub.f32 %v2418, %v2514
        %v2611 = vsub.f32 %v2419, %v2515
        %v2612 = vsub.f32 %v2420, %v2516
        %v2613 = vsub.f32 %v2421, %v2517
        %v2614 = vsub.f32 %v2422, %v2518
        %v2615 = vsub.f32 %v2423, %v2519
        %v2616 = vsub.f32 %v2424, %v2520
        %v2617 = vsub.f32 %v2425, %v2521
        %v2618 = vsub.f32 %v2426, %v2522
        %v2619 = vsub.f32 %v2427, %v2523
        %v2620 = vsub.f32 %v2428, %v2524
        %v2621 = vsub.f32 %v2429, %v2525
        %v2622 = vsub.f32 %v2430, %v2526
        %v2623 = vsub.f32 %v2431, %v2527
        %v2624 = vsub.f32 %v2432, %v2528
        %v2625 = vsub.f32 %v2433, %v2529
        %v2626 = vsub.f32 %v2434, %v2530
        %v2627 = vsub.f32 %v2435, %v2531
        %v2628 = vsub.f32 %v2436, %v2532
        %v2629 = vsub.f32 %v2437, %v2533
        %v2630 = vsub.f32 %v2438, %v2534
        %v2631 = vsub.f32 %v2439, %v2535
        %v2632 = vsub.f32 %v2440, %v2536
        %v2633 = vsub.f32 %v2441, %v2537
        %v2634 = vsub.f32 %v2442, %v2538
        %v2635 = vsub.f32 %v2443, %v2539
        %v2636 = vsub.f32 %v2444, %v2540
        %v2637 = vsub.f32 %v2445, %v2541
        %v2638 = vsub.f32 %v2446, %v2542
        %v2639 = vsub.f32 %v2447, %v2543
        %v2640 = vsub.f32 %v2448, %v2544
        %v2641 = vsub.f32 %v2449, %v2545
        %v2642 = vsub.f32 %v2450, %v2546
        %v2643 = vsub.f32 %v2451, %v2547
        %v2644 = vsub.f32 %v2452, %v2548
        %v2645 = vsub.f32 %v2453, %v2549
        %v2646 = vsub.f32 %v2454, %v2550
        %v2647 = vsub.f32 %v2455, %v2551
        %v2648 = vsub.f32 %v2456, %v2552
        %v2649 = vsub.f32 %v2457, %v2553
        %v2650 = vsub.f32 %v2458, %v2554
        %v2651 = vsub.f32 %v2459, %v2555
        %v2652 = vsub.f32 %v2460, %v2556
        %v2653 = vsub.f32 %v2461, %v2557
        %v2654 = vsub.f32 %v2462, %v2558
        %v2655 = vsub.f32 %v2463, %v2559
        %v2656 = vsub.f32 %v2464, %v2560
        %v2657 = vsub.f32 %v2465, %v2561
        %v2658 = vsub.f32 %v2466, %v2562
        %v2659 = vsub.f32 %v2467, %v2563
        %v2660 = vsub.f32 %v2468, %v2564
        %v2661 = vsub.f32 %v2469, %v2565
        %v2662 = vsub.f32 %v2470, %v2566
        %v2663 = vsub.f32 %v2471, %v2567
        %v2664 = vsub.f32 %v2472, %v2568
        %v2665 = vsub.f32 %v2473, %v2569
        %v2666 = vsub.f32 %v2474, %v2570
        %v2667 = vsub.f32 %v2475, %v2571
        %v2668 = vsub.f32 %v2476, %v2572
        %v2669 = vsub.f32 %v2477, %v2573
        %v2670 = vsub.f32 %v2478, %v2574
        %v2671 = vsub.f32 %v2479, %v2575
        %v2672 = vsub.f32 %v2480, %v2576
        %v2673 = vsub.f32 %v2481, %v2577
        %v2674 = vsub.f32 %v2482, %v2578
        %v2675 = vsub.f32 %v2483, %v2579
        %v2676 = vsub.f32 %v2484, %v2580
        %v2677 = vsub.f32 %v2485, %v2581
        %v2678 = vsub.f32 %v2486, %v2582
        %v2679 = vsub.f32 %v2487, %v2583
        %v2680 = vsub.f32 %v2488, %v2584
        %v2681 = vsub.f32 %v2489, %v2585
        %v2682 = vsub.f32 %v2490, %v2586
        %v2683 = vsub.f32 %v2491, %v2587
        %v2684 = vsub.f32 %v2492, %v2588
        %v2685 = vsub.f32 %v2493, %v2589
        %v2686 = vsub.f32 %v2494, %v2590
        %v2687 = vsub.f32 %v2495, %v2591
        %v2688 = vsub.f32 %v2496, %v2592
        %v2689 = vsub.f32 %v2497, %v2593
        %v2690 = vsub.f32 %v2498, %v2594
        %v2691 = vsub.f32 %v2499, %v2595
        %v2692 = vsub.f32 %v2500, %v2596
        %v2693 = vsub.f32 %v2501, %v2597
        %v2694 = vsub.f32 %v2502, %v2598
        %v2695 = vsub.f32 %v2503, %v2599
        %v2696 = vsub.f32 %v2504, %v2600
        %v2697 = vld [vmem:[%s2] sm:$0xff]
        %v2698 = vld [vmem:[%s2 + $0x8] sm:$0xff]
        %v2699 = vld [vmem:[%s2 + $0x10] sm:$0xff]
        %v2700 = vld [vmem:[%s2 + $0x18] sm:$0xff]
        %v2701 = vld [vmem:[%s2 + $0x20] sm:$0xff]
        %v2702 = vld [vmem:[%s2 + $0x28] sm:$0xff]
        %v2703 = vld [vmem:[%s2 + $0x30] sm:$0xff]
        %v2704 = vld [vmem:[%s2 + $0x38] sm:$0xff]
        %v2705 = vld [vmem:[%s2 + $0x40] sm:$0xff]
        %v2706 = vld [vmem:[%s2 + $0x48] sm:$0xff]
        %v2707 = vld [vmem:[%s2 + $0x50] sm:$0xff]
        %v2708 = vld [vmem:[%s2 + $0x58] sm:$0xff]
        %v2709 = vld [vmem:[%s2 + $0x60] sm:$0xff]
        %v2710 = vld [vmem:[%s2 + $0x68] sm:$0xff]
        %v2711 = vld [vmem:[%s2 + $0x70] sm:$0xff]
        %v2712 = vld [vmem:[%s2 + $0x78] sm:$0xff]
        %v2713 = vld [vmem:[%s2 + $0x80] sm:$0xff]
        %v2714 = vld [vmem:[%s2 + $0x88] sm:$0xff]
        %v2715 = vld [vmem:[%s2 + $0x90] sm:$0xff]
        %v2716 = vld [vmem:[%s2 + $0x98] sm:$0xff]
        %v2717 = vld [vmem:[%s2 + $0xa0] sm:$0xff]
        %v2718 = vld [vmem:[%s2 + $0xa8] sm:$0xff]
        %v2719 = vld [vmem:[%s2 + $0xb0] sm:$0xff]
        %v2720 = vld [vmem:[%s2 + $0xb8] sm:$0xff]
        %v2721 = vld [vmem:[%s2 + $0xc0] sm:$0xff]
        %v2722 = vld [vmem:[%s2 + $0xc8] sm:$0xff]
        %v2723 = vld [vmem:[%s2 + $0xd0] sm:$0xff]
        %v2724 = vld [vmem:[%s2 + $0xd8] sm:$0xff]
        %v2725 = vld [vmem:[%s2 + $0xe0] sm:$0xff]
        %v2726 = vld [vmem:[%s2 + $0xe8] sm:$0xff]
        %v2727 = vld [vmem:[%s2 + $0xf0] sm:$0xff]
        %v2728 = vld [vmem:[%s2 + $0xf8] sm:$0xff]
        %v2729 = vld [vmem:[%s2 + $0x100] sm:$0xff]
        %v2730 = vld [vmem:[%s2 + $0x108] sm:$0xff]
        %v2731 = vld [vmem:[%s2 + $0x110] sm:$0xff]
        %v2732 = vld [vmem:[%s2 + $0x118] sm:$0xff]
        %v2733 = vld [vmem:[%s2 + $0x120] sm:$0xff]
        %v2734 = vld [vmem:[%s2 + $0x128] sm:$0xff]
        %v2735 = vld [vmem:[%s2 + $0x130] sm:$0xff]
        %v2736 = vld [vmem:[%s2 + $0x138] sm:$0xff]
        %v2737 = vld [vmem:[%s2 + $0x140] sm:$0xff]
        %v2738 = vld [vmem:[%s2 + $0x148] sm:$0xff]
        %v2739 = vld [vmem:[%s2 + $0x150] sm:$0xff]
        %v2740 = vld [vmem:[%s2 + $0x158] sm:$0xff]
        %v2741 = vld [vmem:[%s2 + $0x160] sm:$0xff]
        %v2742 = vld [vmem:[%s2 + $0x168] sm:$0xff]
        %v2743 = vld [vmem:[%s2 + $0x170] sm:$0xff]
        %v2744 = vld [vmem:[%s2 + $0x178] sm:$0xff]
        %v2745 = vld [vmem:[%s2 + $0x180] sm:$0xff]
        %v2746 = vld [vmem:[%s2 + $0x188] sm:$0xff]
        %v2747 = vld [vmem:[%s2 + $0x190] sm:$0xff]
        %v2748 = vld [vmem:[%s2 + $0x198] sm:$0xff]
        %v2749 = vld [vmem:[%s2 + $0x1a0] sm:$0xff]
        %v2750 = vld [vmem:[%s2 + $0x1a8] sm:$0xff]
        %v2751 = vld [vmem:[%s2 + $0x1b0] sm:$0xff]
        %v2752 = vld [vmem:[%s2 + $0x1b8] sm:$0xff]
        %v2753 = vld [vmem:[%s2 + $0x1c0] sm:$0xff]
        %v2754 = vld [vmem:[%s2 + $0x1c8] sm:$0xff]
        %v2755 = vld [vmem:[%s2 + $0x1d0] sm:$0xff]
        %v2756 = vld [vmem:[%s2 + $0x1d8] sm:$0xff]
        %v2757 = vld [vmem:[%s2 + $0x1e0] sm:$0xff]
        %v2758 = vld [vmem:[%s2 + $0x1e8] sm:$0xff]
        %v2759 = vld [vmem:[%s2 + $0x1f0] sm:$0xff]
        %v2760 = vld [vmem:[%s2 + $0x1f8] sm:$0xff]
        %v2761 = vld [vmem:[%s2 + $0x200] sm:$0xff]
        %v2762 = vld [vmem:[%s2 + $0x208] sm:$0xff]
        %v2763 = vld [vmem:[%s2 + $0x210] sm:$0xff]
        %v2764 = vld [vmem:[%s2 + $0x218] sm:$0xff]
        %v2765 = vld [vmem:[%s2 + $0x220] sm:$0xff]
        %v2766 = vld [vmem:[%s2 + $0x228] sm:$0xff]
        %v2767 = vld [vmem:[%s2 + $0x230] sm:$0xff]
        %v2768 = vld [vmem:[%s2 + $0x238] sm:$0xff]
        %v2769 = vld [vmem:[%s2 + $0x240] sm:$0xff]
        %v2770 = vld [vmem:[%s2 + $0x248] sm:$0xff]
        %v2771 = vld [vmem:[%s2 + $0x250] sm:$0xff]
        %v2772 = vld [vmem:[%s2 + $0x258] sm:$0xff]
        %v2773 = vld [vmem:[%s2 + $0x260] sm:$0xff]
        %v2774 = vld [vmem:[%s2 + $0x268] sm:$0xff]
        %v2775 = vld [vmem:[%s2 + $0x270] sm:$0xff]
        %v2776 = vld [vmem:[%s2 + $0x278] sm:$0xff]
        %v2777 = vld [vmem:[%s2 + $0x280] sm:$0xff]
        %v2778 = vld [vmem:[%s2 + $0x288] sm:$0xff]
        %v2779 = vld [vmem:[%s2 + $0x290] sm:$0xff]
        %v2780 = vld [vmem:[%s2 + $0x298] sm:$0xff]
        %v2781 = vld [vmem:[%s2 + $0x2a0] sm:$0xff]
        %v2782 = vld [vmem:[%s2 + $0x2a8] sm:$0xff]
        %v2783 = vld [vmem:[%s2 + $0x2b0] sm:$0xff]
        %v2784 = vld [vmem:[%s2 + $0x2b8] sm:$0xff]
        %v2785 = vld [vmem:[%s2 + $0x2c0] sm:$0xff]
        %v2786 = vld [vmem:[%s2 + $0x2c8] sm:$0xff]
        %v2787 = vld [vmem:[%s2 + $0x2d0] sm:$0xff]
        %v2788 = vld [vmem:[%s2 + $0x2d8] sm:$0xff]
        %v2789 = vld [vmem:[%s2 + $0x2e0] sm:$0xff]
        %v2790 = vld [vmem:[%s2 + $0x2e8] sm:$0xff]
        %v2791 = vld [vmem:[%s2 + $0x2f0] sm:$0xff]
        %v2792 = vld [vmem:[%s2 + $0x2f8] sm:$0xff]
        %v2793 = vadd.f32 %v2601, 1e-05
        %v2794 = vadd.f32 %v2602, 1e-05
        %v2795 = vadd.f32 %v2603, 1e-05
        %v2796 = vadd.f32 %v2604, 1e-05
        %v2797 = vadd.f32 %v2605, 1e-05
        %v2798 = vadd.f32 %v2606, 1e-05
        %v2799 = vadd.f32 %v2607, 1e-05
        %v2800 = vadd.f32 %v2608, 1e-05
        %v2801 = vadd.f32 %v2609, 1e-05
        %v2802 = vadd.f32 %v2610, 1e-05
        %v2803 = vadd.f32 %v2611, 1e-05
        %v2804 = vadd.f32 %v2612, 1e-05
        %v2805 = vadd.f32 %v2613, 1e-05
        %v2806 = vadd.f32 %v2614, 1e-05
        %v2807 = vadd.f32 %v2615, 1e-05
        %v2808 = vadd.f32 %v2616, 1e-05
        %v2809 = vadd.f32 %v2617, 1e-05
        %v2810 = vadd.f32 %v2618, 1e-05
        %v2811 = vadd.f32 %v2619, 1e-05
        %v2812 = vadd.f32 %v2620, 1e-05
        %v2813 = vadd.f32 %v2621, 1e-05
        %v2814 = vadd.f32 %v2622, 1e-05
        %v2815 = vadd.f32 %v2623, 1e-05
        %v2816 = vadd.f32 %v2624, 1e-05
        %v2817 = vadd.f32 %v2625, 1e-05
        %v2818 = vadd.f32 %v2626, 1e-05
        %v2819 = vadd.f32 %v2627, 1e-05
        %v2820 = vadd.f32 %v2628, 1e-05
        %v2821 = vadd.f32 %v2629, 1e-05
        %v2822 = vadd.f32 %v2630, 1e-05
        %v2823 = vadd.f32 %v2631, 1e-05
        %v2824 = vadd.f32 %v2632, 1e-05
        %v2825 = vadd.f32 %v2633, 1e-05
        %v2826 = vadd.f32 %v2634, 1e-05
        %v2827 = vadd.f32 %v2635, 1e-05
        %v2828 = vadd.f32 %v2636, 1e-05
        %v2829 = vadd.f32 %v2637, 1e-05
        %v2830 = vadd.f32 %v2638, 1e-05
        %v2831 = vadd.f32 %v2639, 1e-05
        %v2832 = vadd.f32 %v2640, 1e-05
        %v2833 = vadd.f32 %v2641, 1e-05
        %v2834 = vadd.f32 %v2642, 1e-05
        %v2835 = vadd.f32 %v2643, 1e-05
        %v2836 = vadd.f32 %v2644, 1e-05
        %v2837 = vadd.f32 %v2645, 1e-05
        %v2838 = vadd.f32 %v2646, 1e-05
        %v2839 = vadd.f32 %v2647, 1e-05
        %v2840 = vadd.f32 %v2648, 1e-05
        %v2841 = vadd.f32 %v2649, 1e-05
        %v2842 = vadd.f32 %v2650, 1e-05
        %v2843 = vadd.f32 %v2651, 1e-05
        %v2844 = vadd.f32 %v2652, 1e-05
        %v2845 = vadd.f32 %v2653, 1e-05
        %v2846 = vadd.f32 %v2654, 1e-05
        %v2847 = vadd.f32 %v2655, 1e-05
        %v2848 = vadd.f32 %v2656, 1e-05
        %v2849 = vadd.f32 %v2657, 1e-05
        %v2850 = vadd.f32 %v2658, 1e-05
        %v2851 = vadd.f32 %v2659, 1e-05
        %v2852 = vadd.f32 %v2660, 1e-05
        %v2853 = vadd.f32 %v2661, 1e-05
        %v2854 = vadd.f32 %v2662, 1e-05
        %v2855 = vadd.f32 %v2663, 1e-05
        %v2856 = vadd.f32 %v2664, 1e-05
        %v2857 = vadd.f32 %v2665, 1e-05
        %v2858 = vadd.f32 %v2666, 1e-05
        %v2859 = vadd.f32 %v2667, 1e-05
        %v2860 = vadd.f32 %v2668, 1e-05
        %v2861 = vadd.f32 %v2669, 1e-05
        %v2862 = vadd.f32 %v2670, 1e-05
        %v2863 = vadd.f32 %v2671, 1e-05
        %v2864 = vadd.f32 %v2672, 1e-05
        %v2865 = vadd.f32 %v2673, 1e-05
        %v2866 = vadd.f32 %v2674, 1e-05
        %v2867 = vadd.f32 %v2675, 1e-05
        %v2868 = vadd.f32 %v2676, 1e-05
        %v2869 = vadd.f32 %v2677, 1e-05
        %v2870 = vadd.f32 %v2678, 1e-05
        %v2871 = vadd.f32 %v2679, 1e-05
        %v2872 = vadd.f32 %v2680, 1e-05
        %v2873 = vadd.f32 %v2681, 1e-05
        %v2874 = vadd.f32 %v2682, 1e-05
        %v2875 = vadd.f32 %v2683, 1e-05
        %v2876 = vadd.f32 %v2684, 1e-05
        %v2877 = vadd.f32 %v2685, 1e-05
        %v2878 = vadd.f32 %v2686, 1e-05
        %v2879 = vadd.f32 %v2687, 1e-05
        %v2880 = vadd.f32 %v2688, 1e-05
        %v2881 = vadd.f32 %v2689, 1e-05
        %v2882 = vadd.f32 %v2690, 1e-05
        %v2883 = vadd.f32 %v2691, 1e-05
        %v2884 = vadd.f32 %v2692, 1e-05
        %v2885 = vadd.f32 %v2693, 1e-05
        %v2886 = vadd.f32 %v2694, 1e-05
        %v2887 = vadd.f32 %v2695, 1e-05
        %v2888 = vadd.f32 %v2696, 1e-05
        %v2889 = vrsqrt.pop %v2793
        %v2890 = vrsqrt.pop %v2794
        %v2891 = vrsqrt.pop %v2795
        %v2892 = vrsqrt.pop %v2796
        %v2893 = vrsqrt.pop %v2797
        %v2894 = vrsqrt.pop %v2798
        %v2895 = vrsqrt.pop %v2799
        %v2896 = vrsqrt.pop %v2800
        %v2897 = vrsqrt.pop %v2801
        %v2898 = vrsqrt.pop %v2802
        %v2899 = vrsqrt.pop %v2803
        %v2900 = vrsqrt.pop %v2804
        %v2901 = vrsqrt.pop %v2805
        %v2902 = vrsqrt.pop %v2806
        %v2903 = vrsqrt.pop %v2807
        %v2904 = vrsqrt.pop %v2808
        %v2905 = vrsqrt.pop %v2809
        %v2906 = vrsqrt.pop %v2810
        %v2907 = vrsqrt.pop %v2811
        %v2908 = vrsqrt.pop %v2812
        %v2909 = vrsqrt.pop %v2813
        %v2910 = vrsqrt.pop %v2814
        %v2911 = vrsqrt.pop %v2815
        %v2912 = vrsqrt.pop %v2816
        %v2913 = vrsqrt.pop %v2817
        %v2914 = vrsqrt.pop %v2818
        %v2915 = vrsqrt.pop %v2819
        %v2916 = vrsqrt.pop %v2820
        %v2917 = vrsqrt.pop %v2821
        %v2918 = vrsqrt.pop %v2822
        %v2919 = vrsqrt.pop %v2823
        %v2920 = vrsqrt.pop %v2824
        %v2921 = vrsqrt.pop %v2825
        %v2922 = vrsqrt.pop %v2826
        %v2923 = vrsqrt.pop %v2827
        %v2924 = vrsqrt.pop %v2828
        %v2925 = vrsqrt.pop %v2829
        %v2926 = vrsqrt.pop %v2830
        %v2927 = vrsqrt.pop %v2831
        %v2928 = vrsqrt.pop %v2832
        %v2929 = vrsqrt.pop %v2833
        %v2930 = vrsqrt.pop %v2834
        %v2931 = vrsqrt.pop %v2835
        %v2932 = vrsqrt.pop %v2836
        %v2933 = vrsqrt.pop %v2837
        %v2934 = vrsqrt.pop %v2838
        %v2935 = vrsqrt.pop %v2839
        %v2936 = vrsqrt.pop %v2840
        %v2937 = vrsqrt.pop %v2841
        %v2938 = vrsqrt.pop %v2842
        %v2939 = vrsqrt.pop %v2843
        %v2940 = vrsqrt.pop %v2844
        %v2941 = vrsqrt.pop %v2845
        %v2942 = vrsqrt.pop %v2846
        %v2943 = vrsqrt.pop %v2847
        %v2944 = vrsqrt.pop %v2848
        %v2945 = vrsqrt.pop %v2849
        %v2946 = vrsqrt.pop %v2850
        %v2947 = vrsqrt.pop %v2851
        %v2948 = vrsqrt.pop %v2852
        %v2949 = vrsqrt.pop %v2853
        %v2950 = vrsqrt.pop %v2854
        %v2951 = vrsqrt.pop %v2855
        %v2952 = vrsqrt.pop %v2856
        %v2953 = vrsqrt.pop %v2857
        %v2954 = vrsqrt.pop %v2858
        %v2955 = vrsqrt.pop %v2859
        %v2956 = vrsqrt.pop %v2860
        %v2957 = vrsqrt.pop %v2861
        %v2958 = vrsqrt.pop %v2862
        %v2959 = vrsqrt.pop %v2863
        %v2960 = vrsqrt.pop %v2864
        %v2961 = vrsqrt.pop %v2865
        %v2962 = vrsqrt.pop %v2866
        %v2963 = vrsqrt.pop %v2867
        %v2964 = vrsqrt.pop %v2868
        %v2965 = vrsqrt.pop %v2869
        %v2966 = vrsqrt.pop %v2870
        %v2967 = vrsqrt.pop %v2871
        %v2968 = vrsqrt.pop %v2872
        %v2969 = vrsqrt.pop %v2873
        %v2970 = vrsqrt.pop %v2874
        %v2971 = vrsqrt.pop %v2875
        %v2972 = vrsqrt.pop %v2876
        %v2973 = vrsqrt.pop %v2877
        %v2974 = vrsqrt.pop %v2878
        %v2975 = vrsqrt.pop %v2879
        %v2976 = vrsqrt.pop %v2880
        %v2977 = vrsqrt.pop %v2881
        %v2978 = vrsqrt.pop %v2882
        %v2979 = vrsqrt.pop %v2883
        %v2980 = vrsqrt.pop %v2884
        %v2981 = vrsqrt.pop %v2885
        %v2982 = vrsqrt.pop %v2886
        %v2983 = vrsqrt.pop %v2887
        %v2984 = vrsqrt.pop %v2888
        %v2985 = vmul.f32 %v2697, %v2889
        %v2986 = vmul.f32 %v2698, %v2890
        %v2987 = vmul.f32 %v2699, %v2891
        %v2988 = vmul.f32 %v2700, %v2892
        %v2989 = vmul.f32 %v2701, %v2893
        %v2990 = vmul.f32 %v2702, %v2894
        %v2991 = vmul.f32 %v2703, %v2895
        %v2992 = vmul.f32 %v2704, %v2896
        %v2993 = vmul.f32 %v2705, %v2897
        %v2994 = vmul.f32 %v2706, %v2898
        %v2995 = vmul.f32 %v2707, %v2899
        %v2996 = vmul.f32 %v2708, %v2900
        %v2997 = vmul.f32 %v2709, %v2901
        %v2998 = vmul.f32 %v2710, %v2902
        %v2999 = vmul.f32 %v2711, %v2903
        %v3000 = vmul.f32 %v2712, %v2904
        %v3001 = vmul.f32 %v2713, %v2905
        %v3002 = vmul.f32 %v2714, %v2906
        %v3003 = vmul.f32 %v2715, %v2907
        %v3004 = vmul.f32 %v2716, %v2908
        %v3005 = vmul.f32 %v2717, %v2909
        %v3006 = vmul.f32 %v2718, %v2910
        %v3007 = vmul.f32 %v2719, %v2911
        %v3008 = vmul.f32 %v2720, %v2912
        %v3009 = vmul.f32 %v2721, %v2913
        %v3010 = vmul.f32 %v2722, %v2914
        %v3011 = vmul.f32 %v2723, %v2915
        %v3012 = vmul.f32 %v2724, %v2916
        %v3013 = vmul.f32 %v2725, %v2917
        %v3014 = vmul.f32 %v2726, %v2918
        %v3015 = vmul.f32 %v2727, %v2919
        %v3016 = vmul.f32 %v2728, %v2920
        %v3017 = vmul.f32 %v2729, %v2921
        %v3018 = vmul.f32 %v2730, %v2922
        %v3019 = vmul.f32 %v2731, %v2923
        %v3020 = vmul.f32 %v2732, %v2924
        %v3021 = vmul.f32 %v2733, %v2925
        %v3022 = vmul.f32 %v2734, %v2926
        %v3023 = vmul.f32 %v2735, %v2927
        %v3024 = vmul.f32 %v2736, %v2928
        %v3025 = vmul.f32 %v2737, %v2929
        %v3026 = vmul.f32 %v2738, %v2930
        %v3027 = vmul.f32 %v2739, %v2931
        %v3028 = vmul.f32 %v2740, %v2932
        %v3029 = vmul.f32 %v2741, %v2933
        %v3030 = vmul.f32 %v2742, %v2934
        %v3031 = vmul.f32 %v2743, %v2935
        %v3032 = vmul.f32 %v2744, %v2936
        %v3033 = vmul.f32 %v2745, %v2937
        %v3034 = vmul.f32 %v2746, %v2938
        %v3035 = vmul.f32 %v2747, %v2939
        %v3036 = vmul.f32 %v2748, %v2940
        %v3037 = vmul.f32 %v2749, %v2941
        %v3038 = vmul.f32 %v2750, %v2942
        %v3039 = vmul.f32 %v2751, %v2943
        %v3040 = vmul.f32 %v2752, %v2944
        %v3041 = vmul.f32 %v2753, %v2945
        %v3042 = vmul.f32 %v2754, %v2946
        %v3043 = vmul.f32 %v2755, %v2947
        %v3044 = vmul.f32 %v2756, %v2948
        %v3045 = vmul.f32 %v2757, %v2949
        %v3046 = vmul.f32 %v2758, %v2950
        %v3047 = vmul.f32 %v2759, %v2951
        %v3048 = vmul.f32 %v2760, %v2952
        %v3049 = vmul.f32 %v2761, %v2953
        %v3050 = vmul.f32 %v2762, %v2954
        %v3051 = vmul.f32 %v2763, %v2955
        %v3052 = vmul.f32 %v2764, %v2956
        %v3053 = vmul.f32 %v2765, %v2957
        %v3054 = vmul.f32 %v2766, %v2958
        %v3055 = vmul.f32 %v2767, %v2959
        %v3056 = vmul.f32 %v2768, %v2960
        %v3057 = vmul.f32 %v2769, %v2961
        %v3058 = vmul.f32 %v2770, %v2962
        %v3059 = vmul.f32 %v2771, %v2963
        %v3060 = vmul.f32 %v2772, %v2964
        %v3061 = vmul.f32 %v2773, %v2965
        %v3062 = vmul.f32 %v2774, %v2966
        %v3063 = vmul.f32 %v2775, %v2967
        %v3064 = vmul.f32 %v2776, %v2968
        %v3065 = vmul.f32 %v2777, %v2969
        %v3066 = vmul.f32 %v2778, %v2970
        %v3067 = vmul.f32 %v2779, %v2971
        %v3068 = vmul.f32 %v2780, %v2972
        %v3069 = vmul.f32 %v2781, %v2973
        %v3070 = vmul.f32 %v2782, %v2974
        %v3071 = vmul.f32 %v2783, %v2975
        %v3072 = vmul.f32 %v2784, %v2976
        %v3073 = vmul.f32 %v2785, %v2977
        %v3074 = vmul.f32 %v2786, %v2978
        %v3075 = vmul.f32 %v2787, %v2979
        %v3076 = vmul.f32 %v2788, %v2980
        %v3077 = vmul.f32 %v2789, %v2981
        %v3078 = vmul.f32 %v2790, %v2982
        %v3079 = vmul.f32 %v2791, %v2983
        %v3080 = vmul.f32 %v2792, %v2984
        %v3081 = vld [vmem:[%s3] sm:$0xff]
        %v3082 = vld [vmem:[%s3 + $0x8] sm:$0xff]
        %v3083 = vld [vmem:[%s3 + $0x10] sm:$0xff]
        %v3084 = vld [vmem:[%s3 + $0x18] sm:$0xff]
        %v3085 = vld [vmem:[%s3 + $0x20] sm:$0xff]
        %v3086 = vld [vmem:[%s3 + $0x28] sm:$0xff]
        %v3087 = vld [vmem:[%s3 + $0x30] sm:$0xff]
        %v3088 = vld [vmem:[%s3 + $0x38] sm:$0xff]
        %v3089 = vld [vmem:[%s3 + $0x40] sm:$0xff]
        %v3090 = vld [vmem:[%s3 + $0x48] sm:$0xff]
        %v3091 = vld [vmem:[%s3 + $0x50] sm:$0xff]
        %v3092 = vld [vmem:[%s3 + $0x58] sm:$0xff]
        %v3093 = vld [vmem:[%s3 + $0x60] sm:$0xff]
        %v3094 = vld [vmem:[%s3 + $0x68] sm:$0xff]
        %v3095 = vld [vmem:[%s3 + $0x70] sm:$0xff]
        %v3096 = vld [vmem:[%s3 + $0x78] sm:$0xff]
        %v3097 = vld [vmem:[%s3 + $0x80] sm:$0xff]
        %v3098 = vld [vmem:[%s3 + $0x88] sm:$0xff]
        %v3099 = vld [vmem:[%s3 + $0x90] sm:$0xff]
        %v3100 = vld [vmem:[%s3 + $0x98] sm:$0xff]
        %v3101 = vld [vmem:[%s3 + $0xa0] sm:$0xff]
        %v3102 = vld [vmem:[%s3 + $0xa8] sm:$0xff]
        %v3103 = vld [vmem:[%s3 + $0xb0] sm:$0xff]
        %v3104 = vld [vmem:[%s3 + $0xb8] sm:$0xff]
        %v3105 = vld [vmem:[%s3 + $0xc0] sm:$0xff]
        %v3106 = vld [vmem:[%s3 + $0xc8] sm:$0xff]
        %v3107 = vld [vmem:[%s3 + $0xd0] sm:$0xff]
        %v3108 = vld [vmem:[%s3 + $0xd8] sm:$0xff]
        %v3109 = vld [vmem:[%s3 + $0xe0] sm:$0xff]
        %v3110 = vld [vmem:[%s3 + $0xe8] sm:$0xff]
        %v3111 = vld [vmem:[%s3 + $0xf0] sm:$0xff]
        %v3112 = vld [vmem:[%s3 + $0xf8] sm:$0xff]
        %v3113 = vld [vmem:[%s3 + $0x100] sm:$0xff]
        %v3114 = vld [vmem:[%s3 + $0x108] sm:$0xff]
        %v3115 = vld [vmem:[%s3 + $0x110] sm:$0xff]
        %v3116 = vld [vmem:[%s3 + $0x118] sm:$0xff]
        %v3117 = vld [vmem:[%s3 + $0x120] sm:$0xff]
        %v3118 = vld [vmem:[%s3 + $0x128] sm:$0xff]
        %v3119 = vld [vmem:[%s3 + $0x130] sm:$0xff]
        %v3120 = vld [vmem:[%s3 + $0x138] sm:$0xff]
        %v3121 = vld [vmem:[%s3 + $0x140] sm:$0xff]
        %v3122 = vld [vmem:[%s3 + $0x148] sm:$0xff]
        %v3123 = vld [vmem:[%s3 + $0x150] sm:$0xff]
        %v3124 = vld [vmem:[%s3 + $0x158] sm:$0xff]
        %v3125 = vld [vmem:[%s3 + $0x160] sm:$0xff]
        %v3126 = vld [vmem:[%s3 + $0x168] sm:$0xff]
        %v3127 = vld [vmem:[%s3 + $0x170] sm:$0xff]
        %v3128 = vld [vmem:[%s3 + $0x178] sm:$0xff]
        %v3129 = vld [vmem:[%s3 + $0x180] sm:$0xff]
        %v3130 = vld [vmem:[%s3 + $0x188] sm:$0xff]
        %v3131 = vld [vmem:[%s3 + $0x190] sm:$0xff]
        %v3132 = vld [vmem:[%s3 + $0x198] sm:$0xff]
        %v3133 = vld [vmem:[%s3 + $0x1a0] sm:$0xff]
        %v3134 = vld [vmem:[%s3 + $0x1a8] sm:$0xff]
        %v3135 = vld [vmem:[%s3 + $0x1b0] sm:$0xff]
        %v3136 = vld [vmem:[%s3 + $0x1b8] sm:$0xff]
        %v3137 = vld [vmem:[%s3 + $0x1c0] sm:$0xff]
        %v3138 = vld [vmem:[%s3 + $0x1c8] sm:$0xff]
        %v3139 = vld [vmem:[%s3 + $0x1d0] sm:$0xff]
        %v3140 = vld [vmem:[%s3 + $0x1d8] sm:$0xff]
        %v3141 = vld [vmem:[%s3 + $0x1e0] sm:$0xff]
        %v3142 = vld [vmem:[%s3 + $0x1e8] sm:$0xff]
        %v3143 = vld [vmem:[%s3 + $0x1f0] sm:$0xff]
        %v3144 = vld [vmem:[%s3 + $0x1f8] sm:$0xff]
        %v3145 = vld [vmem:[%s3 + $0x200] sm:$0xff]
        %v3146 = vld [vmem:[%s3 + $0x208] sm:$0xff]
        %v3147 = vld [vmem:[%s3 + $0x210] sm:$0xff]
        %v3148 = vld [vmem:[%s3 + $0x218] sm:$0xff]
        %v3149 = vld [vmem:[%s3 + $0x220] sm:$0xff]
        %v3150 = vld [vmem:[%s3 + $0x228] sm:$0xff]
        %v3151 = vld [vmem:[%s3 + $0x230] sm:$0xff]
        %v3152 = vld [vmem:[%s3 + $0x238] sm:$0xff]
        %v3153 = vld [vmem:[%s3 + $0x240] sm:$0xff]
        %v3154 = vld [vmem:[%s3 + $0x248] sm:$0xff]
        %v3155 = vld [vmem:[%s3 + $0x250] sm:$0xff]
        %v3156 = vld [vmem:[%s3 + $0x258] sm:$0xff]
        %v3157 = vld [vmem:[%s3 + $0x260] sm:$0xff]
        %v3158 = vld [vmem:[%s3 + $0x268] sm:$0xff]
        %v3159 = vld [vmem:[%s3 + $0x270] sm:$0xff]
        %v3160 = vld [vmem:[%s3 + $0x278] sm:$0xff]
        %v3161 = vld [vmem:[%s3 + $0x280] sm:$0xff]
        %v3162 = vld [vmem:[%s3 + $0x288] sm:$0xff]
        %v3163 = vld [vmem:[%s3 + $0x290] sm:$0xff]
        %v3164 = vld [vmem:[%s3 + $0x298] sm:$0xff]
        %v3165 = vld [vmem:[%s3 + $0x2a0] sm:$0xff]
        %v3166 = vld [vmem:[%s3 + $0x2a8] sm:$0xff]
        %v3167 = vld [vmem:[%s3 + $0x2b0] sm:$0xff]
        %v3168 = vld [vmem:[%s3 + $0x2b8] sm:$0xff]
        %v3169 = vld [vmem:[%s3 + $0x2c0] sm:$0xff]
        %v3170 = vld [vmem:[%s3 + $0x2c8] sm:$0xff]
        %v3171 = vld [vmem:[%s3 + $0x2d0] sm:$0xff]
        %v3172 = vld [vmem:[%s3 + $0x2d8] sm:$0xff]
        %v3173 = vld [vmem:[%s3 + $0x2e0] sm:$0xff]
        %v3174 = vld [vmem:[%s3 + $0x2e8] sm:$0xff]
        %v3175 = vld [vmem:[%s3 + $0x2f0] sm:$0xff]
        %v3176 = vld [vmem:[%s3 + $0x2f8] sm:$0xff]
        %v3177 = vmul.f32 %v1833, %v2985
        %v3178 = vmul.f32 %v1834, %v2986
        %v3179 = vmul.f32 %v1835, %v2987
        %v3180 = vmul.f32 %v1836, %v2988
        %v3181 = vmul.f32 %v1837, %v2989
        %v3182 = vmul.f32 %v1838, %v2990
        %v3183 = vmul.f32 %v1839, %v2991
        %v3184 = vmul.f32 %v1840, %v2992
        %v3185 = vmul.f32 %v1841, %v2993
        %v3186 = vmul.f32 %v1842, %v2994
        %v3187 = vmul.f32 %v1843, %v2995
        %v3188 = vmul.f32 %v1844, %v2996
        %v3189 = vmul.f32 %v1845, %v2997
        %v3190 = vmul.f32 %v1846, %v2998
        %v3191 = vmul.f32 %v1847, %v2999
        %v3192 = vmul.f32 %v1848, %v3000
        %v3193 = vmul.f32 %v1849, %v3001
        %v3194 = vmul.f32 %v1850, %v3002
        %v3195 = vmul.f32 %v1851, %v3003
        %v3196 = vmul.f32 %v1852, %v3004
        %v3197 = vmul.f32 %v1853, %v3005
        %v3198 = vmul.f32 %v1854, %v3006
        %v3199 = vmul.f32 %v1855, %v3007
        %v3200 = vmul.f32 %v1856, %v3008
        %v3201 = vmul.f32 %v1857, %v3009
        %v3202 = vmul.f32 %v1858, %v3010
        %v3203 = vmul.f32 %v1859, %v3011
        %v3204 = vmul.f32 %v1860, %v3012
        %v3205 = vmul.f32 %v1861, %v3013
        %v3206 = vmul.f32 %v1862, %v3014
        %v3207 = vmul.f32 %v1863, %v3015
        %v3208 = vmul.f32 %v1864, %v3016
        %v3209 = vmul.f32 %v1865, %v3017
        %v3210 = vmul.f32 %v1866, %v3018
        %v3211 = vmul.f32 %v1867, %v3019
        %v3212 = vmul.f32 %v1868, %v3020
        %v3213 = vmul.f32 %v1869, %v3021
        %v3214 = vmul.f32 %v1870, %v3022
        %v3215 = vmul.f32 %v1871, %v3023
        %v3216 = vmul.f32 %v1872, %v3024
        %v3217 = vmul.f32 %v1873, %v3025
        %v3218 = vmul.f32 %v1874, %v3026
        %v3219 = vmul.f32 %v1875, %v3027
        %v3220 = vmul.f32 %v1876, %v3028
        %v3221 = vmul.f32 %v1877, %v3029
        %v3222 = vmul.f32 %v1878, %v3030
        %v3223 = vmul.f32 %v1879, %v3031
        %v3224 = vmul.f32 %v1880, %v3032
        %v3225 = vmul.f32 %v1881, %v3033
        %v3226 = vmul.f32 %v1882, %v3034
        %v3227 = vmul.f32 %v1883, %v3035
        %v3228 = vmul.f32 %v1884, %v3036
        %v3229 = vmul.f32 %v1885, %v3037
        %v3230 = vmul.f32 %v1886, %v3038
        %v3231 = vmul.f32 %v1887, %v3039
        %v3232 = vmul.f32 %v1888, %v3040
        %v3233 = vmul.f32 %v1889, %v3041
        %v3234 = vmul.f32 %v1890, %v3042
        %v3235 = vmul.f32 %v1891, %v3043
        %v3236 = vmul.f32 %v1892, %v3044
        %v3237 = vmul.f32 %v1893, %v3045
        %v3238 = vmul.f32 %v1894, %v3046
        %v3239 = vmul.f32 %v1895, %v3047
        %v3240 = vmul.f32 %v1896, %v3048
        %v3241 = vmul.f32 %v1897, %v3049
        %v3242 = vmul.f32 %v1898, %v3050
        %v3243 = vmul.f32 %v1899, %v3051
        %v3244 = vmul.f32 %v1900, %v3052
        %v3245 = vmul.f32 %v1901, %v3053
        %v3246 = vmul.f32 %v1902, %v3054
        %v3247 = vmul.f32 %v1903, %v3055
        %v3248 = vmul.f32 %v1904, %v3056
        %v3249 = vmul.f32 %v1905, %v3057
        %v3250 = vmul.f32 %v1906, %v3058
        %v3251 = vmul.f32 %v1907, %v3059
        %v3252 = vmul.f32 %v1908, %v3060
        %v3253 = vmul.f32 %v1909, %v3061
        %v3254 = vmul.f32 %v1910, %v3062
        %v3255 = vmul.f32 %v1911, %v3063
        %v3256 = vmul.f32 %v1912, %v3064
        %v3257 = vmul.f32 %v1913, %v3065
        %v3258 = vmul.f32 %v1914, %v3066
        %v3259 = vmul.f32 %v1915, %v3067
        %v3260 = vmul.f32 %v1916, %v3068
        %v3261 = vmul.f32 %v1917, %v3069
        %v3262 = vmul.f32 %v1918, %v3070
        %v3263 = vmul.f32 %v1919, %v3071
        %v3264 = vmul.f32 %v1920, %v3072
        %v3265 = vmul.f32 %v1921, %v3073
        %v3266 = vmul.f32 %v1922, %v3074
        %v3267 = vmul.f32 %v1923, %v3075
        %v3268 = vmul.f32 %v1924, %v3076
        %v3269 = vmul.f32 %v1925, %v3077
        %v3270 = vmul.f32 %v1926, %v3078
        %v3271 = vmul.f32 %v1927, %v3079
        %v3272 = vmul.f32 %v1928, %v3080
        %v3273 = vsub.f32 %v3081, %v3177
        %v3274 = vsub.f32 %v3082, %v3178
        %v3275 = vsub.f32 %v3083, %v3179
        %v3276 = vsub.f32 %v3084, %v3180
        %v3277 = vsub.f32 %v3085, %v3181
        %v3278 = vsub.f32 %v3086, %v3182
        %v3279 = vsub.f32 %v3087, %v3183
        %v3280 = vsub.f32 %v3088, %v3184
        %v3281 = vsub.f32 %v3089, %v3185
        %v3282 = vsub.f32 %v3090, %v3186
        %v3283 = vsub.f32 %v3091, %v3187
        %v3284 = vsub.f32 %v3092, %v3188
        %v3285 = vsub.f32 %v3093, %v3189
        %v3286 = vsub.f32 %v3094, %v3190
        %v3287 = vsub.f32 %v3095, %v3191
        %v3288 = vsub.f32 %v3096, %v3192
        %v3289 = vsub.f32 %v3097, %v3193
        %v3290 = vsub.f32 %v3098, %v3194
        %v3291 = vsub.f32 %v3099, %v3195
        %v3292 = vsub.f32 %v3100, %v3196
        %v3293 = vsub.f32 %v3101, %v3197
        %v3294 = vsub.f32 %v3102, %v3198
        %v3295 = vsub.f32 %v3103, %v3199
        %v3296 = vsub.f32 %v3104, %v3200
        %v3297 = vsub.f32 %v3105, %v3201
        %v3298 = vsub.f32 %v3106, %v3202
        %v3299 = vsub.f32 %v3107, %v3203
        %v3300 = vsub.f32 %v3108, %v3204
        %v3301 = vsub.f32 %v3109, %v3205
        %v3302 = vsub.f32 %v3110, %v3206
        %v3303 = vsub.f32 %v3111, %v3207
        %v3304 = vsub.f32 %v3112, %v3208
        %v3305 = vsub.f32 %v3113, %v3209
        %v3306 = vsub.f32 %v3114, %v3210
        %v3307 = vsub.f32 %v3115, %v3211
        %v3308 = vsub.f32 %v3116, %v3212
        %v3309 = vsub.f32 %v3117, %v3213
        %v3310 = vsub.f32 %v3118, %v3214
        %v3311 = vsub.f32 %v3119, %v3215
        %v3312 = vsub.f32 %v3120, %v3216
        %v3313 = vsub.f32 %v3121, %v3217
        %v3314 = vsub.f32 %v3122, %v3218
        %v3315 = vsub.f32 %v3123, %v3219
        %v3316 = vsub.f32 %v3124, %v3220
        %v3317 = vsub.f32 %v3125, %v3221
        %v3318 = vsub.f32 %v3126, %v3222
        %v3319 = vsub.f32 %v3127, %v3223
        %v3320 = vsub.f32 %v3128, %v3224
        %v3321 = vsub.f32 %v3129, %v3225
        %v3322 = vsub.f32 %v3130, %v3226
        %v3323 = vsub.f32 %v3131, %v3227
        %v3324 = vsub.f32 %v3132, %v3228
        %v3325 = vsub.f32 %v3133, %v3229
        %v3326 = vsub.f32 %v3134, %v3230
        %v3327 = vsub.f32 %v3135, %v3231
        %v3328 = vsub.f32 %v3136, %v3232
        %v3329 = vsub.f32 %v3137, %v3233
        %v3330 = vsub.f32 %v3138, %v3234
        %v3331 = vsub.f32 %v3139, %v3235
        %v3332 = vsub.f32 %v3140, %v3236
        %v3333 = vsub.f32 %v3141, %v3237
        %v3334 = vsub.f32 %v3142, %v3238
        %v3335 = vsub.f32 %v3143, %v3239
        %v3336 = vsub.f32 %v3144, %v3240
        %v3337 = vsub.f32 %v3145, %v3241
        %v3338 = vsub.f32 %v3146, %v3242
        %v3339 = vsub.f32 %v3147, %v3243
        %v3340 = vsub.f32 %v3148, %v3244
        %v3341 = vsub.f32 %v3149, %v3245
        %v3342 = vsub.f32 %v3150, %v3246
        %v3343 = vsub.f32 %v3151, %v3247
        %v3344 = vsub.f32 %v3152, %v3248
        %v3345 = vsub.f32 %v3153, %v3249
        %v3346 = vsub.f32 %v3154, %v3250
        %v3347 = vsub.f32 %v3155, %v3251
        %v3348 = vsub.f32 %v3156, %v3252
        %v3349 = vsub.f32 %v3157, %v3253
        %v3350 = vsub.f32 %v3158, %v3254
        %v3351 = vsub.f32 %v3159, %v3255
        %v3352 = vsub.f32 %v3160, %v3256
        %v3353 = vsub.f32 %v3161, %v3257
        %v3354 = vsub.f32 %v3162, %v3258
        %v3355 = vsub.f32 %v3163, %v3259
        %v3356 = vsub.f32 %v3164, %v3260
        %v3357 = vsub.f32 %v3165, %v3261
        %v3358 = vsub.f32 %v3166, %v3262
        %v3359 = vsub.f32 %v3167, %v3263
        %v3360 = vsub.f32 %v3168, %v3264
        %v3361 = vsub.f32 %v3169, %v3265
        %v3362 = vsub.f32 %v3170, %v3266
        %v3363 = vsub.f32 %v3171, %v3267
        %v3364 = vsub.f32 %v3172, %v3268
        %v3365 = vsub.f32 %v3173, %v3269
        %v3366 = vsub.f32 %v3174, %v3270
        %v3367 = vsub.f32 %v3175, %v3271
        %v3368 = vsub.f32 %v3176, %v3272
        %3370 = vset.pattern.permute.xlu0 0
        %3371 = vperm.xlu0 %3370, %v2985
        %v3372 = vpop.permute.xlu0 %3371
        %3375 = vset.pattern.permute.xlu0 0
        %3376 = vperm.xlu0 %3375, %v2986
        %v3377 = vpop.permute.xlu0 %3376
        %3380 = vset.pattern.permute.xlu0 0
        %3381 = vperm.xlu0 %3380, %v2987
        %v3382 = vpop.permute.xlu0 %3381
        %3385 = vset.pattern.permute.xlu0 0
        %3386 = vperm.xlu0 %3385, %v2988
        %v3387 = vpop.permute.xlu0 %3386
        %3390 = vset.pattern.permute.xlu0 0
        %3391 = vperm.xlu0 %3390, %v2989
        %v3392 = vpop.permute.xlu0 %3391
        %3395 = vset.pattern.permute.xlu0 0
        %3396 = vperm.xlu0 %3395, %v2990
        %v3397 = vpop.permute.xlu0 %3396
        %3400 = vset.pattern.permute.xlu0 0
        %3401 = vperm.xlu0 %3400, %v2991
        %v3402 = vpop.permute.xlu0 %3401
        %3405 = vset.pattern.permute.xlu0 0
        %3406 = vperm.xlu0 %3405, %v2992
        %v3407 = vpop.permute.xlu0 %3406
        %3410 = vset.pattern.permute.xlu0 0
        %3411 = vperm.xlu0 %3410, %v2993
        %v3412 = vpop.permute.xlu0 %3411
        %3415 = vset.pattern.permute.xlu0 0
        %3416 = vperm.xlu0 %3415, %v2994
        %v3417 = vpop.permute.xlu0 %3416
        %3420 = vset.pattern.permute.xlu0 0
        %3421 = vperm.xlu0 %3420, %v2995
        %v3422 = vpop.permute.xlu0 %3421
        %3425 = vset.pattern.permute.xlu0 0
        %3426 = vperm.xlu0 %3425, %v2996
        %v3427 = vpop.permute.xlu0 %3426
        %3430 = vset.pattern.permute.xlu0 0
        %3431 = vperm.xlu0 %3430, %v2997
        %v3432 = vpop.permute.xlu0 %3431
        %3435 = vset.pattern.permute.xlu0 0
        %3436 = vperm.xlu0 %3435, %v2998
        %v3437 = vpop.permute.xlu0 %3436
        %3440 = vset.pattern.permute.xlu0 0
        %3441 = vperm.xlu0 %3440, %v2999
        %v3442 = vpop.permute.xlu0 %3441
        %3445 = vset.pattern.permute.xlu0 0
        %3446 = vperm.xlu0 %3445, %v3000
        %v3447 = vpop.permute.xlu0 %3446
        %3450 = vset.pattern.permute.xlu0 0
        %3451 = vperm.xlu0 %3450, %v3001
        %v3452 = vpop.permute.xlu0 %3451
        %3455 = vset.pattern.permute.xlu0 0
        %3456 = vperm.xlu0 %3455, %v3002
        %v3457 = vpop.permute.xlu0 %3456
        %3460 = vset.pattern.permute.xlu0 0
        %3461 = vperm.xlu0 %3460, %v3003
        %v3462 = vpop.permute.xlu0 %3461
        %3465 = vset.pattern.permute.xlu0 0
        %3466 = vperm.xlu0 %3465, %v3004
        %v3467 = vpop.permute.xlu0 %3466
        %3470 = vset.pattern.permute.xlu0 0
        %3471 = vperm.xlu0 %3470, %v3005
        %v3472 = vpop.permute.xlu0 %3471
        %3475 = vset.pattern.permute.xlu0 0
        %3476 = vperm.xlu0 %3475, %v3006
        %v3477 = vpop.permute.xlu0 %3476
        %3480 = vset.pattern.permute.xlu0 0
        %3481 = vperm.xlu0 %3480, %v3007
        %v3482 = vpop.permute.xlu0 %3481
        %3485 = vset.pattern.permute.xlu0 0
        %3486 = vperm.xlu0 %3485, %v3008
        %v3487 = vpop.permute.xlu0 %3486
        %3490 = vset.pattern.permute.xlu0 0
        %3491 = vperm.xlu0 %3490, %v3009
        %v3492 = vpop.permute.xlu0 %3491
        %3495 = vset.pattern.permute.xlu0 0
        %3496 = vperm.xlu0 %3495, %v3010
        %v3497 = vpop.permute.xlu0 %3496
        %3500 = vset.pattern.permute.xlu0 0
        %3501 = vperm.xlu0 %3500, %v3011
        %v3502 = vpop.permute.xlu0 %3501
        %3505 = vset.pattern.permute.xlu0 0
        %3506 = vperm.xlu0 %3505, %v3012
        %v3507 = vpop.permute.xlu0 %3506
        %3510 = vset.pattern.permute.xlu0 0
        %3511 = vperm.xlu0 %3510, %v3013
        %v3512 = vpop.permute.xlu0 %3511
        %3515 = vset.pattern.permute.xlu0 0
        %3516 = vperm.xlu0 %3515, %v3014
        %v3517 = vpop.permute.xlu0 %3516
        %3520 = vset.pattern.permute.xlu0 0
        %3521 = vperm.xlu0 %3520, %v3015
        %v3522 = vpop.permute.xlu0 %3521
        %3525 = vset.pattern.permute.xlu0 0
        %3526 = vperm.xlu0 %3525, %v3016
        %v3527 = vpop.permute.xlu0 %3526
        %3530 = vset.pattern.permute.xlu0 0
        %3531 = vperm.xlu0 %3530, %v3017
        %v3532 = vpop.permute.xlu0 %3531
        %3535 = vset.pattern.permute.xlu0 0
        %3536 = vperm.xlu0 %3535, %v3018
        %v3537 = vpop.permute.xlu0 %3536
        %3540 = vset.pattern.permute.xlu0 0
        %3541 = vperm.xlu0 %3540, %v3019
        %v3542 = vpop.permute.xlu0 %3541
        %3545 = vset.pattern.permute.xlu0 0
        %3546 = vperm.xlu0 %3545, %v3020
        %v3547 = vpop.permute.xlu0 %3546
        %3550 = vset.pattern.permute.xlu0 0
        %3551 = vperm.xlu0 %3550, %v3021
        %v3552 = vpop.permute.xlu0 %3551
        %3555 = vset.pattern.permute.xlu0 0
        %3556 = vperm.xlu0 %3555, %v3022
        %v3557 = vpop.permute.xlu0 %3556
        %3560 = vset.pattern.permute.xlu0 0
        %3561 = vperm.xlu0 %3560, %v3023
        %v3562 = vpop.permute.xlu0 %3561
        %3565 = vset.pattern.permute.xlu0 0
        %3566 = vperm.xlu0 %3565, %v3024
        %v3567 = vpop.permute.xlu0 %3566
        %3570 = vset.pattern.permute.xlu0 0
        %3571 = vperm.xlu0 %3570, %v3025
        %v3572 = vpop.permute.xlu0 %3571
        %3575 = vset.pattern.permute.xlu0 0
        %3576 = vperm.xlu0 %3575, %v3026
        %v3577 = vpop.permute.xlu0 %3576
        %3580 = vset.pattern.permute.xlu0 0
        %3581 = vperm.xlu0 %3580, %v3027
        %v3582 = vpop.permute.xlu0 %3581
        %3585 = vset.pattern.permute.xlu0 0
        %3586 = vperm.xlu0 %3585, %v3028
        %v3587 = vpop.permute.xlu0 %3586
        %3590 = vset.pattern.permute.xlu0 0
        %3591 = vperm.xlu0 %3590, %v3029
        %v3592 = vpop.permute.xlu0 %3591
        %3595 = vset.pattern.permute.xlu0 0
        %3596 = vperm.xlu0 %3595, %v3030
        %v3597 = vpop.permute.xlu0 %3596
        %3600 = vset.pattern.permute.xlu0 0
        %3601 = vperm.xlu0 %3600, %v3031
        %v3602 = vpop.permute.xlu0 %3601
        %3605 = vset.pattern.permute.xlu0 0
        %3606 = vperm.xlu0 %3605, %v3032
        %v3607 = vpop.permute.xlu0 %3606
        %3610 = vset.pattern.permute.xlu0 0
        %3611 = vperm.xlu0 %3610, %v3033
        %v3612 = vpop.permute.xlu0 %3611
        %3615 = vset.pattern.permute.xlu0 0
        %3616 = vperm.xlu0 %3615, %v3034
        %v3617 = vpop.permute.xlu0 %3616
        %3620 = vset.pattern.permute.xlu0 0
        %3621 = vperm.xlu0 %3620, %v3035
        %v3622 = vpop.permute.xlu0 %3621
        %3625 = vset.pattern.permute.xlu0 0
        %3626 = vperm.xlu0 %3625, %v3036
        %v3627 = vpop.permute.xlu0 %3626
        %3630 = vset.pattern.permute.xlu0 0
        %3631 = vperm.xlu0 %3630, %v3037
        %v3632 = vpop.permute.xlu0 %3631
        %3635 = vset.pattern.permute.xlu0 0
        %3636 = vperm.xlu0 %3635, %v3038
        %v3637 = vpop.permute.xlu0 %3636
        %3640 = vset.pattern.permute.xlu0 0
        %3641 = vperm.xlu0 %3640, %v3039
        %v3642 = vpop.permute.xlu0 %3641
        %3645 = vset.pattern.permute.xlu0 0
        %3646 = vperm.xlu0 %3645, %v3040
        %v3647 = vpop.permute.xlu0 %3646
        %3650 = vset.pattern.permute.xlu0 0
        %3651 = vperm.xlu0 %3650, %v3041
        %v3652 = vpop.permute.xlu0 %3651
        %3655 = vset.pattern.permute.xlu0 0
        %3656 = vperm.xlu0 %3655, %v3042
        %v3657 = vpop.permute.xlu0 %3656
        %3660 = vset.pattern.permute.xlu0 0
        %3661 = vperm.xlu0 %3660, %v3043
        %v3662 = vpop.permute.xlu0 %3661
        %3665 = vset.pattern.permute.xlu0 0
        %3666 = vperm.xlu0 %3665, %v3044
        %v3667 = vpop.permute.xlu0 %3666
        %3670 = vset.pattern.permute.xlu0 0
        %3671 = vperm.xlu0 %3670, %v3045
        %v3672 = vpop.permute.xlu0 %3671
        %3675 = vset.pattern.permute.xlu0 0
        %3676 = vperm.xlu0 %3675, %v3046
        %v3677 = vpop.permute.xlu0 %3676
        %3680 = vset.pattern.permute.xlu0 0
        %3681 = vperm.xlu0 %3680, %v3047
        %v3682 = vpop.permute.xlu0 %3681
        %3685 = vset.pattern.permute.xlu0 0
        %3686 = vperm.xlu0 %3685, %v3048
        %v3687 = vpop.permute.xlu0 %3686
        %3690 = vset.pattern.permute.xlu0 0
        %3691 = vperm.xlu0 %3690, %v3049
        %v3692 = vpop.permute.xlu0 %3691
        %3695 = vset.pattern.permute.xlu0 0
        %3696 = vperm.xlu0 %3695, %v3050
        %v3697 = vpop.permute.xlu0 %3696
        %3700 = vset.pattern.permute.xlu0 0
        %3701 = vperm.xlu0 %3700, %v3051
        %v3702 = vpop.permute.xlu0 %3701
        %3705 = vset.pattern.permute.xlu0 0
        %3706 = vperm.xlu0 %3705, %v3052
        %v3707 = vpop.permute.xlu0 %3706
        %3710 = vset.pattern.permute.xlu0 0
        %3711 = vperm.xlu0 %3710, %v3053
        %v3712 = vpop.permute.xlu0 %3711
        %3715 = vset.pattern.permute.xlu0 0
        %3716 = vperm.xlu0 %3715, %v3054
        %v3717 = vpop.permute.xlu0 %3716
        %3720 = vset.pattern.permute.xlu0 0
        %3721 = vperm.xlu0 %3720, %v3055
        %v3722 = vpop.permute.xlu0 %3721
        %3725 = vset.pattern.permute.xlu0 0
        %3726 = vperm.xlu0 %3725, %v3056
        %v3727 = vpop.permute.xlu0 %3726
        %3730 = vset.pattern.permute.xlu0 0
        %3731 = vperm.xlu0 %3730, %v3057
        %v3732 = vpop.permute.xlu0 %3731
        %3735 = vset.pattern.permute.xlu0 0
        %3736 = vperm.xlu0 %3735, %v3058
        %v3737 = vpop.permute.xlu0 %3736
        %3740 = vset.pattern.permute.xlu0 0
        %3741 = vperm.xlu0 %3740, %v3059
        %v3742 = vpop.permute.xlu0 %3741
        %3745 = vset.pattern.permute.xlu0 0
        %3746 = vperm.xlu0 %3745, %v3060
        %v3747 = vpop.permute.xlu0 %3746
        %3750 = vset.pattern.permute.xlu0 0
        %3751 = vperm.xlu0 %3750, %v3061
        %v3752 = vpop.permute.xlu0 %3751
        %3755 = vset.pattern.permute.xlu0 0
        %3756 = vperm.xlu0 %3755, %v3062
        %v3757 = vpop.permute.xlu0 %3756
        %3760 = vset.pattern.permute.xlu0 0
        %3761 = vperm.xlu0 %3760, %v3063
        %v3762 = vpop.permute.xlu0 %3761
        %3765 = vset.pattern.permute.xlu0 0
        %3766 = vperm.xlu0 %3765, %v3064
        %v3767 = vpop.permute.xlu0 %3766
        %3770 = vset.pattern.permute.xlu0 0
        %3771 = vperm.xlu0 %3770, %v3065
        %v3772 = vpop.permute.xlu0 %3771
        %3775 = vset.pattern.permute.xlu0 0
        %3776 = vperm.xlu0 %3775, %v3066
        %v3777 = vpop.permute.xlu0 %3776
        %3780 = vset.pattern.permute.xlu0 0
        %3781 = vperm.xlu0 %3780, %v3067
        %v3782 = vpop.permute.xlu0 %3781
        %3785 = vset.pattern.permute.xlu0 0
        %3786 = vperm.xlu0 %3785, %v3068
        %v3787 = vpop.permute.xlu0 %3786
        %3790 = vset.pattern.permute.xlu0 0
        %3791 = vperm.xlu0 %3790, %v3069
        %v3792 = vpop.permute.xlu0 %3791
        %3795 = vset.pattern.permute.xlu0 0
        %3796 = vperm.xlu0 %3795, %v3070
        %v3797 = vpop.permute.xlu0 %3796
        %3800 = vset.pattern.permute.xlu0 0
        %3801 = vperm.xlu0 %3800, %v3071
        %v3802 = vpop.permute.xlu0 %3801
        %3805 = vset.pattern.permute.xlu0 0
        %3806 = vperm.xlu0 %3805, %v3072
        %v3807 = vpop.permute.xlu0 %3806
        %3810 = vset.pattern.permute.xlu0 0
        %3811 = vperm.xlu0 %3810, %v3073
        %v3812 = vpop.permute.xlu0 %3811
        %3815 = vset.pattern.permute.xlu0 0
        %3816 = vperm.xlu0 %3815, %v3074
        %v3817 = vpop.permute.xlu0 %3816
        %3820 = vset.pattern.permute.xlu0 0
        %3821 = vperm.xlu0 %3820, %v3075
        %v3822 = vpop.permute.xlu0 %3821
        %3825 = vset.pattern.permute.xlu0 0
        %3826 = vperm.xlu0 %3825, %v3076
        %v3827 = vpop.permute.xlu0 %3826
        %3830 = vset.pattern.permute.xlu0 0
        %3831 = vperm.xlu0 %3830, %v3077
        %v3832 = vpop.permute.xlu0 %3831
        %3835 = vset.pattern.permute.xlu0 0
        %3836 = vperm.xlu0 %3835, %v3078
        %v3837 = vpop.permute.xlu0 %3836
        %3840 = vset.pattern.permute.xlu0 0
        %3841 = vperm.xlu0 %3840, %v3079
        %v3842 = vpop.permute.xlu0 %3841
        %3845 = vset.pattern.permute.xlu0 0
        %3846 = vperm.xlu0 %3845, %v3080
        %v3847 = vpop.permute.xlu0 %3846
        %v3849 = vmul.f32 %v1067, %v3372
        %v3850 = vmul.f32 %v1069, %v3372
        %v3851 = vmul.f32 %v1071, %v3377
        %v3852 = vmul.f32 %v1073, %v3377
        %v3853 = vmul.f32 %v1077, %v3382
        %v3854 = vmul.f32 %v1079, %v3382
        %v3855 = vmul.f32 %v1081, %v3387
        %v3856 = vmul.f32 %v1083, %v3387
        %v3857 = vmul.f32 %v1087, %v3392
        %v3858 = vmul.f32 %v1089, %v3392
        %v3859 = vmul.f32 %v1091, %v3397
        %v3860 = vmul.f32 %v1093, %v3397
        %v3861 = vmul.f32 %v1097, %v3402
        %v3862 = vmul.f32 %v1099, %v3402
        %v3863 = vmul.f32 %v1101, %v3407
        %v3864 = vmul.f32 %v1103, %v3407
        %v3865 = vmul.f32 %v1107, %v3412
        %v3866 = vmul.f32 %v1109, %v3412
        %v3867 = vmul.f32 %v1111, %v3417
        %v3868 = vmul.f32 %v1113, %v3417
        %v3869 = vmul.f32 %v1117, %v3422
        %v3870 = vmul.f32 %v1119, %v3422
        %v3871 = vmul.f32 %v1121, %v3427
        %v3872 = vmul.f32 %v1123, %v3427
        %v3873 = vmul.f32 %v1127, %v3432
        %v3874 = vmul.f32 %v1129, %v3432
        %v3875 = vmul.f32 %v1131, %v3437
        %v3876 = vmul.f32 %v1133, %v3437
        %v3877 = vmul.f32 %v1137, %v3442
        %v3878 = vmul.f32 %v1139, %v3442
        %v3879 = vmul.f32 %v1141, %v3447
        %v3880 = vmul.f32 %v1143, %v3447
        %v3881 = vmul.f32 %v1147, %v3452
        %v3882 = vmul.f32 %v1149, %v3452
        %v3883 = vmul.f32 %v1151, %v3457
        %v3884 = vmul.f32 %v1153, %v3457
        %v3885 = vmul.f32 %v1157, %v3462
        %v3886 = vmul.f32 %v1159, %v3462
        %v3887 = vmul.f32 %v1161, %v3467
        %v3888 = vmul.f32 %v1163, %v3467
        %v3889 = vmul.f32 %v1167, %v3472
        %v3890 = vmul.f32 %v1169, %v3472
        %v3891 = vmul.f32 %v1171, %v3477
        %v3892 = vmul.f32 %v1173, %v3477
        %v3893 = vmul.f32 %v1177, %v3482
        %v3894 = vmul.f32 %v1179, %v3482
        %v3895 = vmul.f32 %v1181, %v3487
        %v3896 = vmul.f32 %v1183, %v3487
        %v3897 = vmul.f32 %v1187, %v3492
        %v3898 = vmul.f32 %v1189, %v3492
        %v3899 = vmul.f32 %v1191, %v3497
        %v3900 = vmul.f32 %v1193, %v3497
        %v3901 = vmul.f32 %v1197, %v3502
        %v3902 = vmul.f32 %v1199, %v3502
        %v3903 = vmul.f32 %v1201, %v3507
        %v3904 = vmul.f32 %v1203, %v3507
        %v3905 = vmul.f32 %v1207, %v3512
        %v3906 = vmul.f32 %v1209, %v3512
        %v3907 = vmul.f32 %v1211, %v3517
        %v3908 = vmul.f32 %v1213, %v3517
        %v3909 = vmul.f32 %v1217, %v3522
        %v3910 = vmul.f32 %v1219, %v3522
        %v3911 = vmul.f32 %v1221, %v3527
        %v3912 = vmul.f32 %v1223, %v3527
        %v3913 = vmul.f32 %v1227, %v3532
        %v3914 = vmul.f32 %v1229, %v3532
        %v3915 = vmul.f32 %v1231, %v3537
        %v3916 = vmul.f32 %v1233, %v3537
        %v3917 = vmul.f32 %v1237, %v3542
        %v3918 = vmul.f32 %v1239, %v3542
        %v3919 = vmul.f32 %v1241, %v3547
        %v3920 = vmul.f32 %v1243, %v3547
        %v3921 = vmul.f32 %v1247, %v3552
        %v3922 = vmul.f32 %v1249, %v3552
        %v3923 = vmul.f32 %v1251, %v3557
        %v3924 = vmul.f32 %v1253, %v3557
        %v3925 = vmul.f32 %v1257, %v3562
        %v3926 = vmul.f32 %v1259, %v3562
        %v3927 = vmul.f32 %v1261, %v3567
        %v3928 = vmul.f32 %v1263, %v3567
        %v3929 = vmul.f32 %v1267, %v3572
        %v3930 = vmul.f32 %v1269, %v3572
        %v3931 = vmul.f32 %v1271, %v3577
        %v3932 = vmul.f32 %v1273, %v3577
        %v3933 = vmul.f32 %v1277, %v3582
        %v3934 = vmul.f32 %v1279, %v3582
        %v3935 = vmul.f32 %v1281, %v3587
        %v3936 = vmul.f32 %v1283, %v3587
        %v3937 = vmul.f32 %v1287, %v3592
        %v3938 = vmul.f32 %v1289, %v3592
        %v3939 = vmul.f32 %v1291, %v3597
        %v3940 = vmul.f32 %v1293, %v3597
        %v3941 = vmul.f32 %v1297, %v3602
        %v3942 = vmul.f32 %v1299, %v3602
        %v3943 = vmul.f32 %v1301, %v3607
        %v3944 = vmul.f32 %v1303, %v3607
        %v3945 = vmul.f32 %v1307, %v3612
        %v3946 = vmul.f32 %v1309, %v3612
        %v3947 = vmul.f32 %v1311, %v3617
        %v3948 = vmul.f32 %v1313, %v3617
        %v3949 = vmul.f32 %v1317, %v3622
        %v3950 = vmul.f32 %v1319, %v3622
        %v3951 = vmul.f32 %v1321, %v3627
        %v3952 = vmul.f32 %v1323, %v3627
        %v3953 = vmul.f32 %v1327, %v3632
        %v3954 = vmul.f32 %v1329, %v3632
        %v3955 = vmul.f32 %v1331, %v3637
        %v3956 = vmul.f32 %v1333, %v3637
        %v3957 = vmul.f32 %v1337, %v3642
        %v3958 = vmul.f32 %v1339, %v3642
        %v3959 = vmul.f32 %v1341, %v3647
        %v3960 = vmul.f32 %v1343, %v3647
        %v3961 = vmul.f32 %v1347, %v3652
        %v3962 = vmul.f32 %v1349, %v3652
        %v3963 = vmul.f32 %v1351, %v3657
        %v3964 = vmul.f32 %v1353, %v3657
        %v3965 = vmul.f32 %v1357, %v3662
        %v3966 = vmul.f32 %v1359, %v3662
        %v3967 = vmul.f32 %v1361, %v3667
        %v3968 = vmul.f32 %v1363, %v3667
        %v3969 = vmul.f32 %v1367, %v3672
        %v3970 = vmul.f32 %v1369, %v3672
        %v3971 = vmul.f32 %v1371, %v3677
        %v3972 = vmul.f32 %v1373, %v3677
        %v3973 = vmul.f32 %v1377, %v3682
        %v3974 = vmul.f32 %v1379, %v3682
        %v3975 = vmul.f32 %v1381, %v3687
        %v3976 = vmul.f32 %v1383, %v3687
        %v3977 = vmul.f32 %v1387, %v3692
        %v3978 = vmul.f32 %v1389, %v3692
        %v3979 = vmul.f32 %v1391, %v3697
        %v3980 = vmul.f32 %v1393, %v3697
        %v3981 = vmul.f32 %v1397, %v3702
        %v3982 = vmul.f32 %v1399, %v3702
        %v3983 = vmul.f32 %v1401, %v3707
        %v3984 = vmul.f32 %v1403, %v3707
        %v3985 = vmul.f32 %v1407, %v3712
        %v3986 = vmul.f32 %v1409, %v3712
        %v3987 = vmul.f32 %v1411, %v3717
        %v3988 = vmul.f32 %v1413, %v3717
        %v3989 = vmul.f32 %v1417, %v3722
        %v3990 = vmul.f32 %v1419, %v3722
        %v3991 = vmul.f32 %v1421, %v3727
        %v3992 = vmul.f32 %v1423, %v3727
        %v3993 = vmul.f32 %v1427, %v3732
        %v3994 = vmul.f32 %v1429, %v3732
        %v3995 = vmul.f32 %v1431, %v3737
        %v3996 = vmul.f32 %v1433, %v3737
        %v3997 = vmul.f32 %v1437, %v3742
        %v3998 = vmul.f32 %v1439, %v3742
        %v3999 = vmul.f32 %v1441, %v3747
        %v4000 = vmul.f32 %v1443, %v3747
        %v4001 = vmul.f32 %v1447, %v3752
        %v4002 = vmul.f32 %v1449, %v3752
        %v4003 = vmul.f32 %v1451, %v3757
        %v4004 = vmul.f32 %v1453, %v3757
        %v4005 = vmul.f32 %v1457, %v3762
        %v4006 = vmul.f32 %v1459, %v3762
        %v4007 = vmul.f32 %v1461, %v3767
        %v4008 = vmul.f32 %v1463, %v3767
        %v4009 = vmul.f32 %v1467, %v3772
        %v4010 = vmul.f32 %v1469, %v3772
        %v4011 = vmul.f32 %v1471, %v3777
        %v4012 = vmul.f32 %v1473, %v3777
        %v4013 = vmul.f32 %v1477, %v3782
        %v4014 = vmul.f32 %v1479, %v3782
        %v4015 = vmul.f32 %v1481, %v3787
        %v4016 = vmul.f32 %v1483, %v3787
        %v4017 = vmul.f32 %v1487, %v3792
        %v4018 = vmul.f32 %v1489, %v3792
        %v4019 = vmul.f32 %v1491, %v3797
        %v4020 = vmul.f32 %v1493, %v3797
        %v4021 = vmul.f32 %v1497, %v3802
        %v4022 = vmul.f32 %v1499, %v3802
        %v4023 = vmul.f32 %v1501, %v3807
        %v4024 = vmul.f32 %v1503, %v3807
        %v4025 = vmul.f32 %v1507, %v3812
        %v4026 = vmul.f32 %v1509, %v3812
        %v4027 = vmul.f32 %v1511, %v3817
        %v4028 = vmul.f32 %v1513, %v3817
        %v4029 = vmul.f32 %v1517, %v3822
        %v4030 = vmul.f32 %v1519, %v3822
        %v4031 = vmul.f32 %v1521, %v3827
        %v4032 = vmul.f32 %v1523, %v3827
        %v4033 = vmul.f32 %v1527, %v3832
        %v4034 = vmul.f32 %v1529, %v3832
        %v4035 = vmul.f32 %v1531, %v3837
        %v4036 = vmul.f32 %v1533, %v3837
        %v4037 = vmul.f32 %v1537, %v3842
        %v4038 = vmul.f32 %v1539, %v3842
        %v4039 = vmul.f32 %v1541, %v3847
        %v4040 = vmul.f32 %v1543, %v3847
        %4042 = vset.pattern.permute.xlu0 0
        %4043 = vperm.xlu0 %4042, %v3273
        %v4044 = vpop.permute.xlu0 %4043
        %4047 = vset.pattern.permute.xlu0 0
        %4048 = vperm.xlu0 %4047, %v3274
        %v4049 = vpop.permute.xlu0 %4048
        %4052 = vset.pattern.permute.xlu0 0
        %4053 = vperm.xlu0 %4052, %v3275
        %v4054 = vpop.permute.xlu0 %4053
        %4057 = vset.pattern.permute.xlu0 0
        %4058 = vperm.xlu0 %4057, %v3276
        %v4059 = vpop.permute.xlu0 %4058
        %4062 = vset.pattern.permute.xlu0 0
        %4063 = vperm.xlu0 %4062, %v3277
        %v4064 = vpop.permute.xlu0 %4063
        %4067 = vset.pattern.permute.xlu0 0
        %4068 = vperm.xlu0 %4067, %v3278
        %v4069 = vpop.permute.xlu0 %4068
        %4072 = vset.pattern.permute.xlu0 0
        %4073 = vperm.xlu0 %4072, %v3279
        %v4074 = vpop.permute.xlu0 %4073
        %4077 = vset.pattern.permute.xlu0 0
        %4078 = vperm.xlu0 %4077, %v3280
        %v4079 = vpop.permute.xlu0 %4078
        %4082 = vset.pattern.permute.xlu0 0
        %4083 = vperm.xlu0 %4082, %v3281
        %v4084 = vpop.permute.xlu0 %4083
        %4087 = vset.pattern.permute.xlu0 0
        %4088 = vperm.xlu0 %4087, %v3282
        %v4089 = vpop.permute.xlu0 %4088
        %4092 = vset.pattern.permute.xlu0 0
        %4093 = vperm.xlu0 %4092, %v3283
        %v4094 = vpop.permute.xlu0 %4093
        %4097 = vset.pattern.permute.xlu0 0
        %4098 = vperm.xlu0 %4097, %v3284
        %v4099 = vpop.permute.xlu0 %4098
        %4102 = vset.pattern.permute.xlu0 0
        %4103 = vperm.xlu0 %4102, %v3285
        %v4104 = vpop.permute.xlu0 %4103
        %4107 = vset.pattern.permute.xlu0 0
        %4108 = vperm.xlu0 %4107, %v3286
        %v4109 = vpop.permute.xlu0 %4108
        %4112 = vset.pattern.permute.xlu0 0
        %4113 = vperm.xlu0 %4112, %v3287
        %v4114 = vpop.permute.xlu0 %4113
        %4117 = vset.pattern.permute.xlu0 0
        %4118 = vperm.xlu0 %4117, %v3288
        %v4119 = vpop.permute.xlu0 %4118
        %4122 = vset.pattern.permute.xlu0 0
        %4123 = vperm.xlu0 %4122, %v3289
        %v4124 = vpop.permute.xlu0 %4123
        %4127 = vset.pattern.permute.xlu0 0
        %4128 = vperm.xlu0 %4127, %v3290
        %v4129 = vpop.permute.xlu0 %4128
        %4132 = vset.pattern.permute.xlu0 0
        %4133 = vperm.xlu0 %4132, %v3291
        %v4134 = vpop.permute.xlu0 %4133
        %4137 = vset.pattern.permute.xlu0 0
        %4138 = vperm.xlu0 %4137, %v3292
        %v4139 = vpop.permute.xlu0 %4138
        %4142 = vset.pattern.permute.xlu0 0
        %4143 = vperm.xlu0 %4142, %v3293
        %v4144 = vpop.permute.xlu0 %4143
        %4147 = vset.pattern.permute.xlu0 0
        %4148 = vperm.xlu0 %4147, %v3294
        %v4149 = vpop.permute.xlu0 %4148
        %4152 = vset.pattern.permute.xlu0 0
        %4153 = vperm.xlu0 %4152, %v3295
        %v4154 = vpop.permute.xlu0 %4153
        %4157 = vset.pattern.permute.xlu0 0
        %4158 = vperm.xlu0 %4157, %v3296
        %v4159 = vpop.permute.xlu0 %4158
        %4162 = vset.pattern.permute.xlu0 0
        %4163 = vperm.xlu0 %4162, %v3297
        %v4164 = vpop.permute.xlu0 %4163
        %4167 = vset.pattern.permute.xlu0 0
        %4168 = vperm.xlu0 %4167, %v3298
        %v4169 = vpop.permute.xlu0 %4168
        %4172 = vset.pattern.permute.xlu0 0
        %4173 = vperm.xlu0 %4172, %v3299
        %v4174 = vpop.permute.xlu0 %4173
        %4177 = vset.pattern.permute.xlu0 0
        %4178 = vperm.xlu0 %4177, %v3300
        %v4179 = vpop.permute.xlu0 %4178
        %4182 = vset.pattern.permute.xlu0 0
        %4183 = vperm.xlu0 %4182, %v3301
        %v4184 = vpop.permute.xlu0 %4183
        %4187 = vset.pattern.permute.xlu0 0
        %4188 = vperm.xlu0 %4187, %v3302
        %v4189 = vpop.permute.xlu0 %4188
        %4192 = vset.pattern.permute.xlu0 0
        %4193 = vperm.xlu0 %4192, %v3303
        %v4194 = vpop.permute.xlu0 %4193
        %4197 = vset.pattern.permute.xlu0 0
        %4198 = vperm.xlu0 %4197, %v3304
        %v4199 = vpop.permute.xlu0 %4198
        %4202 = vset.pattern.permute.xlu0 0
        %4203 = vperm.xlu0 %4202, %v3305
        %v4204 = vpop.permute.xlu0 %4203
        %4207 = vset.pattern.permute.xlu0 0
        %4208 = vperm.xlu0 %4207, %v3306
        %v4209 = vpop.permute.xlu0 %4208
        %4212 = vset.pattern.permute.xlu0 0
        %4213 = vperm.xlu0 %4212, %v3307
        %v4214 = vpop.permute.xlu0 %4213
        %4217 = vset.pattern.permute.xlu0 0
        %4218 = vperm.xlu0 %4217, %v3308
        %v4219 = vpop.permute.xlu0 %4218
        %4222 = vset.pattern.permute.xlu0 0
        %4223 = vperm.xlu0 %4222, %v3309
        %v4224 = vpop.permute.xlu0 %4223
        %4227 = vset.pattern.permute.xlu0 0
        %4228 = vperm.xlu0 %4227, %v3310
        %v4229 = vpop.permute.xlu0 %4228
        %4232 = vset.pattern.permute.xlu0 0
        %4233 = vperm.xlu0 %4232, %v3311
        %v4234 = vpop.permute.xlu0 %4233
        %4237 = vset.pattern.permute.xlu0 0
        %4238 = vperm.xlu0 %4237, %v3312
        %v4239 = vpop.permute.xlu0 %4238
        %4242 = vset.pattern.permute.xlu0 0
        %4243 = vperm.xlu0 %4242, %v3313
        %v4244 = vpop.permute.xlu0 %4243
        %4247 = vset.pattern.permute.xlu0 0
        %4248 = vperm.xlu0 %4247, %v3314
        %v4249 = vpop.permute.xlu0 %4248
        %4252 = vset.pattern.permute.xlu0 0
        %4253 = vperm.xlu0 %4252, %v3315
        %v4254 = vpop.permute.xlu0 %4253
        %4257 = vset.pattern.permute.xlu0 0
        %4258 = vperm.xlu0 %4257, %v3316
        %v4259 = vpop.permute.xlu0 %4258
        %4262 = vset.pattern.permute.xlu0 0
        %4263 = vperm.xlu0 %4262, %v3317
        %v4264 = vpop.permute.xlu0 %4263
        %4267 = vset.pattern.permute.xlu0 0
        %4268 = vperm.xlu0 %4267, %v3318
        %v4269 = vpop.permute.xlu0 %4268
        %4272 = vset.pattern.permute.xlu0 0
        %4273 = vperm.xlu0 %4272, %v3319
        %v4274 = vpop.permute.xlu0 %4273
        %4277 = vset.pattern.permute.xlu0 0
        %4278 = vperm.xlu0 %4277, %v3320
        %v4279 = vpop.permute.xlu0 %4278
        %4282 = vset.pattern.permute.xlu0 0
        %4283 = vperm.xlu0 %4282, %v3321
        %v4284 = vpop.permute.xlu0 %4283
        %4287 = vset.pattern.permute.xlu0 0
        %4288 = vperm.xlu0 %4287, %v3322
        %v4289 = vpop.permute.xlu0 %4288
        %4292 = vset.pattern.permute.xlu0 0
        %4293 = vperm.xlu0 %4292, %v3323
        %v4294 = vpop.permute.xlu0 %4293
        %4297 = vset.pattern.permute.xlu0 0
        %4298 = vperm.xlu0 %4297, %v3324
        %v4299 = vpop.permute.xlu0 %4298
        %4302 = vset.pattern.permute.xlu0 0
        %4303 = vperm.xlu0 %4302, %v3325
        %v4304 = vpop.permute.xlu0 %4303
        %4307 = vset.pattern.permute.xlu0 0
        %4308 = vperm.xlu0 %4307, %v3326
        %v4309 = vpop.permute.xlu0 %4308
        %4312 = vset.pattern.permute.xlu0 0
        %4313 = vperm.xlu0 %4312, %v3327
        %v4314 = vpop.permute.xlu0 %4313
        %4317 = vset.pattern.permute.xlu0 0
        %4318 = vperm.xlu0 %4317, %v3328
        %v4319 = vpop.permute.xlu0 %4318
        %4322 = vset.pattern.permute.xlu0 0
        %4323 = vperm.xlu0 %4322, %v3329
        %v4324 = vpop.permute.xlu0 %4323
        %4327 = vset.pattern.permute.xlu0 0
        %4328 = vperm.xlu0 %4327, %v3330
        %v4329 = vpop.permute.xlu0 %4328
        %4332 = vset.pattern.permute.xlu0 0
        %4333 = vperm.xlu0 %4332, %v3331
        %v4334 = vpop.permute.xlu0 %4333
        %4337 = vset.pattern.permute.xlu0 0
        %4338 = vperm.xlu0 %4337, %v3332
        %v4339 = vpop.permute.xlu0 %4338
        %4342 = vset.pattern.permute.xlu0 0
        %4343 = vperm.xlu0 %4342, %v3333
        %v4344 = vpop.permute.xlu0 %4343
        %4347 = vset.pattern.permute.xlu0 0
        %4348 = vperm.xlu0 %4347, %v3334
        %v4349 = vpop.permute.xlu0 %4348
        %4352 = vset.pattern.permute.xlu0 0
        %4353 = vperm.xlu0 %4352, %v3335
        %v4354 = vpop.permute.xlu0 %4353
        %4357 = vset.pattern.permute.xlu0 0
        %4358 = vperm.xlu0 %4357, %v3336
        %v4359 = vpop.permute.xlu0 %4358
        %4362 = vset.pattern.permute.xlu0 0
        %4363 = vperm.xlu0 %4362, %v3337
        %v4364 = vpop.permute.xlu0 %4363
        %4367 = vset.pattern.permute.xlu0 0
        %4368 = vperm.xlu0 %4367, %v3338
        %v4369 = vpop.permute.xlu0 %4368
        %4372 = vset.pattern.permute.xlu0 0
        %4373 = vperm.xlu0 %4372, %v3339
        %v4374 = vpop.permute.xlu0 %4373
        %4377 = vset.pattern.permute.xlu0 0
        %4378 = vperm.xlu0 %4377, %v3340
        %v4379 = vpop.permute.xlu0 %4378
        %4382 = vset.pattern.permute.xlu0 0
        %4383 = vperm.xlu0 %4382, %v3341
        %v4384 = vpop.permute.xlu0 %4383
        %4387 = vset.pattern.permute.xlu0 0
        %4388 = vperm.xlu0 %4387, %v3342
        %v4389 = vpop.permute.xlu0 %4388
        %4392 = vset.pattern.permute.xlu0 0
        %4393 = vperm.xlu0 %4392, %v3343
        %v4394 = vpop.permute.xlu0 %4393
        %4397 = vset.pattern.permute.xlu0 0
        %4398 = vperm.xlu0 %4397, %v3344
        %v4399 = vpop.permute.xlu0 %4398
        %4402 = vset.pattern.permute.xlu0 0
        %4403 = vperm.xlu0 %4402, %v3345
        %v4404 = vpop.permute.xlu0 %4403
        %4407 = vset.pattern.permute.xlu0 0
        %4408 = vperm.xlu0 %4407, %v3346
        %v4409 = vpop.permute.xlu0 %4408
        %4412 = vset.pattern.permute.xlu0 0
        %4413 = vperm.xlu0 %4412, %v3347
        %v4414 = vpop.permute.xlu0 %4413
        %4417 = vset.pattern.permute.xlu0 0
        %4418 = vperm.xlu0 %4417, %v3348
        %v4419 = vpop.permute.xlu0 %4418
        %4422 = vset.pattern.permute.xlu0 0
        %4423 = vperm.xlu0 %4422, %v3349
        %v4424 = vpop.permute.xlu0 %4423
        %4427 = vset.pattern.permute.xlu0 0
        %4428 = vperm.xlu0 %4427, %v3350
        %v4429 = vpop.permute.xlu0 %4428
        %4432 = vset.pattern.permute.xlu0 0
        %4433 = vperm.xlu0 %4432, %v3351
        %v4434 = vpop.permute.xlu0 %4433
        %4437 = vset.pattern.permute.xlu0 0
        %4438 = vperm.xlu0 %4437, %v3352
        %v4439 = vpop.permute.xlu0 %4438
        %4442 = vset.pattern.permute.xlu0 0
        %4443 = vperm.xlu0 %4442, %v3353
        %v4444 = vpop.permute.xlu0 %4443
        %4447 = vset.pattern.permute.xlu0 0
        %4448 = vperm.xlu0 %4447, %v3354
        %v4449 = vpop.permute.xlu0 %4448
        %4452 = vset.pattern.permute.xlu0 0
        %4453 = vperm.xlu0 %4452, %v3355
        %v4454 = vpop.permute.xlu0 %4453
        %4457 = vset.pattern.permute.xlu0 0
        %4458 = vperm.xlu0 %4457, %v3356
        %v4459 = vpop.permute.xlu0 %4458
        %4462 = vset.pattern.permute.xlu0 0
        %4463 = vperm.xlu0 %4462, %v3357
        %v4464 = vpop.permute.xlu0 %4463
        %4467 = vset.pattern.permute.xlu0 0
        %4468 = vperm.xlu0 %4467, %v3358
        %v4469 = vpop.permute.xlu0 %4468
        %4472 = vset.pattern.permute.xlu0 0
        %4473 = vperm.xlu0 %4472, %v3359
        %v4474 = vpop.permute.xlu0 %4473
        %4477 = vset.pattern.permute.xlu0 0
        %4478 = vperm.xlu0 %4477, %v3360
        %v4479 = vpop.permute.xlu0 %4478
        %4482 = vset.pattern.permute.xlu0 0
        %4483 = vperm.xlu0 %4482, %v3361
        %v4484 = vpop.permute.xlu0 %4483
        %4487 = vset.pattern.permute.xlu0 0
        %4488 = vperm.xlu0 %4487, %v3362
        %v4489 = vpop.permute.xlu0 %4488
        %4492 = vset.pattern.permute.xlu0 0
        %4493 = vperm.xlu0 %4492, %v3363
        %v4494 = vpop.permute.xlu0 %4493
        %4497 = vset.pattern.permute.xlu0 0
        %4498 = vperm.xlu0 %4497, %v3364
        %v4499 = vpop.permute.xlu0 %4498
        %4502 = vset.pattern.permute.xlu0 0
        %4503 = vperm.xlu0 %4502, %v3365
        %v4504 = vpop.permute.xlu0 %4503
        %4507 = vset.pattern.permute.xlu0 0
        %4508 = vperm.xlu0 %4507, %v3366
        %v4509 = vpop.permute.xlu0 %4508
        %4512 = vset.pattern.permute.xlu0 0
        %4513 = vperm.xlu0 %4512, %v3367
        %v4514 = vpop.permute.xlu0 %4513
        %4517 = vset.pattern.permute.xlu0 0
        %4518 = vperm.xlu0 %4517, %v3368
        %v4519 = vpop.permute.xlu0 %4518
        %v4521 = vadd.f32 %v3849, %v4044
        %v4522 = vadd.f32 %v3850, %v4044
        %v4523 = vadd.f32 %v3851, %v4049
        %v4524 = vadd.f32 %v3852, %v4049
        %v4525 = vadd.f32 %v3853, %v4054
        %v4526 = vadd.f32 %v3854, %v4054
        %v4527 = vadd.f32 %v3855, %v4059
        %v4528 = vadd.f32 %v3856, %v4059
        %v4529 = vadd.f32 %v3857, %v4064
        %v4530 = vadd.f32 %v3858, %v4064
        %v4531 = vadd.f32 %v3859, %v4069
        %v4532 = vadd.f32 %v3860, %v4069
        %v4533 = vadd.f32 %v3861, %v4074
        %v4534 = vadd.f32 %v3862, %v4074
        %v4535 = vadd.f32 %v3863, %v4079
        %v4536 = vadd.f32 %v3864, %v4079
        %v4537 = vadd.f32 %v3865, %v4084
        %v4538 = vadd.f32 %v3866, %v4084
        %v4539 = vadd.f32 %v3867, %v4089
        %v4540 = vadd.f32 %v3868, %v4089
        %v4541 = vadd.f32 %v3869, %v4094
        %v4542 = vadd.f32 %v3870, %v4094
        %v4543 = vadd.f32 %v3871, %v4099
        %v4544 = vadd.f32 %v3872, %v4099
        %v4545 = vadd.f32 %v3873, %v4104
        %v4546 = vadd.f32 %v3874, %v4104
        %v4547 = vadd.f32 %v3875, %v4109
        %v4548 = vadd.f32 %v3876, %v4109
        %v4549 = vadd.f32 %v3877, %v4114
        %v4550 = vadd.f32 %v3878, %v4114
        %v4551 = vadd.f32 %v3879, %v4119
        %v4552 = vadd.f32 %v3880, %v4119
        %v4553 = vadd.f32 %v3881, %v4124
        %v4554 = vadd.f32 %v3882, %v4124
        %v4555 = vadd.f32 %v3883, %v4129
        %v4556 = vadd.f32 %v3884, %v4129
        %v4557 = vadd.f32 %v3885, %v4134
        %v4558 = vadd.f32 %v3886, %v4134
        %v4559 = vadd.f32 %v3887, %v4139
        %v4560 = vadd.f32 %v3888, %v4139
        %v4561 = vadd.f32 %v3889, %v4144
        %v4562 = vadd.f32 %v3890, %v4144
        %v4563 = vadd.f32 %v3891, %v4149
        %v4564 = vadd.f32 %v3892, %v4149
        %v4565 = vadd.f32 %v3893, %v4154
        %v4566 = vadd.f32 %v3894, %v4154
        %v4567 = vadd.f32 %v3895, %v4159
        %v4568 = vadd.f32 %v3896, %v4159
        %v4569 = vadd.f32 %v3897, %v4164
        %v4570 = vadd.f32 %v3898, %v4164
        %v4571 = vadd.f32 %v3899, %v4169
        %v4572 = vadd.f32 %v3900, %v4169
        %v4573 = vadd.f32 %v3901, %v4174
        %v4574 = vadd.f32 %v3902, %v4174
        %v4575 = vadd.f32 %v3903, %v4179
        %v4576 = vadd.f32 %v3904, %v4179
        %v4577 = vadd.f32 %v3905, %v4184
        %v4578 = vadd.f32 %v3906, %v4184
        %v4579 = vadd.f32 %v3907, %v4189
        %v4580 = vadd.f32 %v3908, %v4189
        %v4581 = vadd.f32 %v3909, %v4194
        %v4582 = vadd.f32 %v3910, %v4194
        %v4583 = vadd.f32 %v3911, %v4199
        %v4584 = vadd.f32 %v3912, %v4199
        %v4585 = vadd.f32 %v3913, %v4204
        %v4586 = vadd.f32 %v3914, %v4204
        %v4587 = vadd.f32 %v3915, %v4209
        %v4588 = vadd.f32 %v3916, %v4209
        %v4589 = vadd.f32 %v3917, %v4214
        %v4590 = vadd.f32 %v3918, %v4214
        %v4591 = vadd.f32 %v3919, %v4219
        %v4592 = vadd.f32 %v3920, %v4219
        %v4593 = vadd.f32 %v3921, %v4224
        %v4594 = vadd.f32 %v3922, %v4224
        %v4595 = vadd.f32 %v3923, %v4229
        %v4596 = vadd.f32 %v3924, %v4229
        %v4597 = vadd.f32 %v3925, %v4234
        %v4598 = vadd.f32 %v3926, %v4234
        %v4599 = vadd.f32 %v3927, %v4239
        %v4600 = vadd.f32 %v3928, %v4239
        %v4601 = vadd.f32 %v3929, %v4244
        %v4602 = vadd.f32 %v3930, %v4244
        %v4603 = vadd.f32 %v3931, %v4249
        %v4604 = vadd.f32 %v3932, %v4249
        %v4605 = vadd.f32 %v3933, %v4254
        %v4606 = vadd.f32 %v3934, %v4254
        %v4607 = vadd.f32 %v3935, %v4259
        %v4608 = vadd.f32 %v3936, %v4259
        %v4609 = vadd.f32 %v3937, %v4264
        %v4610 = vadd.f32 %v3938, %v4264
        %v4611 = vadd.f32 %v3939, %v4269
        %v4612 = vadd.f32 %v3940, %v4269
        %v4613 = vadd.f32 %v3941, %v4274
        %v4614 = vadd.f32 %v3942, %v4274
        %v4615 = vadd.f32 %v3943, %v4279
        %v4616 = vadd.f32 %v3944, %v4279
        %v4617 = vadd.f32 %v3945, %v4284
        %v4618 = vadd.f32 %v3946, %v4284
        %v4619 = vadd.f32 %v3947, %v4289
        %v4620 = vadd.f32 %v3948, %v4289
        %v4621 = vadd.f32 %v3949, %v4294
        %v4622 = vadd.f32 %v3950, %v4294
        %v4623 = vadd.f32 %v3951, %v4299
        %v4624 = vadd.f32 %v3952, %v4299
        %v4625 = vadd.f32 %v3953, %v4304
        %v4626 = vadd.f32 %v3954, %v4304
        %v4627 = vadd.f32 %v3955, %v4309
        %v4628 = vadd.f32 %v3956, %v4309
        %v4629 = vadd.f32 %v3957, %v4314
        %v4630 = vadd.f32 %v3958, %v4314
        %v4631 = vadd.f32 %v3959, %v4319
        %v4632 = vadd.f32 %v3960, %v4319
        %v4633 = vadd.f32 %v3961, %v4324
        %v4634 = vadd.f32 %v3962, %v4324
        %v4635 = vadd.f32 %v3963, %v4329
        %v4636 = vadd.f32 %v3964, %v4329
        %v4637 = vadd.f32 %v3965, %v4334
        %v4638 = vadd.f32 %v3966, %v4334
        %v4639 = vadd.f32 %v3967, %v4339
        %v4640 = vadd.f32 %v3968, %v4339
        %v4641 = vadd.f32 %v3969, %v4344
        %v4642 = vadd.f32 %v3970, %v4344
        %v4643 = vadd.f32 %v3971, %v4349
        %v4644 = vadd.f32 %v3972, %v4349
        %v4645 = vadd.f32 %v3973, %v4354
        %v4646 = vadd.f32 %v3974, %v4354
        %v4647 = vadd.f32 %v3975, %v4359
        %v4648 = vadd.f32 %v3976, %v4359
        %v4649 = vadd.f32 %v3977, %v4364
        %v4650 = vadd.f32 %v3978, %v4364
        %v4651 = vadd.f32 %v3979, %v4369
        %v4652 = vadd.f32 %v3980, %v4369
        %v4653 = vadd.f32 %v3981, %v4374
        %v4654 = vadd.f32 %v3982, %v4374
        %v4655 = vadd.f32 %v3983, %v4379
        %v4656 = vadd.f32 %v3984, %v4379
        %v4657 = vadd.f32 %v3985, %v4384
        %v4658 = vadd.f32 %v3986, %v4384
        %v4659 = vadd.f32 %v3987, %v4389
        %v4660 = vadd.f32 %v3988, %v4389
        %v4661 = vadd.f32 %v3989, %v4394
        %v4662 = vadd.f32 %v3990, %v4394
        %v4663 = vadd.f32 %v3991, %v4399
        %v4664 = vadd.f32 %v3992, %v4399
        %v4665 = vadd.f32 %v3993, %v4404
        %v4666 = vadd.f32 %v3994, %v4404
        %v4667 = vadd.f32 %v3995, %v4409
        %v4668 = vadd.f32 %v3996, %v4409
        %v4669 = vadd.f32 %v3997, %v4414
        %v4670 = vadd.f32 %v3998, %v4414
        %v4671 = vadd.f32 %v3999, %v4419
        %v4672 = vadd.f32 %v4000, %v4419
        %v4673 = vadd.f32 %v4001, %v4424
        %v4674 = vadd.f32 %v4002, %v4424
        %v4675 = vadd.f32 %v4003, %v4429
        %v4676 = vadd.f32 %v4004, %v4429
        %v4677 = vadd.f32 %v4005, %v4434
        %v4678 = vadd.f32 %v4006, %v4434
        %v4679 = vadd.f32 %v4007, %v4439
        %v4680 = vadd.f32 %v4008, %v4439
        %v4681 = vadd.f32 %v4009, %v4444
        %v4682 = vadd.f32 %v4010, %v4444
        %v4683 = vadd.f32 %v4011, %v4449
        %v4684 = vadd.f32 %v4012, %v4449
        %v4685 = vadd.f32 %v4013, %v4454
        %v4686 = vadd.f32 %v4014, %v4454
        %v4687 = vadd.f32 %v4015, %v4459
        %v4688 = vadd.f32 %v4016, %v4459
        %v4689 = vadd.f32 %v4017, %v4464
        %v4690 = vadd.f32 %v4018, %v4464
        %v4691 = vadd.f32 %v4019, %v4469
        %v4692 = vadd.f32 %v4020, %v4469
        %v4693 = vadd.f32 %v4021, %v4474
        %v4694 = vadd.f32 %v4022, %v4474
        %v4695 = vadd.f32 %v4023, %v4479
        %v4696 = vadd.f32 %v4024, %v4479
        %v4697 = vadd.f32 %v4025, %v4484
        %v4698 = vadd.f32 %v4026, %v4484
        %v4699 = vadd.f32 %v4027, %v4489
        %v4700 = vadd.f32 %v4028, %v4489
        %v4701 = vadd.f32 %v4029, %v4494
        %v4702 = vadd.f32 %v4030, %v4494
        %v4703 = vadd.f32 %v4031, %v4499
        %v4704 = vadd.f32 %v4032, %v4499
        %v4705 = vadd.f32 %v4033, %v4504
        %v4706 = vadd.f32 %v4034, %v4504
        %v4707 = vadd.f32 %v4035, %v4509
        %v4708 = vadd.f32 %v4036, %v4509
        %v4709 = vadd.f32 %v4037, %v4514
        %v4710 = vadd.f32 %v4038, %v4514
        %v4711 = vadd.f32 %v4039, %v4519
        %v4712 = vadd.f32 %v4040, %v4519
        %v4713 = vld [vmem:[%s4] sm:$0xff]
        %v4714 = vld [vmem:[%s4 + $0x8] sm:$0xff]
        %v4715 = vld [vmem:[%s4 + $0x10] sm:$0xff]
        %v4716 = vld [vmem:[%s4 + $0x18] sm:$0xff]
        %v4717 = vld [vmem:[%s4 + $0x20] sm:$0xff]
        %v4718 = vld [vmem:[%s4 + $0x28] sm:$0xff]
        %v4719 = vld [vmem:[%s4 + $0x30] sm:$0xff]
        %v4720 = vld [vmem:[%s4 + $0x38] sm:$0xff]
        %v4721 = vld [vmem:[%s4 + $0x40] sm:$0xff]
        %v4722 = vld [vmem:[%s4 + $0x48] sm:$0xff]
        %v4723 = vld [vmem:[%s4 + $0x50] sm:$0xff]
        %v4724 = vld [vmem:[%s4 + $0x58] sm:$0xff]
        %v4725 = vld [vmem:[%s4 + $0x60] sm:$0xff]
        %v4726 = vld [vmem:[%s4 + $0x68] sm:$0xff]
        %v4727 = vld [vmem:[%s4 + $0x70] sm:$0xff]
        %v4728 = vld [vmem:[%s4 + $0x78] sm:$0xff]
        %v4729 = vld [vmem:[%s4 + $0x80] sm:$0xff]
        %v4730 = vld [vmem:[%s4 + $0x88] sm:$0xff]
        %v4731 = vld [vmem:[%s4 + $0x90] sm:$0xff]
        %v4732 = vld [vmem:[%s4 + $0x98] sm:$0xff]
        %v4733 = vld [vmem:[%s4 + $0xa0] sm:$0xff]
        %v4734 = vld [vmem:[%s4 + $0xa8] sm:$0xff]
        %v4735 = vld [vmem:[%s4 + $0xb0] sm:$0xff]
        %v4736 = vld [vmem:[%s4 + $0xb8] sm:$0xff]
        %v4737 = vld [vmem:[%s4 + $0xc0] sm:$0xff]
        %v4738 = vld [vmem:[%s4 + $0xc8] sm:$0xff]
        %v4739 = vld [vmem:[%s4 + $0xd0] sm:$0xff]
        %v4740 = vld [vmem:[%s4 + $0xd8] sm:$0xff]
        %v4741 = vld [vmem:[%s4 + $0xe0] sm:$0xff]
        %v4742 = vld [vmem:[%s4 + $0xe8] sm:$0xff]
        %v4743 = vld [vmem:[%s4 + $0xf0] sm:$0xff]
        %v4744 = vld [vmem:[%s4 + $0xf8] sm:$0xff]
        %v4745 = vld [vmem:[%s4 + $0x100] sm:$0xff]
        %v4746 = vld [vmem:[%s4 + $0x108] sm:$0xff]
        %v4747 = vld [vmem:[%s4 + $0x110] sm:$0xff]
        %v4748 = vld [vmem:[%s4 + $0x118] sm:$0xff]
        %v4749 = vld [vmem:[%s4 + $0x120] sm:$0xff]
        %v4750 = vld [vmem:[%s4 + $0x128] sm:$0xff]
        %v4751 = vld [vmem:[%s4 + $0x130] sm:$0xff]
        %v4752 = vld [vmem:[%s4 + $0x138] sm:$0xff]
        %v4753 = vld [vmem:[%s4 + $0x140] sm:$0xff]
        %v4754 = vld [vmem:[%s4 + $0x148] sm:$0xff]
        %v4755 = vld [vmem:[%s4 + $0x150] sm:$0xff]
        %v4756 = vld [vmem:[%s4 + $0x158] sm:$0xff]
        %v4757 = vld [vmem:[%s4 + $0x160] sm:$0xff]
        %v4758 = vld [vmem:[%s4 + $0x168] sm:$0xff]
        %v4759 = vld [vmem:[%s4 + $0x170] sm:$0xff]
        %v4760 = vld [vmem:[%s4 + $0x178] sm:$0xff]
        %v4761 = vld [vmem:[%s4 + $0x180] sm:$0xff]
        %v4762 = vld [vmem:[%s4 + $0x188] sm:$0xff]
        %v4763 = vld [vmem:[%s4 + $0x190] sm:$0xff]
        %v4764 = vld [vmem:[%s4 + $0x198] sm:$0xff]
        %v4765 = vld [vmem:[%s4 + $0x1a0] sm:$0xff]
        %v4766 = vld [vmem:[%s4 + $0x1a8] sm:$0xff]
        %v4767 = vld [vmem:[%s4 + $0x1b0] sm:$0xff]
        %v4768 = vld [vmem:[%s4 + $0x1b8] sm:$0xff]
        %v4769 = vld [vmem:[%s4 + $0x1c0] sm:$0xff]
        %v4770 = vld [vmem:[%s4 + $0x1c8] sm:$0xff]
        %v4771 = vld [vmem:[%s4 + $0x1d0] sm:$0xff]
        %v4772 = vld [vmem:[%s4 + $0x1d8] sm:$0xff]
        %v4773 = vld [vmem:[%s4 + $0x1e0] sm:$0xff]
        %v4774 = vld [vmem:[%s4 + $0x1e8] sm:$0xff]
        %v4775 = vld [vmem:[%s4 + $0x1f0] sm:$0xff]
        %v4776 = vld [vmem:[%s4 + $0x1f8] sm:$0xff]
        %v4777 = vld [vmem:[%s4 + $0x200] sm:$0xff]
        %v4778 = vld [vmem:[%s4 + $0x208] sm:$0xff]
        %v4779 = vld [vmem:[%s4 + $0x210] sm:$0xff]
        %v4780 = vld [vmem:[%s4 + $0x218] sm:$0xff]
        %v4781 = vld [vmem:[%s4 + $0x220] sm:$0xff]
        %v4782 = vld [vmem:[%s4 + $0x228] sm:$0xff]
        %v4783 = vld [vmem:[%s4 + $0x230] sm:$0xff]
        %v4784 = vld [vmem:[%s4 + $0x238] sm:$0xff]
        %v4785 = vld [vmem:[%s4 + $0x240] sm:$0xff]
        %v4786 = vld [vmem:[%s4 + $0x248] sm:$0xff]
        %v4787 = vld [vmem:[%s4 + $0x250] sm:$0xff]
        %v4788 = vld [vmem:[%s4 + $0x258] sm:$0xff]
        %v4789 = vld [vmem:[%s4 + $0x260] sm:$0xff]
        %v4790 = vld [vmem:[%s4 + $0x268] sm:$0xff]
        %v4791 = vld [vmem:[%s4 + $0x270] sm:$0xff]
        %v4792 = vld [vmem:[%s4 + $0x278] sm:$0xff]
        %v4793 = vld [vmem:[%s4 + $0x280] sm:$0xff]
        %v4794 = vld [vmem:[%s4 + $0x288] sm:$0xff]
        %v4795 = vld [vmem:[%s4 + $0x290] sm:$0xff]
        %v4796 = vld [vmem:[%s4 + $0x298] sm:$0xff]
        %v4797 = vld [vmem:[%s4 + $0x2a0] sm:$0xff]
        %v4798 = vld [vmem:[%s4 + $0x2a8] sm:$0xff]
        %v4799 = vld [vmem:[%s4 + $0x2b0] sm:$0xff]
        %v4800 = vld [vmem:[%s4 + $0x2b8] sm:$0xff]
        %v4801 = vld [vmem:[%s4 + $0x2c0] sm:$0xff]
        %v4802 = vld [vmem:[%s4 + $0x2c8] sm:$0xff]
        %v4803 = vld [vmem:[%s4 + $0x2d0] sm:$0xff]
        %v4804 = vld [vmem:[%s4 + $0x2d8] sm:$0xff]
        %v4805 = vld [vmem:[%s4 + $0x2e0] sm:$0xff]
        %v4806 = vld [vmem:[%s4 + $0x2e8] sm:$0xff]
        %v4807 = vld [vmem:[%s4 + $0x2f0] sm:$0xff]
        %v4808 = vld [vmem:[%s4 + $0x2f8] sm:$0xff]
        %v4809 = vunpack.c.l.bf16 %v4713
        %v4810 = vunpack.c.h.bf16 %v4713
        %v4811 = vunpack.c.l.bf16 %v4714
        %v4812 = vunpack.c.h.bf16 %v4714
        %v4813 = vunpack.c.l.bf16 %v4715
        %v4814 = vunpack.c.h.bf16 %v4715
        %v4815 = vunpack.c.l.bf16 %v4716
        %v4816 = vunpack.c.h.bf16 %v4716
        %v4817 = vunpack.c.l.bf16 %v4717
        %v4818 = vunpack.c.h.bf16 %v4717
        %v4819 = vunpack.c.l.bf16 %v4718
        %v4820 = vunpack.c.h.bf16 %v4718
        %v4821 = vunpack.c.l.bf16 %v4719
        %v4822 = vunpack.c.h.bf16 %v4719
        %v4823 = vunpack.c.l.bf16 %v4720
        %v4824 = vunpack.c.h.bf16 %v4720
        %v4825 = vunpack.c.l.bf16 %v4721
        %v4826 = vunpack.c.h.bf16 %v4721
        %v4827 = vunpack.c.l.bf16 %v4722
        %v4828 = vunpack.c.h.bf16 %v4722
        %v4829 = vunpack.c.l.bf16 %v4723
        %v4830 = vunpack.c.h.bf16 %v4723
        %v4831 = vunpack.c.l.bf16 %v4724
        %v4832 = vunpack.c.h.bf16 %v4724
        %v4833 = vunpack.c.l.bf16 %v4725
        %v4834 = vunpack.c.h.bf16 %v4725
        %v4835 = vunpack.c.l.bf16 %v4726
        %v4836 = vunpack.c.h.bf16 %v4726
        %v4837 = vunpack.c.l.bf16 %v4727
        %v4838 = vunpack.c.h.bf16 %v4727
        %v4839 = vunpack.c.l.bf16 %v4728
        %v4840 = vunpack.c.h.bf16 %v4728
        %v4841 = vunpack.c.l.bf16 %v4729
        %v4842 = vunpack.c.h.bf16 %v4729
        %v4843 = vunpack.c.l.bf16 %v4730
        %v4844 = vunpack.c.h.bf16 %v4730
        %v4845 = vunpack.c.l.bf16 %v4731
        %v4846 = vunpack.c.h.bf16 %v4731
        %v4847 = vunpack.c.l.bf16 %v4732
        %v4848 = vunpack.c.h.bf16 %v4732
        %v4849 = vunpack.c.l.bf16 %v4733
        %v4850 = vunpack.c.h.bf16 %v4733
        %v4851 = vunpack.c.l.bf16 %v4734
        %v4852 = vunpack.c.h.bf16 %v4734
        %v4853 = vunpack.c.l.bf16 %v4735
        %v4854 = vunpack.c.h.bf16 %v4735
        %v4855 = vunpack.c.l.bf16 %v4736
        %v4856 = vunpack.c.h.bf16 %v4736
        %v4857 = vunpack.c.l.bf16 %v4737
        %v4858 = vunpack.c.h.bf16 %v4737
        %v4859 = vunpack.c.l.bf16 %v4738
        %v4860 = vunpack.c.h.bf16 %v4738
        %v4861 = vunpack.c.l.bf16 %v4739
        %v4862 = vunpack.c.h.bf16 %v4739
        %v4863 = vunpack.c.l.bf16 %v4740
        %v4864 = vunpack.c.h.bf16 %v4740
        %v4865 = vunpack.c.l.bf16 %v4741
        %v4866 = vunpack.c.h.bf16 %v4741
        %v4867 = vunpack.c.l.bf16 %v4742
        %v4868 = vunpack.c.h.bf16 %v4742
        %v4869 = vunpack.c.l.bf16 %v4743
        %v4870 = vunpack.c.h.bf16 %v4743
        %v4871 = vunpack.c.l.bf16 %v4744
        %v4872 = vunpack.c.h.bf16 %v4744
        %v4873 = vunpack.c.l.bf16 %v4745
        %v4874 = vunpack.c.h.bf16 %v4745
        %v4875 = vunpack.c.l.bf16 %v4746
        %v4876 = vunpack.c.h.bf16 %v4746
        %v4877 = vunpack.c.l.bf16 %v4747
        %v4878 = vunpack.c.h.bf16 %v4747
        %v4879 = vunpack.c.l.bf16 %v4748
        %v4880 = vunpack.c.h.bf16 %v4748
        %v4881 = vunpack.c.l.bf16 %v4749
        %v4882 = vunpack.c.h.bf16 %v4749
        %v4883 = vunpack.c.l.bf16 %v4750
        %v4884 = vunpack.c.h.bf16 %v4750
        %v4885 = vunpack.c.l.bf16 %v4751
        %v4886 = vunpack.c.h.bf16 %v4751
        %v4887 = vunpack.c.l.bf16 %v4752
        %v4888 = vunpack.c.h.bf16 %v4752
        %v4889 = vunpack.c.l.bf16 %v4753
        %v4890 = vunpack.c.h.bf16 %v4753
        %v4891 = vunpack.c.l.bf16 %v4754
        %v4892 = vunpack.c.h.bf16 %v4754
        %v4893 = vunpack.c.l.bf16 %v4755
        %v4894 = vunpack.c.h.bf16 %v4755
        %v4895 = vunpack.c.l.bf16 %v4756
        %v4896 = vunpack.c.h.bf16 %v4756
        %v4897 = vunpack.c.l.bf16 %v4757
        %v4898 = vunpack.c.h.bf16 %v4757
        %v4899 = vunpack.c.l.bf16 %v4758
        %v4900 = vunpack.c.h.bf16 %v4758
        %v4901 = vunpack.c.l.bf16 %v4759
        %v4902 = vunpack.c.h.bf16 %v4759
        %v4903 = vunpack.c.l.bf16 %v4760
        %v4904 = vunpack.c.h.bf16 %v4760
        %v4905 = vunpack.c.l.bf16 %v4761
        %v4906 = vunpack.c.h.bf16 %v4761
        %v4907 = vunpack.c.l.bf16 %v4762
        %v4908 = vunpack.c.h.bf16 %v4762
        %v4909 = vunpack.c.l.bf16 %v4763
        %v4910 = vunpack.c.h.bf16 %v4763
        %v4911 = vunpack.c.l.bf16 %v4764
        %v4912 = vunpack.c.h.bf16 %v4764
        %v4913 = vunpack.c.l.bf16 %v4765
        %v4914 = vunpack.c.h.bf16 %v4765
        %v4915 = vunpack.c.l.bf16 %v4766
        %v4916 = vunpack.c.h.bf16 %v4766
        %v4917 = vunpack.c.l.bf16 %v4767
        %v4918 = vunpack.c.h.bf16 %v4767
        %v4919 = vunpack.c.l.bf16 %v4768
        %v4920 = vunpack.c.h.bf16 %v4768
        %v4921 = vunpack.c.l.bf16 %v4769
        %v4922 = vunpack.c.h.bf16 %v4769
        %v4923 = vunpack.c.l.bf16 %v4770
        %v4924 = vunpack.c.h.bf16 %v4770
        %v4925 = vunpack.c.l.bf16 %v4771
        %v4926 = vunpack.c.h.bf16 %v4771
        %v4927 = vunpack.c.l.bf16 %v4772
        %v4928 = vunpack.c.h.bf16 %v4772
        %v4929 = vunpack.c.l.bf16 %v4773
        %v4930 = vunpack.c.h.bf16 %v4773
        %v4931 = vunpack.c.l.bf16 %v4774
        %v4932 = vunpack.c.h.bf16 %v4774
        %v4933 = vunpack.c.l.bf16 %v4775
        %v4934 = vunpack.c.h.bf16 %v4775
        %v4935 = vunpack.c.l.bf16 %v4776
        %v4936 = vunpack.c.h.bf16 %v4776
        %v4937 = vunpack.c.l.bf16 %v4777
        %v4938 = vunpack.c.h.bf16 %v4777
        %v4939 = vunpack.c.l.bf16 %v4778
        %v4940 = vunpack.c.h.bf16 %v4778
        %v4941 = vunpack.c.l.bf16 %v4779
        %v4942 = vunpack.c.h.bf16 %v4779
        %v4943 = vunpack.c.l.bf16 %v4780
        %v4944 = vunpack.c.h.bf16 %v4780
        %v4945 = vunpack.c.l.bf16 %v4781
        %v4946 = vunpack.c.h.bf16 %v4781
        %v4947 = vunpack.c.l.bf16 %v4782
        %v4948 = vunpack.c.h.bf16 %v4782
        %v4949 = vunpack.c.l.bf16 %v4783
        %v4950 = vunpack.c.h.bf16 %v4783
        %v4951 = vunpack.c.l.bf16 %v4784
        %v4952 = vunpack.c.h.bf16 %v4784
        %v4953 = vunpack.c.l.bf16 %v4785
        %v4954 = vunpack.c.h.bf16 %v4785
        %v4955 = vunpack.c.l.bf16 %v4786
        %v4956 = vunpack.c.h.bf16 %v4786
        %v4957 = vunpack.c.l.bf16 %v4787
        %v4958 = vunpack.c.h.bf16 %v4787
        %v4959 = vunpack.c.l.bf16 %v4788
        %v4960 = vunpack.c.h.bf16 %v4788
        %v4961 = vunpack.c.l.bf16 %v4789
        %v4962 = vunpack.c.h.bf16 %v4789
        %v4963 = vunpack.c.l.bf16 %v4790
        %v4964 = vunpack.c.h.bf16 %v4790
        %v4965 = vunpack.c.l.bf16 %v4791
        %v4966 = vunpack.c.h.bf16 %v4791
        %v4967 = vunpack.c.l.bf16 %v4792
        %v4968 = vunpack.c.h.bf16 %v4792
        %v4969 = vunpack.c.l.bf16 %v4793
        %v4970 = vunpack.c.h.bf16 %v4793
        %v4971 = vunpack.c.l.bf16 %v4794
        %v4972 = vunpack.c.h.bf16 %v4794
        %v4973 = vunpack.c.l.bf16 %v4795
        %v4974 = vunpack.c.h.bf16 %v4795
        %v4975 = vunpack.c.l.bf16 %v4796
        %v4976 = vunpack.c.h.bf16 %v4796
        %v4977 = vunpack.c.l.bf16 %v4797
        %v4978 = vunpack.c.h.bf16 %v4797
        %v4979 = vunpack.c.l.bf16 %v4798
        %v4980 = vunpack.c.h.bf16 %v4798
        %v4981 = vunpack.c.l.bf16 %v4799
        %v4982 = vunpack.c.h.bf16 %v4799
        %v4983 = vunpack.c.l.bf16 %v4800
        %v4984 = vunpack.c.h.bf16 %v4800
        %v4985 = vunpack.c.l.bf16 %v4801
        %v4986 = vunpack.c.h.bf16 %v4801
        %v4987 = vunpack.c.l.bf16 %v4802
        %v4988 = vunpack.c.h.bf16 %v4802
        %v4989 = vunpack.c.l.bf16 %v4803
        %v4990 = vunpack.c.h.bf16 %v4803
        %v4991 = vunpack.c.l.bf16 %v4804
        %v4992 = vunpack.c.h.bf16 %v4804
        %v4993 = vunpack.c.l.bf16 %v4805
        %v4994 = vunpack.c.h.bf16 %v4805
        %v4995 = vunpack.c.l.bf16 %v4806
        %v4996 = vunpack.c.h.bf16 %v4806
        %v4997 = vunpack.c.l.bf16 %v4807
        %v4998 = vunpack.c.h.bf16 %v4807
        %v4999 = vunpack.c.l.bf16 %v4808
        %v5000 = vunpack.c.h.bf16 %v4808
        %v5001 = vadd.f32 %v4521, %v4809
        %v5002 = vadd.f32 %v4522, %v4810
        %v5003 = vadd.f32 %v4523, %v4811
        %v5004 = vadd.f32 %v4524, %v4812
        %v5005 = vadd.f32 %v4525, %v4813
        %v5006 = vadd.f32 %v4526, %v4814
        %v5007 = vadd.f32 %v4527, %v4815
        %v5008 = vadd.f32 %v4528, %v4816
        %v5009 = vadd.f32 %v4529, %v4817
        %v5010 = vadd.f32 %v4530, %v4818
        %v5011 = vadd.f32 %v4531, %v4819
        %v5012 = vadd.f32 %v4532, %v4820
        %v5013 = vadd.f32 %v4533, %v4821
        %v5014 = vadd.f32 %v4534, %v4822
        %v5015 = vadd.f32 %v4535, %v4823
        %v5016 = vadd.f32 %v4536, %v4824
        %v5017 = vadd.f32 %v4537, %v4825
        %v5018 = vadd.f32 %v4538, %v4826
        %v5019 = vadd.f32 %v4539, %v4827
        %v5020 = vadd.f32 %v4540, %v4828
        %v5021 = vadd.f32 %v4541, %v4829
        %v5022 = vadd.f32 %v4542, %v4830
        %v5023 = vadd.f32 %v4543, %v4831
        %v5024 = vadd.f32 %v4544, %v4832
        %v5025 = vadd.f32 %v4545, %v4833
        %v5026 = vadd.f32 %v4546, %v4834
        %v5027 = vadd.f32 %v4547, %v4835
        %v5028 = vadd.f32 %v4548, %v4836
        %v5029 = vadd.f32 %v4549, %v4837
        %v5030 = vadd.f32 %v4550, %v4838
        %v5031 = vadd.f32 %v4551, %v4839
        %v5032 = vadd.f32 %v4552, %v4840
        %v5033 = vadd.f32 %v4553, %v4841
        %v5034 = vadd.f32 %v4554, %v4842
        %v5035 = vadd.f32 %v4555, %v4843
        %v5036 = vadd.f32 %v4556, %v4844
        %v5037 = vadd.f32 %v4557, %v4845
        %v5038 = vadd.f32 %v4558, %v4846
        %v5039 = vadd.f32 %v4559, %v4847
        %v5040 = vadd.f32 %v4560, %v4848
        %v5041 = vadd.f32 %v4561, %v4849
        %v5042 = vadd.f32 %v4562, %v4850
        %v5043 = vadd.f32 %v4563, %v4851
        %v5044 = vadd.f32 %v4564, %v4852
        %v5045 = vadd.f32 %v4565, %v4853
        %v5046 = vadd.f32 %v4566, %v4854
        %v5047 = vadd.f32 %v4567, %v4855
        %v5048 = vadd.f32 %v4568, %v4856
        %v5049 = vadd.f32 %v4569, %v4857
        %v5050 = vadd.f32 %v4570, %v4858
        %v5051 = vadd.f32 %v4571, %v4859
        %v5052 = vadd.f32 %v4572, %v4860
        %v5053 = vadd.f32 %v4573, %v4861
        %v5054 = vadd.f32 %v4574, %v4862
        %v5055 = vadd.f32 %v4575, %v4863
        %v5056 = vadd.f32 %v4576, %v4864
        %v5057 = vadd.f32 %v4577, %v4865
        %v5058 = vadd.f32 %v4578, %v4866
        %v5059 = vadd.f32 %v4579, %v4867
        %v5060 = vadd.f32 %v4580, %v4868
        %v5061 = vadd.f32 %v4581, %v4869
        %v5062 = vadd.f32 %v4582, %v4870
        %v5063 = vadd.f32 %v4583, %v4871
        %v5064 = vadd.f32 %v4584, %v4872
        %v5065 = vadd.f32 %v4585, %v4873
        %v5066 = vadd.f32 %v4586, %v4874
        %v5067 = vadd.f32 %v4587, %v4875
        %v5068 = vadd.f32 %v4588, %v4876
        %v5069 = vadd.f32 %v4589, %v4877
        %v5070 = vadd.f32 %v4590, %v4878
        %v5071 = vadd.f32 %v4591, %v4879
        %v5072 = vadd.f32 %v4592, %v4880
        %v5073 = vadd.f32 %v4593, %v4881
        %v5074 = vadd.f32 %v4594, %v4882
        %v5075 = vadd.f32 %v4595, %v4883
        %v5076 = vadd.f32 %v4596, %v4884
        %v5077 = vadd.f32 %v4597, %v4885
        %v5078 = vadd.f32 %v4598, %v4886
        %v5079 = vadd.f32 %v4599, %v4887
        %v5080 = vadd.f32 %v4600, %v4888
        %v5081 = vadd.f32 %v4601, %v4889
        %v5082 = vadd.f32 %v4602, %v4890
        %v5083 = vadd.f32 %v4603, %v4891
        %v5084 = vadd.f32 %v4604, %v4892
        %v5085 = vadd.f32 %v4605, %v4893
        %v5086 = vadd.f32 %v4606, %v4894
        %v5087 = vadd.f32 %v4607, %v4895
        %v5088 = vadd.f32 %v4608, %v4896
        %v5089 = vadd.f32 %v4609, %v4897
        %v5090 = vadd.f32 %v4610, %v4898
        %v5091 = vadd.f32 %v4611, %v4899
        %v5092 = vadd.f32 %v4612, %v4900
        %v5093 = vadd.f32 %v4613, %v4901
        %v5094 = vadd.f32 %v4614, %v4902
        %v5095 = vadd.f32 %v4615, %v4903
        %v5096 = vadd.f32 %v4616, %v4904
        %v5097 = vadd.f32 %v4617, %v4905
        %v5098 = vadd.f32 %v4618, %v4906
        %v5099 = vadd.f32 %v4619, %v4907
        %v5100 = vadd.f32 %v4620, %v4908
        %v5101 = vadd.f32 %v4621, %v4909
        %v5102 = vadd.f32 %v4622, %v4910
        %v5103 = vadd.f32 %v4623, %v4911
        %v5104 = vadd.f32 %v4624, %v4912
        %v5105 = vadd.f32 %v4625, %v4913
        %v5106 = vadd.f32 %v4626, %v4914
        %v5107 = vadd.f32 %v4627, %v4915
        %v5108 = vadd.f32 %v4628, %v4916
        %v5109 = vadd.f32 %v4629, %v4917
        %v5110 = vadd.f32 %v4630, %v4918
        %v5111 = vadd.f32 %v4631, %v4919
        %v5112 = vadd.f32 %v4632, %v4920
        %v5113 = vadd.f32 %v4633, %v4921
        %v5114 = vadd.f32 %v4634, %v4922
        %v5115 = vadd.f32 %v4635, %v4923
        %v5116 = vadd.f32 %v4636, %v4924
        %v5117 = vadd.f32 %v4637, %v4925
        %v5118 = vadd.f32 %v4638, %v4926
        %v5119 = vadd.f32 %v4639, %v4927
        %v5120 = vadd.f32 %v4640, %v4928
        %v5121 = vadd.f32 %v4641, %v4929
        %v5122 = vadd.f32 %v4642, %v4930
        %v5123 = vadd.f32 %v4643, %v4931
        %v5124 = vadd.f32 %v4644, %v4932
        %v5125 = vadd.f32 %v4645, %v4933
        %v5126 = vadd.f32 %v4646, %v4934
        %v5127 = vadd.f32 %v4647, %v4935
        %v5128 = vadd.f32 %v4648, %v4936
        %v5129 = vadd.f32 %v4649, %v4937
        %v5130 = vadd.f32 %v4650, %v4938
        %v5131 = vadd.f32 %v4651, %v4939
        %v5132 = vadd.f32 %v4652, %v4940
        %v5133 = vadd.f32 %v4653, %v4941
        %v5134 = vadd.f32 %v4654, %v4942
        %v5135 = vadd.f32 %v4655, %v4943
        %v5136 = vadd.f32 %v4656, %v4944
        %v5137 = vadd.f32 %v4657, %v4945
        %v5138 = vadd.f32 %v4658, %v4946
        %v5139 = vadd.f32 %v4659, %v4947
        %v5140 = vadd.f32 %v4660, %v4948
        %v5141 = vadd.f32 %v4661, %v4949
        %v5142 = vadd.f32 %v4662, %v4950
        %v5143 = vadd.f32 %v4663, %v4951
        %v5144 = vadd.f32 %v4664, %v4952
        %v5145 = vadd.f32 %v4665, %v4953
        %v5146 = vadd.f32 %v4666, %v4954
        %v5147 = vadd.f32 %v4667, %v4955
        %v5148 = vadd.f32 %v4668, %v4956
        %v5149 = vadd.f32 %v4669, %v4957
        %v5150 = vadd.f32 %v4670, %v4958
        %v5151 = vadd.f32 %v4671, %v4959
        %v5152 = vadd.f32 %v4672, %v4960
        %v5153 = vadd.f32 %v4673, %v4961
        %v5154 = vadd.f32 %v4674, %v4962
        %v5155 = vadd.f32 %v4675, %v4963
        %v5156 = vadd.f32 %v4676, %v4964
        %v5157 = vadd.f32 %v4677, %v4965
        %v5158 = vadd.f32 %v4678, %v4966
        %v5159 = vadd.f32 %v4679, %v4967
        %v5160 = vadd.f32 %v4680, %v4968
        %v5161 = vadd.f32 %v4681, %v4969
        %v5162 = vadd.f32 %v4682, %v4970
        %v5163 = vadd.f32 %v4683, %v4971
        %v5164 = vadd.f32 %v4684, %v4972
        %v5165 = vadd.f32 %v4685, %v4973
        %v5166 = vadd.f32 %v4686, %v4974
        %v5167 = vadd.f32 %v4687, %v4975
        %v5168 = vadd.f32 %v4688, %v4976
        %v5169 = vadd.f32 %v4689, %v4977
        %v5170 = vadd.f32 %v4690, %v4978
        %v5171 = vadd.f32 %v4691, %v4979
        %v5172 = vadd.f32 %v4692, %v4980
        %v5173 = vadd.f32 %v4693, %v4981
        %v5174 = vadd.f32 %v4694, %v4982
        %v5175 = vadd.f32 %v4695, %v4983
        %v5176 = vadd.f32 %v4696, %v4984
        %v5177 = vadd.f32 %v4697, %v4985
        %v5178 = vadd.f32 %v4698, %v4986
        %v5179 = vadd.f32 %v4699, %v4987
        %v5180 = vadd.f32 %v4700, %v4988
        %v5181 = vadd.f32 %v4701, %v4989
        %v5182 = vadd.f32 %v4702, %v4990
        %v5183 = vadd.f32 %v4703, %v4991
        %v5184 = vadd.f32 %v4704, %v4992
        %v5185 = vadd.f32 %v4705, %v4993
        %v5186 = vadd.f32 %v4706, %v4994
        %v5187 = vadd.f32 %v4707, %v4995
        %v5188 = vadd.f32 %v4708, %v4996
        %v5189 = vadd.f32 %v4709, %v4997
        %v5190 = vadd.f32 %v4710, %v4998
        %v5191 = vadd.f32 %v4711, %v4999
        %v5192 = vadd.f32 %v4712, %v5000
        %v5193 = vmax.f32 %v5001, 0.0
        %v5194 = vmax.f32 %v5002, 0.0
        %v5195 = vmax.f32 %v5003, 0.0
        %v5196 = vmax.f32 %v5004, 0.0
        %v5197 = vmax.f32 %v5005, 0.0
        %v5198 = vmax.f32 %v5006, 0.0
        %v5199 = vmax.f32 %v5007, 0.0
        %v5200 = vmax.f32 %v5008, 0.0
        %v5201 = vmax.f32 %v5009, 0.0
        %v5202 = vmax.f32 %v5010, 0.0
        %v5203 = vmax.f32 %v5011, 0.0
        %v5204 = vmax.f32 %v5012, 0.0
        %v5205 = vmax.f32 %v5013, 0.0
        %v5206 = vmax.f32 %v5014, 0.0
        %v5207 = vmax.f32 %v5015, 0.0
        %v5208 = vmax.f32 %v5016, 0.0
        %v5209 = vmax.f32 %v5017, 0.0
        %v5210 = vmax.f32 %v5018, 0.0
        %v5211 = vmax.f32 %v5019, 0.0
        %v5212 = vmax.f32 %v5020, 0.0
        %v5213 = vmax.f32 %v5021, 0.0
        %v5214 = vmax.f32 %v5022, 0.0
        %v5215 = vmax.f32 %v5023, 0.0
        %v5216 = vmax.f32 %v5024, 0.0
        %v5217 = vmax.f32 %v5025, 0.0
        %v5218 = vmax.f32 %v5026, 0.0
        %v5219 = vmax.f32 %v5027, 0.0
        %v5220 = vmax.f32 %v5028, 0.0
        %v5221 = vmax.f32 %v5029, 0.0
        %v5222 = vmax.f32 %v5030, 0.0
        %v5223 = vmax.f32 %v5031, 0.0
        %v5224 = vmax.f32 %v5032, 0.0
        %v5225 = vmax.f32 %v5033, 0.0
        %v5226 = vmax.f32 %v5034, 0.0
        %v5227 = vmax.f32 %v5035, 0.0
        %v5228 = vmax.f32 %v5036, 0.0
        %v5229 = vmax.f32 %v5037, 0.0
        %v5230 = vmax.f32 %v5038, 0.0
        %v5231 = vmax.f32 %v5039, 0.0
        %v5232 = vmax.f32 %v5040, 0.0
        %v5233 = vmax.f32 %v5041, 0.0
        %v5234 = vmax.f32 %v5042, 0.0
        %v5235 = vmax.f32 %v5043, 0.0
        %v5236 = vmax.f32 %v5044, 0.0
        %v5237 = vmax.f32 %v5045, 0.0
        %v5238 = vmax.f32 %v5046, 0.0
        %v5239 = vmax.f32 %v5047, 0.0
        %v5240 = vmax.f32 %v5048, 0.0
        %v5241 = vmax.f32 %v5049, 0.0
        %v5242 = vmax.f32 %v5050, 0.0
        %v5243 = vmax.f32 %v5051, 0.0
        %v5244 = vmax.f32 %v5052, 0.0
        %v5245 = vmax.f32 %v5053, 0.0
        %v5246 = vmax.f32 %v5054, 0.0
        %v5247 = vmax.f32 %v5055, 0.0
        %v5248 = vmax.f32 %v5056, 0.0
        %v5249 = vmax.f32 %v5057, 0.0
        %v5250 = vmax.f32 %v5058, 0.0
        %v5251 = vmax.f32 %v5059, 0.0
        %v5252 = vmax.f32 %v5060, 0.0
        %v5253 = vmax.f32 %v5061, 0.0
        %v5254 = vmax.f32 %v5062, 0.0
        %v5255 = vmax.f32 %v5063, 0.0
        %v5256 = vmax.f32 %v5064, 0.0
        %v5257 = vmax.f32 %v5065, 0.0
        %v5258 = vmax.f32 %v5066, 0.0
        %v5259 = vmax.f32 %v5067, 0.0
        %v5260 = vmax.f32 %v5068, 0.0
        %v5261 = vmax.f32 %v5069, 0.0
        %v5262 = vmax.f32 %v5070, 0.0
        %v5263 = vmax.f32 %v5071, 0.0
        %v5264 = vmax.f32 %v5072, 0.0
        %v5265 = vmax.f32 %v5073, 0.0
        %v5266 = vmax.f32 %v5074, 0.0
        %v5267 = vmax.f32 %v5075, 0.0
        %v5268 = vmax.f32 %v5076, 0.0
        %v5269 = vmax.f32 %v5077, 0.0
        %v5270 = vmax.f32 %v5078, 0.0
        %v5271 = vmax.f32 %v5079, 0.0
        %v5272 = vmax.f32 %v5080, 0.0
        %v5273 = vmax.f32 %v5081, 0.0
        %v5274 = vmax.f32 %v5082, 0.0
        %v5275 = vmax.f32 %v5083, 0.0
        %v5276 = vmax.f32 %v5084, 0.0
        %v5277 = vmax.f32 %v5085, 0.0
        %v5278 = vmax.f32 %v5086, 0.0
        %v5279 = vmax.f32 %v5087, 0.0
        %v5280 = vmax.f32 %v5088, 0.0
        %v5281 = vmax.f32 %v5089, 0.0
        %v5282 = vmax.f32 %v5090, 0.0
        %v5283 = vmax.f32 %v5091, 0.0
        %v5284 = vmax.f32 %v5092, 0.0
        %v5285 = vmax.f32 %v5093, 0.0
        %v5286 = vmax.f32 %v5094, 0.0
        %v5287 = vmax.f32 %v5095, 0.0
        %v5288 = vmax.f32 %v5096, 0.0
        %v5289 = vmax.f32 %v5097, 0.0
        %v5290 = vmax.f32 %v5098, 0.0
        %v5291 = vmax.f32 %v5099, 0.0
        %v5292 = vmax.f32 %v5100, 0.0
        %v5293 = vmax.f32 %v5101, 0.0
        %v5294 = vmax.f32 %v5102, 0.0
        %v5295 = vmax.f32 %v5103, 0.0
        %v5296 = vmax.f32 %v5104, 0.0
        %v5297 = vmax.f32 %v5105, 0.0
        %v5298 = vmax.f32 %v5106, 0.0
        %v5299 = vmax.f32 %v5107, 0.0
        %v5300 = vmax.f32 %v5108, 0.0
        %v5301 = vmax.f32 %v5109, 0.0
        %v5302 = vmax.f32 %v5110, 0.0
        %v5303 = vmax.f32 %v5111, 0.0
        %v5304 = vmax.f32 %v5112, 0.0
        %v5305 = vmax.f32 %v5113, 0.0
        %v5306 = vmax.f32 %v5114, 0.0
        %v5307 = vmax.f32 %v5115, 0.0
        %v5308 = vmax.f32 %v5116, 0.0
        %v5309 = vmax.f32 %v5117, 0.0
        %v5310 = vmax.f32 %v5118, 0.0
        %v5311 = vmax.f32 %v5119, 0.0
        %v5312 = vmax.f32 %v5120, 0.0
        %v5313 = vmax.f32 %v5121, 0.0
        %v5314 = vmax.f32 %v5122, 0.0
        %v5315 = vmax.f32 %v5123, 0.0
        %v5316 = vmax.f32 %v5124, 0.0
        %v5317 = vmax.f32 %v5125, 0.0
        %v5318 = vmax.f32 %v5126, 0.0
        %v5319 = vmax.f32 %v5127, 0.0
        %v5320 = vmax.f32 %v5128, 0.0
        %v5321 = vmax.f32 %v5129, 0.0
        %v5322 = vmax.f32 %v5130, 0.0
        %v5323 = vmax.f32 %v5131, 0.0
        %v5324 = vmax.f32 %v5132, 0.0
        %v5325 = vmax.f32 %v5133, 0.0
        %v5326 = vmax.f32 %v5134, 0.0
        %v5327 = vmax.f32 %v5135, 0.0
        %v5328 = vmax.f32 %v5136, 0.0
        %v5329 = vmax.f32 %v5137, 0.0
        %v5330 = vmax.f32 %v5138, 0.0
        %v5331 = vmax.f32 %v5139, 0.0
        %v5332 = vmax.f32 %v5140, 0.0
        %v5333 = vmax.f32 %v5141, 0.0
        %v5334 = vmax.f32 %v5142, 0.0
        %v5335 = vmax.f32 %v5143, 0.0
        %v5336 = vmax.f32 %v5144, 0.0
        %v5337 = vmax.f32 %v5145, 0.0
        %v5338 = vmax.f32 %v5146, 0.0
        %v5339 = vmax.f32 %v5147, 0.0
        %v5340 = vmax.f32 %v5148, 0.0
        %v5341 = vmax.f32 %v5149, 0.0
        %v5342 = vmax.f32 %v5150, 0.0
        %v5343 = vmax.f32 %v5151, 0.0
        %v5344 = vmax.f32 %v5152, 0.0
        %v5345 = vmax.f32 %v5153, 0.0
        %v5346 = vmax.f32 %v5154, 0.0
        %v5347 = vmax.f32 %v5155, 0.0
        %v5348 = vmax.f32 %v5156, 0.0
        %v5349 = vmax.f32 %v5157, 0.0
        %v5350 = vmax.f32 %v5158, 0.0
        %v5351 = vmax.f32 %v5159, 0.0
        %v5352 = vmax.f32 %v5160, 0.0
        %v5353 = vmax.f32 %v5161, 0.0
        %v5354 = vmax.f32 %v5162, 0.0
        %v5355 = vmax.f32 %v5163, 0.0
        %v5356 = vmax.f32 %v5164, 0.0
        %v5357 = vmax.f32 %v5165, 0.0
        %v5358 = vmax.f32 %v5166, 0.0
        %v5359 = vmax.f32 %v5167, 0.0
        %v5360 = vmax.f32 %v5168, 0.0
        %v5361 = vmax.f32 %v5169, 0.0
        %v5362 = vmax.f32 %v5170, 0.0
        %v5363 = vmax.f32 %v5171, 0.0
        %v5364 = vmax.f32 %v5172, 0.0
        %v5365 = vmax.f32 %v5173, 0.0
        %v5366 = vmax.f32 %v5174, 0.0
        %v5367 = vmax.f32 %v5175, 0.0
        %v5368 = vmax.f32 %v5176, 0.0
        %v5369 = vmax.f32 %v5177, 0.0
        %v5370 = vmax.f32 %v5178, 0.0
        %v5371 = vmax.f32 %v5179, 0.0
        %v5372 = vmax.f32 %v5180, 0.0
        %v5373 = vmax.f32 %v5181, 0.0
        %v5374 = vmax.f32 %v5182, 0.0
        %v5375 = vmax.f32 %v5183, 0.0
        %v5376 = vmax.f32 %v5184, 0.0
        %v5377 = vmax.f32 %v5185, 0.0
        %v5378 = vmax.f32 %v5186, 0.0
        %v5379 = vmax.f32 %v5187, 0.0
        %v5380 = vmax.f32 %v5188, 0.0
        %v5381 = vmax.f32 %v5189, 0.0
        %v5382 = vmax.f32 %v5190, 0.0
        %v5383 = vmax.f32 %v5191, 0.0
        %v5384 = vmax.f32 %v5192, 0.0
        %v5385 = vpack.c.bf16 %v5195, %v5193
        %v5386 = vpack.c.bf16 %v5196, %v5194
        %v5387 = vpack.c.bf16 %v5199, %v5197
        %v5388 = vpack.c.bf16 %v5200, %v5198
        %v5389 = vpack.c.bf16 %v5203, %v5201
        %v5390 = vpack.c.bf16 %v5204, %v5202
        %v5391 = vpack.c.bf16 %v5207, %v5205
        %v5392 = vpack.c.bf16 %v5208, %v5206
        %v5393 = vpack.c.bf16 %v5211, %v5209
        %v5394 = vpack.c.bf16 %v5212, %v5210
        %v5395 = vpack.c.bf16 %v5215, %v5213
        %v5396 = vpack.c.bf16 %v5216, %v5214
        %v5397 = vpack.c.bf16 %v5219, %v5217
        %v5398 = vpack.c.bf16 %v5220, %v5218
        %v5399 = vpack.c.bf16 %v5223, %v5221
        %v5400 = vpack.c.bf16 %v5224, %v5222
        %v5401 = vpack.c.bf16 %v5227, %v5225
        %v5402 = vpack.c.bf16 %v5228, %v5226
        %v5403 = vpack.c.bf16 %v5231, %v5229
        %v5404 = vpack.c.bf16 %v5232, %v5230
        %v5405 = vpack.c.bf16 %v5235, %v5233
        %v5406 = vpack.c.bf16 %v5236, %v5234
        %v5407 = vpack.c.bf16 %v5239, %v5237
        %v5408 = vpack.c.bf16 %v5240, %v5238
        %v5409 = vpack.c.bf16 %v5243, %v5241
        %v5410 = vpack.c.bf16 %v5244, %v5242
        %v5411 = vpack.c.bf16 %v5247, %v5245
        %v5412 = vpack.c.bf16 %v5248, %v5246
        %v5413 = vpack.c.bf16 %v5251, %v5249
        %v5414 = vpack.c.bf16 %v5252, %v5250
        %v5415 = vpack.c.bf16 %v5255, %v5253
        %v5416 = vpack.c.bf16 %v5256, %v5254
        %v5417 = vpack.c.bf16 %v5259, %v5257
        %v5418 = vpack.c.bf16 %v5260, %v5258
        %v5419 = vpack.c.bf16 %v5263, %v5261
        %v5420 = vpack.c.bf16 %v5264, %v5262
        %v5421 = vpack.c.bf16 %v5267, %v5265
        %v5422 = vpack.c.bf16 %v5268, %v5266
        %v5423 = vpack.c.bf16 %v5271, %v5269
        %v5424 = vpack.c.bf16 %v5272, %v5270
        %v5425 = vpack.c.bf16 %v5275, %v5273
        %v5426 = vpack.c.bf16 %v5276, %v5274
        %v5427 = vpack.c.bf16 %v5279, %v5277
        %v5428 = vpack.c.bf16 %v5280, %v5278
        %v5429 = vpack.c.bf16 %v5283, %v5281
        %v5430 = vpack.c.bf16 %v5284, %v5282
        %v5431 = vpack.c.bf16 %v5287, %v5285
        %v5432 = vpack.c.bf16 %v5288, %v5286
        %v5433 = vpack.c.bf16 %v5291, %v5289
        %v5434 = vpack.c.bf16 %v5292, %v5290
        %v5435 = vpack.c.bf16 %v5295, %v5293
        %v5436 = vpack.c.bf16 %v5296, %v5294
        %v5437 = vpack.c.bf16 %v5299, %v5297
        %v5438 = vpack.c.bf16 %v5300, %v5298
        %v5439 = vpack.c.bf16 %v5303, %v5301
        %v5440 = vpack.c.bf16 %v5304, %v5302
        %v5441 = vpack.c.bf16 %v5307, %v5305
        %v5442 = vpack.c.bf16 %v5308, %v5306
        %v5443 = vpack.c.bf16 %v5311, %v5309
        %v5444 = vpack.c.bf16 %v5312, %v5310
        %v5445 = vpack.c.bf16 %v5315, %v5313
        %v5446 = vpack.c.bf16 %v5316, %v5314
        %v5447 = vpack.c.bf16 %v5319, %v5317
        %v5448 = vpack.c.bf16 %v5320, %v5318
        %v5449 = vpack.c.bf16 %v5323, %v5321
        %v5450 = vpack.c.bf16 %v5324, %v5322
        %v5451 = vpack.c.bf16 %v5327, %v5325
        %v5452 = vpack.c.bf16 %v5328, %v5326
        %v5453 = vpack.c.bf16 %v5331, %v5329
        %v5454 = vpack.c.bf16 %v5332, %v5330
        %v5455 = vpack.c.bf16 %v5335, %v5333
        %v5456 = vpack.c.bf16 %v5336, %v5334
        %v5457 = vpack.c.bf16 %v5339, %v5337
        %v5458 = vpack.c.bf16 %v5340, %v5338
        %v5459 = vpack.c.bf16 %v5343, %v5341
        %v5460 = vpack.c.bf16 %v5344, %v5342
        %v5461 = vpack.c.bf16 %v5347, %v5345
        %v5462 = vpack.c.bf16 %v5348, %v5346
        %v5463 = vpack.c.bf16 %v5351, %v5349
        %v5464 = vpack.c.bf16 %v5352, %v5350
        %v5465 = vpack.c.bf16 %v5355, %v5353
        %v5466 = vpack.c.bf16 %v5356, %v5354
        %v5467 = vpack.c.bf16 %v5359, %v5357
        %v5468 = vpack.c.bf16 %v5360, %v5358
        %v5469 = vpack.c.bf16 %v5363, %v5361
        %v5470 = vpack.c.bf16 %v5364, %v5362
        %v5471 = vpack.c.bf16 %v5367, %v5365
        %v5472 = vpack.c.bf16 %v5368, %v5366
        %v5473 = vpack.c.bf16 %v5371, %v5369
        %v5474 = vpack.c.bf16 %v5372, %v5370
        %v5475 = vpack.c.bf16 %v5375, %v5373
        %v5476 = vpack.c.bf16 %v5376, %v5374
        %v5477 = vpack.c.bf16 %v5379, %v5377
        %v5478 = vpack.c.bf16 %v5380, %v5378
        %v5479 = vpack.c.bf16 %v5383, %v5381
        %v5480 = vpack.c.bf16 %v5384, %v5382
        %5481 = vst [vmem:[#allocation2] sm:$0xff] %v5385
        %5482 = vst [vmem:[#allocation2 + $0x8] sm:$0xff] %v5386
        %5483 = vst [vmem:[#allocation2 + $0x10] sm:$0xff] %v5387
        %5484 = vst [vmem:[#allocation2 + $0x18] sm:$0xff] %v5388
        %5485 = vst [vmem:[#allocation2 + $0x20] sm:$0xff] %v5389
        %5486 = vst [vmem:[#allocation2 + $0x28] sm:$0xff] %v5390
        %5487 = vst [vmem:[#allocation2 + $0x30] sm:$0xff] %v5391
        %5488 = vst [vmem:[#allocation2 + $0x38] sm:$0xff] %v5392
        %5489 = vst [vmem:[#allocation2 + $0x40] sm:$0xff] %v5393
        %5490 = vst [vmem:[#allocation2 + $0x48] sm:$0xff] %v5394
        %5491 = vst [vmem:[#allocation2 + $0x50] sm:$0xff] %v5395
        %5492 = vst [vmem:[#allocation2 + $0x58] sm:$0xff] %v5396
        %5493 = vst [vmem:[#allocation2 + $0x60] sm:$0xff] %v5397
        %5494 = vst [vmem:[#allocation2 + $0x68] sm:$0xff] %v5398
        %5495 = vst [vmem:[#allocation2 + $0x70] sm:$0xff] %v5399
        %5496 = vst [vmem:[#allocation2 + $0x78] sm:$0xff] %v5400
        %5497 = vst [vmem:[#allocation2 + $0x80] sm:$0xff] %v5401
        %5498 = vst [vmem:[#allocation2 + $0x88] sm:$0xff] %v5402
        %5499 = vst [vmem:[#allocation2 + $0x90] sm:$0xff] %v5403
        %5500 = vst [vmem:[#allocation2 + $0x98] sm:$0xff] %v5404
        %5501 = vst [vmem:[#allocation2 + $0xa0] sm:$0xff] %v5405
        %5502 = vst [vmem:[#allocation2 + $0xa8] sm:$0xff] %v5406
        %5503 = vst [vmem:[#allocation2 + $0xb0] sm:$0xff] %v5407
        %5504 = vst [vmem:[#allocation2 + $0xb8] sm:$0xff] %v5408
        %5505 = vst [vmem:[#allocation2 + $0xc0] sm:$0xff] %v5409
        %5506 = vst [vmem:[#allocation2 + $0xc8] sm:$0xff] %v5410
        %5507 = vst [vmem:[#allocation2 + $0xd0] sm:$0xff] %v5411
        %5508 = vst [vmem:[#allocation2 + $0xd8] sm:$0xff] %v5412
        %5509 = vst [vmem:[#allocation2 + $0xe0] sm:$0xff] %v5413
        %5510 = vst [vmem:[#allocation2 + $0xe8] sm:$0xff] %v5414
        %5511 = vst [vmem:[#allocation2 + $0xf0] sm:$0xff] %v5415
        %5512 = vst [vmem:[#allocation2 + $0xf8] sm:$0xff] %v5416
        %5513 = vst [vmem:[#allocation2 + $0x100] sm:$0xff] %v5417
        %5514 = vst [vmem:[#allocation2 + $0x108] sm:$0xff] %v5418
        %5515 = vst [vmem:[#allocation2 + $0x110] sm:$0xff] %v5419
        %5516 = vst [vmem:[#allocation2 + $0x118] sm:$0xff] %v5420
        %5517 = vst [vmem:[#allocation2 + $0x120] sm:$0xff] %v5421
        %5518 = vst [vmem:[#allocation2 + $0x128] sm:$0xff] %v5422
        %5519 = vst [vmem:[#allocation2 + $0x130] sm:$0xff] %v5423
        %5520 = vst [vmem:[#allocation2 + $0x138] sm:$0xff] %v5424
        %5521 = vst [vmem:[#allocation2 + $0x140] sm:$0xff] %v5425
        %5522 = vst [vmem:[#allocation2 + $0x148] sm:$0xff] %v5426
        %5523 = vst [vmem:[#allocation2 + $0x150] sm:$0xff] %v5427
        %5524 = vst [vmem:[#allocation2 + $0x158] sm:$0xff] %v5428
        %5525 = vst [vmem:[#allocation2 + $0x160] sm:$0xff] %v5429
        %5526 = vst [vmem:[#allocation2 + $0x168] sm:$0xff] %v5430
        %5527 = vst [vmem:[#allocation2 + $0x170] sm:$0xff] %v5431
        %5528 = vst [vmem:[#allocation2 + $0x178] sm:$0xff] %v5432
        %5529 = vst [vmem:[#allocation2 + $0x180] sm:$0xff] %v5433
        %5530 = vst [vmem:[#allocation2 + $0x188] sm:$0xff] %v5434
        %5531 = vst [vmem:[#allocation2 + $0x190] sm:$0xff] %v5435
        %5532 = vst [vmem:[#allocation2 + $0x198] sm:$0xff] %v5436
        %5533 = vst [vmem:[#allocation2 + $0x1a0] sm:$0xff] %v5437
        %5534 = vst [vmem:[#allocation2 + $0x1a8] sm:$0xff] %v5438
        %5535 = vst [vmem:[#allocation2 + $0x1b0] sm:$0xff] %v5439
        %5536 = vst [vmem:[#allocation2 + $0x1b8] sm:$0xff] %v5440
        %5537 = vst [vmem:[#allocation2 + $0x1c0] sm:$0xff] %v5441
        %5538 = vst [vmem:[#allocation2 + $0x1c8] sm:$0xff] %v5442
        %5539 = vst [vmem:[#allocation2 + $0x1d0] sm:$0xff] %v5443
        %5540 = vst [vmem:[#allocation2 + $0x1d8] sm:$0xff] %v5444
        %5541 = vst [vmem:[#allocation2 + $0x1e0] sm:$0xff] %v5445
        %5542 = vst [vmem:[#allocation2 + $0x1e8] sm:$0xff] %v5446
        %5543 = vst [vmem:[#allocation2 + $0x1f0] sm:$0xff] %v5447
        %5544 = vst [vmem:[#allocation2 + $0x1f8] sm:$0xff] %v5448
        %5545 = vst [vmem:[#allocation2 + $0x200] sm:$0xff] %v5449
        %5546 = vst [vmem:[#allocation2 + $0x208] sm:$0xff] %v5450
        %5547 = vst [vmem:[#allocation2 + $0x210] sm:$0xff] %v5451
        %5548 = vst [vmem:[#allocation2 + $0x218] sm:$0xff] %v5452
        %5549 = vst [vmem:[#allocation2 + $0x220] sm:$0xff] %v5453
        %5550 = vst [vmem:[#allocation2 + $0x228] sm:$0xff] %v5454
        %5551 = vst [vmem:[#allocation2 + $0x230] sm:$0xff] %v5455
        %5552 = vst [vmem:[#allocation2 + $0x238] sm:$0xff] %v5456
        %5553 = vst [vmem:[#allocation2 + $0x240] sm:$0xff] %v5457
        %5554 = vst [vmem:[#allocation2 + $0x248] sm:$0xff] %v5458
        %5555 = vst [vmem:[#allocation2 + $0x250] sm:$0xff] %v5459
        %5556 = vst [vmem:[#allocation2 + $0x258] sm:$0xff] %v5460
        %5557 = vst [vmem:[#allocation2 + $0x260] sm:$0xff] %v5461
        %5558 = vst [vmem:[#allocation2 + $0x268] sm:$0xff] %v5462
        %5559 = vst [vmem:[#allocation2 + $0x270] sm:$0xff] %v5463
        %5560 = vst [vmem:[#allocation2 + $0x278] sm:$0xff] %v5464
        %5561 = vst [vmem:[#allocation2 + $0x280] sm:$0xff] %v5465
        %5562 = vst [vmem:[#allocation2 + $0x288] sm:$0xff] %v5466
        %5563 = vst [vmem:[#allocation2 + $0x290] sm:$0xff] %v5467
        %5564 = vst [vmem:[#allocation2 + $0x298] sm:$0xff] %v5468
        %5565 = vst [vmem:[#allocation2 + $0x2a0] sm:$0xff] %v5469
        %5566 = vst [vmem:[#allocation2 + $0x2a8] sm:$0xff] %v5470
        %5567 = vst [vmem:[#allocation2 + $0x2b0] sm:$0xff] %v5471
        %5568 = vst [vmem:[#allocation2 + $0x2b8] sm:$0xff] %v5472
        %5569 = vst [vmem:[#allocation2 + $0x2c0] sm:$0xff] %v5473
        %5570 = vst [vmem:[#allocation2 + $0x2c8] sm:$0xff] %v5474
        %5571 = vst [vmem:[#allocation2 + $0x2d0] sm:$0xff] %v5475
        %5572 = vst [vmem:[#allocation2 + $0x2d8] sm:$0xff] %v5476
        %5573 = vst [vmem:[#allocation2 + $0x2e0] sm:$0xff] %v5477
        %5574 = vst [vmem:[#allocation2 + $0x2e8] sm:$0xff] %v5478
        %5575 = vst [vmem:[#allocation2 + $0x2f0] sm:$0xff] %v5479
        %5576 = vst [vmem:[#allocation2 + $0x2f8] sm:$0xff] %v5480
      $region48: #{fused_forward.1} parent=43 // pred_fallthru
        _
      %v5577 = vld [vmem:[%s251] sm:$0xff]
      %v5578 = vld [vmem:[%s251 + $0x8] sm:$0xff]
      %v5579 = vld [vmem:[%s251 + $0x10] sm:$0xff]
      %v5580 = vld [vmem:[%s251 + $0x18] sm:$0xff]
      %v5581 = vld [vmem:[%s251 + $0x20] sm:$0xff]
      %v5582 = vld [vmem:[%s251 + $0x28] sm:$0xff]
      %v5583 = vld [vmem:[%s251 + $0x30] sm:$0xff]
      %v5584 = vld [vmem:[%s251 + $0x38] sm:$0xff]
      %v5585 = vld [vmem:[%s251 + $0x40] sm:$0xff]
      %v5586 = vld [vmem:[%s251 + $0x48] sm:$0xff]
      %v5587 = vld [vmem:[%s251 + $0x50] sm:$0xff]
      %v5588 = vld [vmem:[%s251 + $0x58] sm:$0xff]
      %v5589 = vld [vmem:[%s251 + $0x60] sm:$0xff]
      %v5590 = vld [vmem:[%s251 + $0x68] sm:$0xff]
      %v5591 = vld [vmem:[%s251 + $0x70] sm:$0xff]
      %v5592 = vld [vmem:[%s251 + $0x78] sm:$0xff]
      %v5593 = vld [vmem:[%s251 + $0x80] sm:$0xff]
      %v5594 = vld [vmem:[%s251 + $0x88] sm:$0xff]
      %v5595 = vld [vmem:[%s251 + $0x90] sm:$0xff]
      %v5596 = vld [vmem:[%s251 + $0x98] sm:$0xff]
      %v5597 = vld [vmem:[%s251 + $0xa0] sm:$0xff]
      %v5598 = vld [vmem:[%s251 + $0xa8] sm:$0xff]
      %v5599 = vld [vmem:[%s251 + $0xb0] sm:$0xff]
      %v5600 = vld [vmem:[%s251 + $0xb8] sm:$0xff]
      %v5601 = vld [vmem:[%s251 + $0xc0] sm:$0xff]
      %v5602 = vld [vmem:[%s251 + $0xc8] sm:$0xff]
      %v5603 = vld [vmem:[%s251 + $0xd0] sm:$0xff]
      %v5604 = vld [vmem:[%s251 + $0xd8] sm:$0xff]
      %v5605 = vld [vmem:[%s251 + $0xe0] sm:$0xff]
      %v5606 = vld [vmem:[%s251 + $0xe8] sm:$0xff]
      %v5607 = vld [vmem:[%s251 + $0xf0] sm:$0xff]
      %v5608 = vld [vmem:[%s251 + $0xf8] sm:$0xff]
      %v5609 = vld [vmem:[%s251 + $0x100] sm:$0xff]
      %v5610 = vld [vmem:[%s251 + $0x108] sm:$0xff]
      %v5611 = vld [vmem:[%s251 + $0x110] sm:$0xff]
      %v5612 = vld [vmem:[%s251 + $0x118] sm:$0xff]
      %v5613 = vld [vmem:[%s251 + $0x120] sm:$0xff]
      %v5614 = vld [vmem:[%s251 + $0x128] sm:$0xff]
      %v5615 = vld [vmem:[%s251 + $0x130] sm:$0xff]
      %v5616 = vld [vmem:[%s251 + $0x138] sm:$0xff]
      %v5617 = vld [vmem:[%s251 + $0x140] sm:$0xff]
      %v5618 = vld [vmem:[%s251 + $0x148] sm:$0xff]
      %v5619 = vld [vmem:[%s251 + $0x150] sm:$0xff]
      %v5620 = vld [vmem:[%s251 + $0x158] sm:$0xff]
      %v5621 = vld [vmem:[%s251 + $0x160] sm:$0xff]
      %v5622 = vld [vmem:[%s251 + $0x168] sm:$0xff]
      %v5623 = vld [vmem:[%s251 + $0x170] sm:$0xff]
      %v5624 = vld [vmem:[%s251 + $0x178] sm:$0xff]
      %v5625 = vld [vmem:[%s251 + $0x180] sm:$0xff]
      %v5626 = vld [vmem:[%s251 + $0x188] sm:$0xff]
      %v5627 = vld [vmem:[%s251 + $0x190] sm:$0xff]
      %v5628 = vld [vmem:[%s251 + $0x198] sm:$0xff]
      %v5629 = vld [vmem:[%s251 + $0x1a0] sm:$0xff]
      %v5630 = vld [vmem:[%s251 + $0x1a8] sm:$0xff]
      %v5631 = vld [vmem:[%s251 + $0x1b0] sm:$0xff]
      %v5632 = vld [vmem:[%s251 + $0x1b8] sm:$0xff]
      %v5633 = vld [vmem:[%s251 + $0x1c0] sm:$0xff]
      %v5634 = vld [vmem:[%s251 + $0x1c8] sm:$0xff]
      %v5635 = vld [vmem:[%s251 + $0x1d0] sm:$0xff]
      %v5636 = vld [vmem:[%s251 + $0x1d8] sm:$0xff]
      %v5637 = vld [vmem:[%s251 + $0x1e0] sm:$0xff]
      %v5638 = vld [vmem:[%s251 + $0x1e8] sm:$0xff]
      %v5639 = vld [vmem:[%s251 + $0x1f0] sm:$0xff]
      %v5640 = vld [vmem:[%s251 + $0x1f8] sm:$0xff]
      %v5641 = vld [vmem:[%s251 + $0x200] sm:$0xff]
      %v5642 = vld [vmem:[%s251 + $0x208] sm:$0xff]
      %v5643 = vld [vmem:[%s251 + $0x210] sm:$0xff]
      %v5644 = vld [vmem:[%s251 + $0x218] sm:$0xff]
      %v5645 = vld [vmem:[%s251 + $0x220] sm:$0xff]
      %v5646 = vld [vmem:[%s251 + $0x228] sm:$0xff]
      %v5647 = vld [vmem:[%s251 + $0x230] sm:$0xff]
      %v5648 = vld [vmem:[%s251 + $0x238] sm:$0xff]
      %v5649 = vld [vmem:[%s251 + $0x240] sm:$0xff]
      %v5650 = vld [vmem:[%s251 + $0x248] sm:$0xff]
      %v5651 = vld [vmem:[%s251 + $0x250] sm:$0xff]
      %v5652 = vld [vmem:[%s251 + $0x258] sm:$0xff]
      %v5653 = vld [vmem:[%s251 + $0x260] sm:$0xff]
      %v5654 = vld [vmem:[%s251 + $0x268] sm:$0xff]
      %v5655 = vld [vmem:[%s251 + $0x270] sm:$0xff]
      %v5656 = vld [vmem:[%s251 + $0x278] sm:$0xff]
      %v5657 = vld [vmem:[%s251 + $0x280] sm:$0xff]
      %v5658 = vld [vmem:[%s251 + $0x288] sm:$0xff]
      %v5659 = vld [vmem:[%s251 + $0x290] sm:$0xff]
      %v5660 = vld [vmem:[%s251 + $0x298] sm:$0xff]
      %v5661 = vld [vmem:[%s251 + $0x2a0] sm:$0xff]
      %v5662 = vld [vmem:[%s251 + $0x2a8] sm:$0xff]
      %v5663 = vld [vmem:[%s251 + $0x2b0] sm:$0xff]
      %v5664 = vld [vmem:[%s251 + $0x2b8] sm:$0xff]
      %v5665 = vld [vmem:[%s251 + $0x2c0] sm:$0xff]
      %v5666 = vld [vmem:[%s251 + $0x2c8] sm:$0xff]
      %v5667 = vld [vmem:[%s251 + $0x2d0] sm:$0xff]
      %v5668 = vld [vmem:[%s251 + $0x2d8] sm:$0xff]
      %v5669 = vld [vmem:[%s251 + $0x2e0] sm:$0xff]
      %v5670 = vld [vmem:[%s251 + $0x2e8] sm:$0xff]
      %v5671 = vld [vmem:[%s251 + $0x2f0] sm:$0xff]
      %v5672 = vld [vmem:[%s251 + $0x2f8] sm:$0xff]
      %v5673 = vld [vmem:[#allocation2] sm:$0xff]
      %v5674 = vld [vmem:[#allocation2 + $0x8] sm:$0xff]
      %v5675 = vld [vmem:[#allocation2 + $0x10] sm:$0xff]
      %v5676 = vld [vmem:[#allocation2 + $0x18] sm:$0xff]
      %v5677 = vld [vmem:[#allocation2 + $0x20] sm:$0xff]
      %v5678 = vld [vmem:[#allocation2 + $0x28] sm:$0xff]
      %v5679 = vld [vmem:[#allocation2 + $0x30] sm:$0xff]
      %v5680 = vld [vmem:[#allocation2 + $0x38] sm:$0xff]
      %v5681 = vld [vmem:[#allocation2 + $0x40] sm:$0xff]
      %v5682 = vld [vmem:[#allocation2 + $0x48] sm:$0xff]
      %v5683 = vld [vmem:[#allocation2 + $0x50] sm:$0xff]
      %v5684 = vld [vmem:[#allocation2 + $0x58] sm:$0xff]
      %v5685 = vld [vmem:[#allocation2 + $0x60] sm:$0xff]
      %v5686 = vld [vmem:[#allocation2 + $0x68] sm:$0xff]
      %v5687 = vld [vmem:[#allocation2 + $0x70] sm:$0xff]
      %v5688 = vld [vmem:[#allocation2 + $0x78] sm:$0xff]
      %v5689 = vld [vmem:[#allocation2 + $0x80] sm:$0xff]
      %v5690 = vld [vmem:[#allocation2 + $0x88] sm:$0xff]
      %v5691 = vld [vmem:[#allocation2 + $0x90] sm:$0xff]
      %v5692 = vld [vmem:[#allocation2 + $0x98] sm:$0xff]
      %v5693 = vld [vmem:[#allocation2 + $0xa0] sm:$0xff]
      %v5694 = vld [vmem:[#allocation2 + $0xa8] sm:$0xff]
      %v5695 = vld [vmem:[#allocation2 + $0xb0] sm:$0xff]
      %v5696 = vld [vmem:[#allocation2 + $0xb8] sm:$0xff]
      %v5697 = vld [vmem:[#allocation2 + $0xc0] sm:$0xff]
      %v5698 = vld [vmem:[#allocation2 + $0xc8] sm:$0xff]
      %v5699 = vld [vmem:[#allocation2 + $0xd0] sm:$0xff]
      %v5700 = vld [vmem:[#allocation2 + $0xd8] sm:$0xff]
      %v5701 = vld [vmem:[#allocation2 + $0xe0] sm:$0xff]
      %v5702 = vld [vmem:[#allocation2 + $0xe8] sm:$0xff]
      %v5703 = vld [vmem:[#allocation2 + $0xf0] sm:$0xff]
      %v5704 = vld [vmem:[#allocation2 + $0xf8] sm:$0xff]
      %v5705 = vld [vmem:[#allocation2 + $0x100] sm:$0xff]
      %v5706 = vld [vmem:[#allocation2 + $0x108] sm:$0xff]
      %v5707 = vld [vmem:[#allocation2 + $0x110] sm:$0xff]
      %v5708 = vld [vmem:[#allocation2 + $0x118] sm:$0xff]
      %v5709 = vld [vmem:[#allocation2 + $0x120] sm:$0xff]
      %v5710 = vld [vmem:[#allocation2 + $0x128] sm:$0xff]
      %v5711 = vld [vmem:[#allocation2 + $0x130] sm:$0xff]
      %v5712 = vld [vmem:[#allocation2 + $0x138] sm:$0xff]
      %v5713 = vld [vmem:[#allocation2 + $0x140] sm:$0xff]
      %v5714 = vld [vmem:[#allocation2 + $0x148] sm:$0xff]
      %v5715 = vld [vmem:[#allocation2 + $0x150] sm:$0xff]
      %v5716 = vld [vmem:[#allocation2 + $0x158] sm:$0xff]
      %v5717 = vld [vmem:[#allocation2 + $0x160] sm:$0xff]
      %v5718 = vld [vmem:[#allocation2 + $0x168] sm:$0xff]
      %v5719 = vld [vmem:[#allocation2 + $0x170] sm:$0xff]
      %v5720 = vld [vmem:[#allocation2 + $0x178] sm:$0xff]
      %v5721 = vld [vmem:[#allocation2 + $0x180] sm:$0xff]
      %v5722 = vld [vmem:[#allocation2 + $0x188] sm:$0xff]
      %v5723 = vld [vmem:[#allocation2 + $0x190] sm:$0xff]
      %v5724 = vld [vmem:[#allocation2 + $0x198] sm:$0xff]
      %v5725 = vld [vmem:[#allocation2 + $0x1a0] sm:$0xff]
      %v5726 = vld [vmem:[#allocation2 + $0x1a8] sm:$0xff]
      %v5727 = vld [vmem:[#allocation2 + $0x1b0] sm:$0xff]
      %v5728 = vld [vmem:[#allocation2 + $0x1b8] sm:$0xff]
      %v5729 = vld [vmem:[#allocation2 + $0x1c0] sm:$0xff]
      %v5730 = vld [vmem:[#allocation2 + $0x1c8] sm:$0xff]
      %v5731 = vld [vmem:[#allocation2 + $0x1d0] sm:$0xff]
      %v5732 = vld [vmem:[#allocation2 + $0x1d8] sm:$0xff]
      %v5733 = vld [vmem:[#allocation2 + $0x1e0] sm:$0xff]
      %v5734 = vld [vmem:[#allocation2 + $0x1e8] sm:$0xff]
      %v5735 = vld [vmem:[#allocation2 + $0x1f0] sm:$0xff]
      %v5736 = vld [vmem:[#allocation2 + $0x1f8] sm:$0xff]
      %v5737 = vld [vmem:[#allocation2 + $0x200] sm:$0xff]
      %v5738 = vld [vmem:[#allocation2 + $0x208] sm:$0xff]
      %v5739 = vld [vmem:[#allocation2 + $0x210] sm:$0xff]
      %v5740 = vld [vmem:[#allocation2 + $0x218] sm:$0xff]
      %v5741 = vld [vmem:[#allocation2 + $0x220] sm:$0xff]
      %v5742 = vld [vmem:[#allocation2 + $0x228] sm:$0xff]
      %v5743 = vld [vmem:[#allocation2 + $0x230] sm:$0xff]
      %v5744 = vld [vmem:[#allocation2 + $0x238] sm:$0xff]
      %v5745 = vld [vmem:[#allocation2 + $0x240] sm:$0xff]
      %v5746 = vld [vmem:[#allocation2 + $0x248] sm:$0xff]
      %v5747 = vld [vmem:[#allocation2 + $0x250] sm:$0xff]
      %v5748 = vld [vmem:[#allocation2 + $0x258] sm:$0xff]
      %v5749 = vld [vmem:[#allocation2 + $0x260] sm:$0xff]
      %v5750 = vld [vmem:[#allocation2 + $0x268] sm:$0xff]
      %v5751 = vld [vmem:[#allocation2 + $0x270] sm:$0xff]
      %v5752 = vld [vmem:[#allocation2 + $0x278] sm:$0xff]
      %v5753 = vld [vmem:[#allocation2 + $0x280] sm:$0xff]
      %v5754 = vld [vmem:[#allocation2 + $0x288] sm:$0xff]
      %v5755 = vld [vmem:[#allocation2 + $0x290] sm:$0xff]
      %v5756 = vld [vmem:[#allocation2 + $0x298] sm:$0xff]
      %v5757 = vld [vmem:[#allocation2 + $0x2a0] sm:$0xff]
      %v5758 = vld [vmem:[#allocation2 + $0x2a8] sm:$0xff]
      %v5759 = vld [vmem:[#allocation2 + $0x2b0] sm:$0xff]
      %v5760 = vld [vmem:[#allocation2 + $0x2b8] sm:$0xff]
      %v5761 = vld [vmem:[#allocation2 + $0x2c0] sm:$0xff]
      %v5762 = vld [vmem:[#allocation2 + $0x2c8] sm:$0xff]
      %v5763 = vld [vmem:[#allocation2 + $0x2d0] sm:$0xff]
      %v5764 = vld [vmem:[#allocation2 + $0x2d8] sm:$0xff]
      %v5765 = vld [vmem:[#allocation2 + $0x2e0] sm:$0xff]
      %v5766 = vld [vmem:[#allocation2 + $0x2e8] sm:$0xff]
      %v5767 = vld [vmem:[#allocation2 + $0x2f0] sm:$0xff]
      %v5768 = vld [vmem:[#allocation2 + $0x2f8] sm:$0xff]
      %v5865 = vunpack.c.l.b16 %v5577
      %v5866 = vunpack.c.h.b16 %v5577
      %v5867 = vunpack.c.l.b16 %v5578
      %v5868 = vunpack.c.h.b16 %v5578
      %v5869 = vunpack.c.l.b16 %v5579
      %v5870 = vunpack.c.h.b16 %v5579
      %v5871 = vunpack.c.l.b16 %v5580
      %v5872 = vunpack.c.h.b16 %v5580
      %v5873 = vunpack.c.l.b16 %v5581
      %v5874 = vunpack.c.h.b16 %v5581
      %v5875 = vunpack.c.l.b16 %v5582
      %v5876 = vunpack.c.h.b16 %v5582
      %v5877 = vunpack.c.l.b16 %v5583
      %v5878 = vunpack.c.h.b16 %v5583
      %v5879 = vunpack.c.l.b16 %v5584
      %v5880 = vunpack.c.h.b16 %v5584
      %v5881 = vunpack.c.l.b16 %v5585
      %v5882 = vunpack.c.h.b16 %v5585
      %v5883 = vunpack.c.l.b16 %v5586
      %v5884 = vunpack.c.h.b16 %v5586
      %v5885 = vunpack.c.l.b16 %v5587
      %v5886 = vunpack.c.h.b16 %v5587
      %v5887 = vunpack.c.l.b16 %v5588
      %v5888 = vunpack.c.h.b16 %v5588
      %v5889 = vunpack.c.l.b16 %v5589
      %v5890 = vunpack.c.h.b16 %v5589
      %v5891 = vunpack.c.l.b16 %v5590
      %v5892 = vunpack.c.h.b16 %v5590
      %v5893 = vunpack.c.l.b16 %v5591
      %v5894 = vunpack.c.h.b16 %v5591
      %v5895 = vunpack.c.l.b16 %v5592
      %v5896 = vunpack.c.h.b16 %v5592
      %v5897 = vunpack.c.l.b16 %v5593
      %v5898 = vunpack.c.h.b16 %v5593
      %v5899 = vunpack.c.l.b16 %v5594
      %v5900 = vunpack.c.h.b16 %v5594
      %v5901 = vunpack.c.l.b16 %v5595
      %v5902 = vunpack.c.h.b16 %v5595
      %v5903 = vunpack.c.l.b16 %v5596
      %v5904 = vunpack.c.h.b16 %v5596
      %v5905 = vunpack.c.l.b16 %v5597
      %v5906 = vunpack.c.h.b16 %v5597
      %v5907 = vunpack.c.l.b16 %v5598
      %v5908 = vunpack.c.h.b16 %v5598
      %v5909 = vunpack.c.l.b16 %v5599
      %v5910 = vunpack.c.h.b16 %v5599
      %v5911 = vunpack.c.l.b16 %v5600
      %v5912 = vunpack.c.h.b16 %v5600
      %v5913 = vunpack.c.l.b16 %v5601
      %v5914 = vunpack.c.h.b16 %v5601
      %v5915 = vunpack.c.l.b16 %v5602
      %v5916 = vunpack.c.h.b16 %v5602
      %v5917 = vunpack.c.l.b16 %v5603
      %v5918 = vunpack.c.h.b16 %v5603
      %v5919 = vunpack.c.l.b16 %v5604
      %v5920 = vunpack.c.h.b16 %v5604
      %v5921 = vunpack.c.l.b16 %v5605
      %v5922 = vunpack.c.h.b16 %v5605
      %v5923 = vunpack.c.l.b16 %v5606
      %v5924 = vunpack.c.h.b16 %v5606
      %v5925 = vunpack.c.l.b16 %v5607
      %v5926 = vunpack.c.h.b16 %v5607
      %v5927 = vunpack.c.l.b16 %v5608
      %v5928 = vunpack.c.h.b16 %v5608
      %v5929 = vunpack.c.l.b16 %v5609
      %v5930 = vunpack.c.h.b16 %v5609
      %v5931 = vunpack.c.l.b16 %v5610
      %v5932 = vunpack.c.h.b16 %v5610
      %v5933 = vunpack.c.l.b16 %v5611
      %v5934 = vunpack.c.h.b16 %v5611
      %v5935 = vunpack.c.l.b16 %v5612
      %v5936 = vunpack.c.h.b16 %v5612
      %v5937 = vunpack.c.l.b16 %v5613
      %v5938 = vunpack.c.h.b16 %v5613
      %v5939 = vunpack.c.l.b16 %v5614
      %v5940 = vunpack.c.h.b16 %v5614
      %v5941 = vunpack.c.l.b16 %v5615
      %v5942 = vunpack.c.h.b16 %v5615
      %v5943 = vunpack.c.l.b16 %v5616
      %v5944 = vunpack.c.h.b16 %v5616
      %v5945 = vunpack.c.l.b16 %v5617
      %v5946 = vunpack.c.h.b16 %v5617
      %v5947 = vunpack.c.l.b16 %v5618
      %v5948 = vunpack.c.h.b16 %v5618
      %v5949 = vunpack.c.l.b16 %v5619
      %v5950 = vunpack.c.h.b16 %v5619
      %v5951 = vunpack.c.l.b16 %v5620
      %v5952 = vunpack.c.h.b16 %v5620
      %v5953 = vunpack.c.l.b16 %v5621
      %v5954 = vunpack.c.h.b16 %v5621
      %v5955 = vunpack.c.l.b16 %v5622
      %v5956 = vunpack.c.h.b16 %v5622
      %v5957 = vunpack.c.l.b16 %v5623
      %v5958 = vunpack.c.h.b16 %v5623
      %v5959 = vunpack.c.l.b16 %v5624
      %v5960 = vunpack.c.h.b16 %v5624
      %v5961 = vunpack.c.l.b16 %v5625
      %v5962 = vunpack.c.h.b16 %v5625
      %v5963 = vunpack.c.l.b16 %v5626
      %v5964 = vunpack.c.h.b16 %v5626
      %v5965 = vunpack.c.l.b16 %v5627
      %v5966 = vunpack.c.h.b16 %v5627
      %v5967 = vunpack.c.l.b16 %v5628
      %v5968 = vunpack.c.h.b16 %v5628
      %v5969 = vunpack.c.l.b16 %v5629
      %v5970 = vunpack.c.h.b16 %v5629
      %v5971 = vunpack.c.l.b16 %v5630
      %v5972 = vunpack.c.h.b16 %v5630
      %v5973 = vunpack.c.l.b16 %v5631
      %v5974 = vunpack.c.h.b16 %v5631
      %v5975 = vunpack.c.l.b16 %v5632
      %v5976 = vunpack.c.h.b16 %v5632
      %v5977 = vunpack.c.l.b16 %v5633
      %v5978 = vunpack.c.h.b16 %v5633
      %v5979 = vunpack.c.l.b16 %v5634
      %v5980 = vunpack.c.h.b16 %v5634
      %v5981 = vunpack.c.l.b16 %v5635
      %v5982 = vunpack.c.h.b16 %v5635
      %v5983 = vunpack.c.l.b16 %v5636
      %v5984 = vunpack.c.h.b16 %v5636
      %v5985 = vunpack.c.l.b16 %v5637
      %v5986 = vunpack.c.h.b16 %v5637
      %v5987 = vunpack.c.l.b16 %v5638
      %v5988 = vunpack.c.h.b16 %v5638
      %v5989 = vunpack.c.l.b16 %v5639
      %v5990 = vunpack.c.h.b16 %v5639
      %v5991 = vunpack.c.l.b16 %v5640
      %v5992 = vunpack.c.h.b16 %v5640
      %v5993 = vunpack.c.l.b16 %v5641
      %v5994 = vunpack.c.h.b16 %v5641
      %v5995 = vunpack.c.l.b16 %v5642
      %v5996 = vunpack.c.h.b16 %v5642
      %v5997 = vunpack.c.l.b16 %v5643
      %v5998 = vunpack.c.h.b16 %v5643
      %v5999 = vunpack.c.l.b16 %v5644
      %v6000 = vunpack.c.h.b16 %v5644
      %v6001 = vunpack.c.l.b16 %v5645
      %v6002 = vunpack.c.h.b16 %v5645
      %v6003 = vunpack.c.l.b16 %v5646
      %v6004 = vunpack.c.h.b16 %v5646
      %v6005 = vunpack.c.l.b16 %v5647
      %v6006 = vunpack.c.h.b16 %v5647
      %v6007 = vunpack.c.l.b16 %v5648
      %v6008 = vunpack.c.h.b16 %v5648
      %v6009 = vunpack.c.l.b16 %v5649
      %v6010 = vunpack.c.h.b16 %v5649
      %v6011 = vunpack.c.l.b16 %v5650
      %v6012 = vunpack.c.h.b16 %v5650
      %v6013 = vunpack.c.l.b16 %v5651
      %v6014 = vunpack.c.h.b16 %v5651
      %v6015 = vunpack.c.l.b16 %v5652
      %v6016 = vunpack.c.h.b16 %v5652
      %v6017 = vunpack.c.l.b16 %v5653
      %v6018 = vunpack.c.h.b16 %v5653
      %v6019 = vunpack.c.l.b16 %v5654
      %v6020 = vunpack.c.h.b16 %v5654
      %v6021 = vunpack.c.l.b16 %v5655
      %v6022 = vunpack.c.h.b16 %v5655
      %v6023 = vunpack.c.l.b16 %v5656
      %v6024 = vunpack.c.h.b16 %v5656
      %v6025 = vunpack.c.l.b16 %v5657
      %v6026 = vunpack.c.h.b16 %v5657
      %v6027 = vunpack.c.l.b16 %v5658
      %v6028 = vunpack.c.h.b16 %v5658
      %v6029 = vunpack.c.l.b16 %v5659
      %v6030 = vunpack.c.h.b16 %v5659
      %v6031 = vunpack.c.l.b16 %v5660
      %v6032 = vunpack.c.h.b16 %v5660
      %v6033 = vunpack.c.l.b16 %v5661
      %v6034 = vunpack.c.h.b16 %v5661
      %v6035 = vunpack.c.l.b16 %v5662
      %v6036 = vunpack.c.h.b16 %v5662
      %v6037 = vunpack.c.l.b16 %v5663
      %v6038 = vunpack.c.h.b16 %v5663
      %v6039 = vunpack.c.l.b16 %v5664
      %v6040 = vunpack.c.h.b16 %v5664
      %v6041 = vunpack.c.l.b16 %v5665
      %v6042 = vunpack.c.h.b16 %v5665
      %v6043 = vunpack.c.l.b16 %v5666
      %v6044 = vunpack.c.h.b16 %v5666
      %v6045 = vunpack.c.l.b16 %v5667
      %v6046 = vunpack.c.h.b16 %v5667
      %v6047 = vunpack.c.l.b16 %v5668
      %v6048 = vunpack.c.h.b16 %v5668
      %v6049 = vunpack.c.l.b16 %v5669
      %v6050 = vunpack.c.h.b16 %v5669
      %v6051 = vunpack.c.l.b16 %v5670
      %v6052 = vunpack.c.h.b16 %v5670
      %v6053 = vunpack.c.l.b16 %v5671
      %v6054 = vunpack.c.h.b16 %v5671
      %v6055 = vunpack.c.l.b16 %v5672
      %v6056 = vunpack.c.h.b16 %v5672
      %v6057 = vpack.c.b16 %v5871, %v5865
      %v6058 = vpack.c.b16 %v5872, %v5866
      %v6059 = vpack.c.b16 %v5873, %v5867
      %v6060 = vpack.c.b16 %v5874, %v5868
      %v6061 = vpack.c.b16 %v5875, %v5869
      %v6062 = vpack.c.b16 %v5876, %v5870
      %v6063 = vpack.c.b16 %v5883, %v5877
      %v6064 = vpack.c.b16 %v5884, %v5878
      %v6065 = vpack.c.b16 %v5885, %v5879
      %v6066 = vpack.c.b16 %v5886, %v5880
      %v6067 = vpack.c.b16 %v5887, %v5881
      %v6068 = vpack.c.b16 %v5888, %v5882
      %v6069 = vpack.c.b16 %v5895, %v5889
      %v6070 = vpack.c.b16 %v5896, %v5890
      %v6071 = vpack.c.b16 %v5897, %v5891
      %v6072 = vpack.c.b16 %v5898, %v5892
      %v6073 = vpack.c.b16 %v5899, %v5893
      %v6074 = vpack.c.b16 %v5900, %v5894
      %v6075 = vpack.c.b16 %v5907, %v5901
      %v6076 = vpack.c.b16 %v5908, %v5902
      %v6077 = vpack.c.b16 %v5909, %v5903
      %v6078 = vpack.c.b16 %v5910, %v5904
      %v6079 = vpack.c.b16 %v5911, %v5905
      %v6080 = vpack.c.b16 %v5912, %v5906
      %v6081 = vpack.c.b16 %v5919, %v5913
      %v6082 = vpack.c.b16 %v5920, %v5914
      %v6083 = vpack.c.b16 %v5921, %v5915
      %v6084 = vpack.c.b16 %v5922, %v5916
      %v6085 = vpack.c.b16 %v5923, %v5917
      %v6086 = vpack.c.b16 %v5924, %v5918
      %v6087 = vpack.c.b16 %v5931, %v5925
      %v6088 = vpack.c.b16 %v5932, %v5926
      %v6089 = vpack.c.b16 %v5933, %v5927
      %v6090 = vpack.c.b16 %v5934, %v5928
      %v6091 = vpack.c.b16 %v5935, %v5929
      %v6092 = vpack.c.b16 %v5936, %v5930
      %v6093 = vpack.c.b16 %v5943, %v5937
      %v6094 = vpack.c.b16 %v5944, %v5938
      %v6095 = vpack.c.b16 %v5945, %v5939
      %v6096 = vpack.c.b16 %v5946, %v5940
      %v6097 = vpack.c.b16 %v5947, %v5941
      %v6098 = vpack.c.b16 %v5948, %v5942
      %v6099 = vpack.c.b16 %v5955, %v5949
      %v6100 = vpack.c.b16 %v5956, %v5950
      %v6101 = vpack.c.b16 %v5957, %v5951
      %v6102 = vpack.c.b16 %v5958, %v5952
      %v6103 = vpack.c.b16 %v5959, %v5953
      %v6104 = vpack.c.b16 %v5960, %v5954
      %v6105 = vpack.c.b16 %v5967, %v5961
      %v6106 = vpack.c.b16 %v5968, %v5962
      %v6107 = vpack.c.b16 %v5969, %v5963
      %v6108 = vpack.c.b16 %v5970, %v5964
      %v6109 = vpack.c.b16 %v5971, %v5965
      %v6110 = vpack.c.b16 %v5972, %v5966
      %v6111 = vpack.c.b16 %v5979, %v5973
      %v6112 = vpack.c.b16 %v5980, %v5974
      %v6113 = vpack.c.b16 %v5981, %v5975
      %v6114 = vpack.c.b16 %v5982, %v5976
      %v6115 = vpack.c.b16 %v5983, %v5977
      %v6116 = vpack.c.b16 %v5984, %v5978
      %v6117 = vpack.c.b16 %v5991, %v5985
      %v6118 = vpack.c.b16 %v5992, %v5986
      %v6119 = vpack.c.b16 %v5993, %v5987
      %v6120 = vpack.c.b16 %v5994, %v5988
      %v6121 = vpack.c.b16 %v5995, %v5989
      %v6122 = vpack.c.b16 %v5996, %v5990
      %v6123 = vpack.c.b16 %v6003, %v5997
      %v6124 = vpack.c.b16 %v6004, %v5998
      %v6125 = vpack.c.b16 %v6005, %v5999
      %v6126 = vpack.c.b16 %v6006, %v6000
      %v6127 = vpack.c.b16 %v6007, %v6001
      %v6128 = vpack.c.b16 %v6008, %v6002
      %v6129 = vpack.c.b16 %v6015, %v6009
      %v6130 = vpack.c.b16 %v6016, %v6010
      %v6131 = vpack.c.b16 %v6017, %v6011
      %v6132 = vpack.c.b16 %v6018, %v6012
      %v6133 = vpack.c.b16 %v6019, %v6013
      %v6134 = vpack.c.b16 %v6020, %v6014
      %v6135 = vpack.c.b16 %v6027, %v6021
      %v6136 = vpack.c.b16 %v6028, %v6022
      %v6137 = vpack.c.b16 %v6029, %v6023
      %v6138 = vpack.c.b16 %v6030, %v6024
      %v6139 = vpack.c.b16 %v6031, %v6025
      %v6140 = vpack.c.b16 %v6032, %v6026
      %v6141 = vpack.c.b16 %v6039, %v6033
      %v6142 = vpack.c.b16 %v6040, %v6034
      %v6143 = vpack.c.b16 %v6041, %v6035
      %v6144 = vpack.c.b16 %v6042, %v6036
      %v6145 = vpack.c.b16 %v6043, %v6037
      %v6146 = vpack.c.b16 %v6044, %v6038
      %v6147 = vpack.c.b16 %v6051, %v6045
      %v6148 = vpack.c.b16 %v6052, %v6046
      %v6149 = vpack.c.b16 %v6053, %v6047
      %v6150 = vpack.c.b16 %v6054, %v6048
      %v6151 = vpack.c.b16 %v6055, %v6049
      %v6152 = vpack.c.b16 %v6056, %v6050
      %6249 = vmatprep.subr.bf16.mxu0 %v5674
      %6250 = vmatpush1.bf16.msra.mxu0 %v5673
      %6251 = vmatprep.subr.bf16.mxu0 %v5676
      %6252 = vmatpush1.bf16.msra.mxu0 %v5675
      %6253 = vmatprep.subr.bf16.mxu0 %v5678
      %6254 = vmatpush1.bf16.msra.mxu0 %v5677
      %6255 = vmatprep.subr.bf16.mxu0 %v5680
      %6256 = vmatpush1.bf16.msra.mxu0 %v5679
      %6257 = vmatprep.subr.bf16.mxu0 %v5682
      %6258 = vmatpush1.bf16.msra.mxu0 %v5681
      %6259 = vmatprep.subr.bf16.mxu0 %v5684
      %6260 = vmatpush1.bf16.msra.mxu0 %v5683
      %6261 = vmatprep.subr.bf16.mxu0 %v5686
      %6262 = vmatpush1.bf16.msra.mxu0 %v5685
      %6263 = vmatprep.subr.bf16.mxu0 %v5688
      %6264 = vmatpush1.bf16.msra.mxu0 %v5687
      %6265 = vmatprep.subr.bf16.mxu0 %v5690
      %6266 = vmatpush1.bf16.msra.mxu0 %v5689
      %6267 = vmatprep.subr.bf16.mxu0 %v5692
      %6268 = vmatpush1.bf16.msra.mxu0 %v5691
      %6269 = vmatprep.subr.bf16.mxu0 %v5694
      %6270 = vmatpush1.bf16.msra.mxu0 %v5693
      %6271 = vmatprep.subr.bf16.mxu0 %v5696
      %6272 = vmatpush1.bf16.msra.mxu0 %v5695
      %6273 = vmatprep.subr.bf16.mxu0 %v5698
      %6274 = vmatpush1.bf16.msra.mxu0 %v5697
      %6275 = vmatprep.subr.bf16.mxu0 %v5700
      %6276 = vmatpush1.bf16.msra.mxu0 %v5699
      %6277 = vmatprep.subr.bf16.mxu0 %v5702
      %6278 = vmatpush1.bf16.msra.mxu0 %v5701
      %6279 = vmatprep.subr.bf16.mxu0 %v5704
      %6280 = vmatpush1.bf16.msra.mxu0 %v5703
      %6281 = vmatprep.mubr.bf16.mxu0 %v6058
      %6282 = vmatmul.mubr.bf16.gmra.mrb[0].mxu0 %v6057
      %v6283 = vpop.f32.mrb[0].mxu0
      %v6284 = vadd.f32 0.0, %v6283
      %v6285 = vpop.f32.mrb[0].mxu0
      %v6286 = vadd.f32 0.0, %v6285
      %v6287 = vpop.f32.mrb[0].mxu0
      %v6288 = vadd.f32 0.0, %v6287
      %v6289 = vpop.f32.mrb[0].mxu0
      %v6290 = vadd.f32 0.0, %v6289
      %6291 = vmatprep.mubr.bf16.mxu0 %v6064
      %6292 = vmatmul.mubr.bf16.gmra.mrb[0].mxu0 %v6063
      %v6293 = vpop.f32.mrb[0].mxu0
      %v6294 = vadd.f32 0.0, %v6293
      %v6295 = vpop.f32.mrb[0].mxu0
      %v6296 = vadd.f32 0.0, %v6295
      %v6297 = vpop.f32.mrb[0].mxu0
      %v6298 = vadd.f32 0.0, %v6297
      %v6299 = vpop.f32.mrb[0].mxu0
      %v6300 = vadd.f32 0.0, %v6299
      %6301 = vmatprep.mubr.bf16.mxu0 %v6070
      %6302 = vmatmul.mubr.bf16.gmra.mrb[0].mxu0 %v6069
      %v6303 = vpop.f32.mrb[0].mxu0
      %v6304 = vadd.f32 0.0, %v6303
      %v6305 = vpop.f32.mrb[0].mxu0
      %v6306 = vadd.f32 0.0, %v6305
      %v6307 = vpop.f32.mrb[0].mxu0
      %v6308 = vadd.f32 0.0, %v6307
      %v6309 = vpop.f32.mrb[0].mxu0
      %v6310 = vadd.f32 0.0, %v6309
      %6311 = vmatprep.mubr.bf16.mxu0 %v6076
      %6312 = vmatmul.mubr.bf16.gmra.mrb[0].mxu0 %v6075
      %v6313 = vpop.f32.mrb[0].mxu0
      %v6314 = vadd.f32 0.0, %v6313
      %v6315 = vpop.f32.mrb[0].mxu0
      %v6316 = vadd.f32 0.0, %v6315
      %v6317 = vpop.f32.mrb[0].mxu0
      %v6318 = vadd.f32 0.0, %v6317
      %v6319 = vpop.f32.mrb[0].mxu0
      %v6320 = vadd.f32 0.0, %v6319
      %6321 = vmatprep.mubr.bf16.mxu0 %v6082
      %6322 = vmatmul.mubr.bf16.gmra.mrb[0].mxu0 %v6081
      %v6323 = vpop.f32.mrb[0].mxu0
      %v6324 = vadd.f32 0.0, %v6323
      %v6325 = vpop.f32.mrb[0].mxu0
      %v6326 = vadd.f32 0.0, %v6325
      %v6327 = vpop.f32.mrb[0].mxu0
      %v6328 = vadd.f32 0.0, %v6327
      %v6329 = vpop.f32.mrb[0].mxu0
      %v6330 = vadd.f32 0.0, %v6329
      %6331 = vmatprep.mubr.bf16.mxu0 %v6088
      %6332 = vmatmul.mubr.bf16.gmra.mrb[0].mxu0 %v6087
      %v6333 = vpop.f32.mrb[0].mxu0
      %v6334 = vadd.f32 0.0, %v6333
      %v6335 = vpop.f32.mrb[0].mxu0
      %v6336 = vadd.f32 0.0, %v6335
      %v6337 = vpop.f32.mrb[0].mxu0
      %v6338 = vadd.f32 0.0, %v6337
      %v6339 = vpop.f32.mrb[0].mxu0
      %v6340 = vadd.f32 0.0, %v6339
      %6341 = vmatprep.mubr.bf16.mxu0 %v6094
      %6342 = vmatmul.mubr.bf16.gmra.mrb[0].mxu0 %v6093
      %v6343 = vpop.f32.mrb[0].mxu0
      %v6344 = vadd.f32 0.0, %v6343
      %v6345 = vpop.f32.mrb[0].mxu0
      %v6346 = vadd.f32 0.0, %v6345
      %v6347 = vpop.f32.mrb[0].mxu0
      %v6348 = vadd.f32 0.0, %v6347
      %v6349 = vpop.f32.mrb[0].mxu0
      %v6350 = vadd.f32 0.0, %v6349
      %6351 = vmatprep.mubr.bf16.mxu0 %v6100
      %6352 = vmatmul.mubr.bf16.gmra.mrb[0].mxu0 %v6099
      %v6353 = vpop.f32.mrb[0].mxu0
      %v6354 = vadd.f32 0.0, %v6353
      %v6355 = vpop.f32.mrb[0].mxu0
      %v6356 = vadd.f32 0.0, %v6355
      %v6357 = vpop.f32.mrb[0].mxu0
      %v6358 = vadd.f32 0.0, %v6357
      %v6359 = vpop.f32.mrb[0].mxu0
      %v6360 = vadd.f32 0.0, %v6359
      %6361 = vmatprep.mubr.bf16.mxu0 %v6106
      %6362 = vmatmul.mubr.bf16.gmra.mrb[0].mxu0 %v6105
      %v6363 = vpop.f32.mrb[0].mxu0
      %v6364 = vadd.f32 0.0, %v6363
      %v6365 = vpop.f32.mrb[0].mxu0
      %v6366 = vadd.f32 0.0, %v6365
      %v6367 = vpop.f32.mrb[0].mxu0
      %v6368 = vadd.f32 0.0, %v6367
      %v6369 = vpop.f32.mrb[0].mxu0
      %v6370 = vadd.f32 0.0, %v6369
      %6371 = vmatprep.mubr.bf16.mxu0 %v6112
      %6372 = vmatmul.mubr.bf16.gmra.mrb[0].mxu0 %v6111
      %v6373 = vpop.f32.mrb[0].mxu0
      %v6374 = vadd.f32 0.0, %v6373
      %v6375 = vpop.f32.mrb[0].mxu0
      %v6376 = vadd.f32 0.0, %v6375
      %v6377 = vpop.f32.mrb[0].mxu0
      %v6378 = vadd.f32 0.0, %v6377
      %v6379 = vpop.f32.mrb[0].mxu0
      %v6380 = vadd.f32 0.0, %v6379
      %6381 = vmatprep.mubr.bf16.mxu0 %v6118
      %6382 = vmatmul.mubr.bf16.gmra.mrb[0].mxu0 %v6117
      %v6383 = vpop.f32.mrb[0].mxu0
      %v6384 = vadd.f32 0.0, %v6383
      %v6385 = vpop.f32.mrb[0].mxu0
      %v6386 = vadd.f32 0.0, %v6385
      %v6387 = vpop.f32.mrb[0].mxu0
      %v6388 = vadd.f32 0.0, %v6387
      %v6389 = vpop.f32.mrb[0].mxu0
      %v6390 = vadd.f32 0.0, %v6389
      %6391 = vmatprep.mubr.bf16.mxu0 %v6124
      %6392 = vmatmul.mubr.bf16.gmra.mrb[0].mxu0 %v6123
      %v6393 = vpop.f32.mrb[0].mxu0
      %v6394 = vadd.f32 0.0, %v6393
      %v6395 = vpop.f32.mrb[0].mxu0
      %v6396 = vadd.f32 0.0, %v6395
      %v6397 = vpop.f32.mrb[0].mxu0
      %v6398 = vadd.f32 0.0, %v6397
      %v6399 = vpop.f32.mrb[0].mxu0
      %v6400 = vadd.f32 0.0, %v6399
      %6401 = vmatprep.mubr.bf16.mxu0 %v6130
      %6402 = vmatmul.mubr.bf16.gmra.mrb[0].mxu0 %v6129
      %v6403 = vpop.f32.mrb[0].mxu0
      %v6404 = vadd.f32 0.0, %v6403
      %v6405 = vpop.f32.mrb[0].mxu0
      %v6406 = vadd.f32 0.0, %v6405
      %v6407 = vpop.f32.mrb[0].mxu0
      %v6408 = vadd.f32 0.0, %v6407
      %v6409 = vpop.f32.mrb[0].mxu0
      %v6410 = vadd.f32 0.0, %v6409
      %6411 = vmatprep.mubr.bf16.mxu0 %v6136
      %6412 = vmatmul.mubr.bf16.gmra.mrb[0].mxu0 %v6135
      %v6413 = vpop.f32.mrb[0].mxu0
      %v6414 = vadd.f32 0.0, %v6413
      %v6415 = vpop.f32.mrb[0].mxu0
      %v6416 = vadd.f32 0.0, %v6415
      %v6417 = vpop.f32.mrb[0].mxu0
      %v6418 = vadd.f32 0.0, %v6417
      %v6419 = vpop.f32.mrb[0].mxu0
      %v6420 = vadd.f32 0.0, %v6419
      %6421 = vmatprep.mubr.bf16.mxu0 %v6142
      %6422 = vmatmul.mubr.bf16.gmra.mrb[0].mxu0 %v6141
      %v6423 = vpop.f32.mrb[0].mxu0
      %v6424 = vadd.f32 0.0, %v6423
      %v6425 = vpop.f32.mrb[0].mxu0
      %v6426 = vadd.f32 0.0, %v6425
      %v6427 = vpop.f32.mrb[0].mxu0
      %v6428 = vadd.f32 0.0, %v6427
      %v6429 = vpop.f32.mrb[0].mxu0
      %v6430 = vadd.f32 0.0, %v6429
      %6431 = vmatprep.mubr.bf16.mxu0 %v6148
      %6432 = vmatmul.mubr.bf16.gmra.mrb[0].mxu0 %v6147
      %v6433 = vpop.f32.mrb[0].mxu0
      %v6434 = vadd.f32 0.0, %v6433
      %v6435 = vpop.f32.mrb[0].mxu0
      %v6436 = vadd.f32 0.0, %v6435
      %v6437 = vpop.f32.mrb[0].mxu0
      %v6438 = vadd.f32 0.0, %v6437
      %v6439 = vpop.f32.mrb[0].mxu0
      %v6440 = vadd.f32 0.0, %v6439
      %6441 = vdwg.mxu0
      %6442 = vmatprep.subr.bf16.mxu0 %v5706
      %6443 = vmatpush1.bf16.msra.mxu0 %v5705
      %6444 = vmatprep.subr.bf16.mxu0 %v5708
      %6445 = vmatpush1.bf16.msra.mxu0 %v5707
      %6446 = vmatprep.subr.bf16.mxu0 %v5710
      %6447 = vmatpush1.bf16.msra.mxu0 %v5709
      %6448 = vmatprep.subr.bf16.mxu0 %v5712
      %6449 = vmatpush1.bf16.msra.mxu0 %v5711
      %6450 = vmatprep.subr.bf16.mxu0 %v5714
      %6451 = vmatpush1.bf16.msra.mxu0 %v5713
      %6452 = vmatprep.subr.bf16.mxu0 %v5716
      %6453 = vmatpush1.bf16.msra.mxu0 %v5715
      %6454 = vmatprep.subr.bf16.mxu0 %v5718
      %6455 = vmatpush1.bf16.msra.mxu0 %v5717
      %6456 = vmatprep.subr.bf16.mxu0 %v5720
      %6457 = vmatpush1.bf16.msra.mxu0 %v5719
      %6458 = vmatprep.subr.bf16.mxu0 %v5722
      %6459 = vmatpush1.bf16.msra.mxu0 %v5721
      %6460 = vmatprep.subr.bf16.mxu0 %v5724
      %6461 = vmatpush1.bf16.msra.mxu0 %v5723
      %6462 = vmatprep.subr.bf16.mxu0 %v5726
      %6463 = vmatpush1.bf16.msra.mxu0 %v5725
      %6464 = vmatprep.subr.bf16.mxu0 %v5728
      %6465 = vmatpush1.bf16.msra.mxu0 %v5727
      %6466 = vmatprep.subr.bf16.mxu0 %v5730
      %6467 = vmatpush1.bf16.msra.mxu0 %v5729
      %6468 = vmatprep.subr.bf16.mxu0 %v5732
      %6469 = vmatpush1.bf16.msra.mxu0 %v5731
      %6470 = vmatprep.subr.bf16.mxu0 %v5734
      %6471 = vmatpush1.bf16.msra.mxu0 %v5733
      %6472 = vmatprep.subr.bf16.mxu0 %v5736
      %6473 = vmatpush1.bf16.msra.mxu0 %v5735
      %6474 = vmatprep.mubr.bf16.mxu0 %v6060
      %6475 = vmatmul.mubr.bf16.gmra.mrb[0].mxu0 %v6059
      %v6476 = vpop.f32.mrb[0].mxu0
      %v6477 = vadd.f32 %v6284, %v6476
      %v6478 = vpop.f32.mrb[0].mxu0
      %v6479 = vadd.f32 %v6286, %v6478
      %v6480 = vpop.f32.mrb[0].mxu0
      %v6481 = vadd.f32 %v6288, %v6480
      %v6482 = vpop.f32.mrb[0].mxu0
      %v6483 = vadd.f32 %v6290, %v6482
      %6484 = vmatprep.mubr.bf16.mxu0 %v6066
      %6485 = vmatmul.mubr.bf16.gmra.mrb[0].mxu0 %v6065
      %v6486 = vpop.f32.mrb[0].mxu0
      %v6487 = vadd.f32 %v6294, %v6486
      %v6488 = vpop.f32.mrb[0].mxu0
      %v6489 = vadd.f32 %v6296, %v6488
      %v6490 = vpop.f32.mrb[0].mxu0
      %v6491 = vadd.f32 %v6298, %v6490
      %v6492 = vpop.f32.mrb[0].mxu0
      %v6493 = vadd.f32 %v6300, %v6492
      %6494 = vmatprep.mubr.bf16.mxu0 %v6072
      %6495 = vmatmul.mubr.bf16.gmra.mrb[0].mxu0 %v6071
      %v6496 = vpop.f32.mrb[0].mxu0
      %v6497 = vadd.f32 %v6304, %v6496
      %v6498 = vpop.f32.mrb[0].mxu0
      %v6499 = vadd.f32 %v6306, %v6498
      %v6500 = vpop.f32.mrb[0].mxu0
      %v6501 = vadd.f32 %v6308, %v6500
      %v6502 = vpop.f32.mrb[0].mxu0
      %v6503 = vadd.f32 %v6310, %v6502
      %6504 = vmatprep.mubr.bf16.mxu0 %v6078
      %6505 = vmatmul.mubr.bf16.gmra.mrb[0].mxu0 %v6077
      %v6506 = vpop.f32.mrb[0].mxu0
      %v6507 = vadd.f32 %v6314, %v6506
      %v6508 = vpop.f32.mrb[0].mxu0
      %v6509 = vadd.f32 %v6316, %v6508
      %v6510 = vpop.f32.mrb[0].mxu0
      %v6511 = vadd.f32 %v6318, %v6510
      %v6512 = vpop.f32.mrb[0].mxu0
      %v6513 = vadd.f32 %v6320, %v6512
      %6514 = vmatprep.mubr.bf16.mxu0 %v6084
      %6515 = vmatmul.mubr.bf16.gmra.mrb[0].mxu0 %v6083
      %v6516 = vpop.f32.mrb[0].mxu0
      %v6517 = vadd.f32 %v6324, %v6516
      %v6518 = vpop.f32.mrb[0].mxu0
      %v6519 = vadd.f32 %v6326, %v6518
      %v6520 = vpop.f32.mrb[0].mxu0
      %v6521 = vadd.f32 %v6328, %v6520
      %v6522 = vpop.f32.mrb[0].mxu0
      %v6523 = vadd.f32 %v6330, %v6522
      %6524 = vmatprep.mubr.bf16.mxu0 %v6090
      %6525 = vmatmul.mubr.bf16.gmra.mrb[0].mxu0 %v6089
      %v6526 = vpop.f32.mrb[0].mxu0
      %v6527 = vadd.f32 %v6334, %v6526
      %v6528 = vpop.f32.mrb[0].mxu0
      %v6529 = vadd.f32 %v6336, %v6528
      %v6530 = vpop.f32.mrb[0].mxu0
      %v6531 = vadd.f32 %v6338, %v6530
      %v6532 = vpop.f32.mrb[0].mxu0
      %v6533 = vadd.f32 %v6340, %v6532
      %6534 = vmatprep.mubr.bf16.mxu0 %v6096
      %6535 = vmatmul.mubr.bf16.gmra.mrb[0].mxu0 %v6095
      %v6536 = vpop.f32.mrb[0].mxu0
      %v6537 = vadd.f32 %v6344, %v6536
      %v6538 = vpop.f32.mrb[0].mxu0
      %v6539 = vadd.f32 %v6346, %v6538
      %v6540 = vpop.f32.mrb[0].mxu0
      %v6541 = vadd.f32 %v6348, %v6540
      %v6542 = vpop.f32.mrb[0].mxu0
      %v6543 = vadd.f32 %v6350, %v6542
      %6544 = vmatprep.mubr.bf16.mxu0 %v6102
      %6545 = vmatmul.mubr.bf16.gmra.mrb[0].mxu0 %v6101
      %v6546 = vpop.f32.mrb[0].mxu0
      %v6547 = vadd.f32 %v6354, %v6546
      %v6548 = vpop.f32.mrb[0].mxu0
      %v6549 = vadd.f32 %v6356, %v6548
      %v6550 = vpop.f32.mrb[0].mxu0
      %v6551 = vadd.f32 %v6358, %v6550
      %v6552 = vpop.f32.mrb[0].mxu0
      %v6553 = vadd.f32 %v6360, %v6552
      %6554 = vmatprep.mubr.bf16.mxu0 %v6108
      %6555 = vmatmul.mubr.bf16.gmra.mrb[0].mxu0 %v6107
      %v6556 = vpop.f32.mrb[0].mxu0
      %v6557 = vadd.f32 %v6364, %v6556
      %v6558 = vpop.f32.mrb[0].mxu0
      %v6559 = vadd.f32 %v6366, %v6558
      %v6560 = vpop.f32.mrb[0].mxu0
      %v6561 = vadd.f32 %v6368, %v6560
      %v6562 = vpop.f32.mrb[0].mxu0
      %v6563 = vadd.f32 %v6370, %v6562
      %6564 = vmatprep.mubr.bf16.mxu0 %v6114
      %6565 = vmatmul.mubr.bf16.gmra.mrb[0].mxu0 %v6113
      %v6566 = vpop.f32.mrb[0].mxu0
      %v6567 = vadd.f32 %v6374, %v6566
      %v6568 = vpop.f32.mrb[0].mxu0
      %v6569 = vadd.f32 %v6376, %v6568
      %v6570 = vpop.f32.mrb[0].mxu0
      %v6571 = vadd.f32 %v6378, %v6570
      %v6572 = vpop.f32.mrb[0].mxu0
      %v6573 = vadd.f32 %v6380, %v6572
      %6574 = vmatprep.mubr.bf16.mxu0 %v6120
      %6575 = vmatmul.mubr.bf16.gmra.mrb[0].mxu0 %v6119
      %v6576 = vpop.f32.mrb[0].mxu0
      %v6577 = vadd.f32 %v6384, %v6576
      %v6578 = vpop.f32.mrb[0].mxu0
      %v6579 = vadd.f32 %v6386, %v6578
      %v6580 = vpop.f32.mrb[0].mxu0
      %v6581 = vadd.f32 %v6388, %v6580
      %v6582 = vpop.f32.mrb[0].mxu0
      %v6583 = vadd.f32 %v6390, %v6582
      %6584 = vmatprep.mubr.bf16.mxu0 %v6126
      %6585 = vmatmul.mubr.bf16.gmra.mrb[0].mxu0 %v6125
      %v6586 = vpop.f32.mrb[0].mxu0
      %v6587 = vadd.f32 %v6394, %v6586
      %v6588 = vpop.f32.mrb[0].mxu0
      %v6589 = vadd.f32 %v6396, %v6588
      %v6590 = vpop.f32.mrb[0].mxu0
      %v6591 = vadd.f32 %v6398, %v6590
      %v6592 = vpop.f32.mrb[0].mxu0
      %v6593 = vadd.f32 %v6400, %v6592
      %6594 = vmatprep.mubr.bf16.mxu0 %v6132
      %6595 = vmatmul.mubr.bf16.gmra.mrb[0].mxu0 %v6131
      %v6596 = vpop.f32.mrb[0].mxu0
      %v6597 = vadd.f32 %v6404, %v6596
      %v6598 = vpop.f32.mrb[0].mxu0
      %v6599 = vadd.f32 %v6406, %v6598
      %v6600 = vpop.f32.mrb[0].mxu0
      %v6601 = vadd.f32 %v6408, %v6600
      %v6602 = vpop.f32.mrb[0].mxu0
      %v6603 = vadd.f32 %v6410, %v6602
      %6604 = vmatprep.mubr.bf16.mxu0 %v6138
      %6605 = vmatmul.mubr.bf16.gmra.mrb[0].mxu0 %v6137
      %v6606 = vpop.f32.mrb[0].mxu0
      %v6607 = vadd.f32 %v6414, %v6606
      %v6608 = vpop.f32.mrb[0].mxu0
      %v6609 = vadd.f32 %v6416, %v6608
      %v6610 = vpop.f32.mrb[0].mxu0
      %v6611 = vadd.f32 %v6418, %v6610
      %v6612 = vpop.f32.mrb[0].mxu0
      %v6613 = vadd.f32 %v6420, %v6612
      %6614 = vmatprep.mubr.bf16.mxu0 %v6144
      %6615 = vmatmul.mubr.bf16.gmra.mrb[0].mxu0 %v6143
      %v6616 = vpop.f32.mrb[0].mxu0
      %v6617 = vadd.f32 %v6424, %v6616
      %v6618 = vpop.f32.mrb[0].mxu0
      %v6619 = vadd.f32 %v6426, %v6618
      %v6620 = vpop.f32.mrb[0].mxu0
      %v6621 = vadd.f32 %v6428, %v6620
      %v6622 = vpop.f32.mrb[0].mxu0
      %v6623 = vadd.f32 %v6430, %v6622
      %6624 = vmatprep.mubr.bf16.mxu0 %v6150
      %6625 = vmatmul.mubr.bf16.gmra.mrb[0].mxu0 %v6149
      %v6626 = vpop.f32.mrb[0].mxu0
      %v6627 = vadd.f32 %v6434, %v6626
      %v6628 = vpop.f32.mrb[0].mxu0
      %v6629 = vadd.f32 %v6436, %v6628
      %v6630 = vpop.f32.mrb[0].mxu0
      %v6631 = vadd.f32 %v6438, %v6630
      %v6632 = vpop.f32.mrb[0].mxu0
      %v6633 = vadd.f32 %v6440, %v6632
      %6634 = vdwg.mxu0
      %6635 = vmatprep.subr.bf16.mxu0 %v5738
      %6636 = vmatpush1.bf16.msra.mxu0 %v5737
      %6637 = vmatprep.subr.bf16.mxu0 %v5740
      %6638 = vmatpush1.bf16.msra.mxu0 %v5739
      %6639 = vmatprep.subr.bf16.mxu0 %v5742
      %6640 = vmatpush1.bf16.msra.mxu0 %v5741
      %6641 = vmatprep.subr.bf16.mxu0 %v5744
      %6642 = vmatpush1.bf16.msra.mxu0 %v5743
      %6643 = vmatprep.subr.bf16.mxu0 %v5746
      %6644 = vmatpush1.bf16.msra.mxu0 %v5745
      %6645 = vmatprep.subr.bf16.mxu0 %v5748
      %6646 = vmatpush1.bf16.msra.mxu0 %v5747
      %6647 = vmatprep.subr.bf16.mxu0 %v5750
      %6648 = vmatpush1.bf16.msra.mxu0 %v5749
      %6649 = vmatprep.subr.bf16.mxu0 %v5752
      %6650 = vmatpush1.bf16.msra.mxu0 %v5751
      %6651 = vmatprep.subr.bf16.mxu0 %v5754
      %6652 = vmatpush1.bf16.msra.mxu0 %v5753
      %6653 = vmatprep.subr.bf16.mxu0 %v5756
      %6654 = vmatpush1.bf16.msra.mxu0 %v5755
      %6655 = vmatprep.subr.bf16.mxu0 %v5758
      %6656 = vmatpush1.bf16.msra.mxu0 %v5757
      %6657 = vmatprep.subr.bf16.mxu0 %v5760
      %6658 = vmatpush1.bf16.msra.mxu0 %v5759
      %6659 = vmatprep.subr.bf16.mxu0 %v5762
      %6660 = vmatpush1.bf16.msra.mxu0 %v5761
      %6661 = vmatprep.subr.bf16.mxu0 %v5764
      %6662 = vmatpush1.bf16.msra.mxu0 %v5763
      %6663 = vmatprep.subr.bf16.mxu0 %v5766
      %6664 = vmatpush1.bf16.msra.mxu0 %v5765
      %6665 = vmatprep.subr.bf16.mxu0 %v5768
      %6666 = vmatpush1.bf16.msra.mxu0 %v5767
      %6667 = vmatprep.mubr.bf16.mxu0 %v6062
      %6668 = vmatmul.mubr.bf16.gmra.mrb[0].mxu0 %v6061
      %v6669 = vpop.f32.mrb[0].mxu0
      %v6670 = vadd.f32 %v6477, %v6669
      %v6671 = vpop.f32.mrb[0].mxu0
      %v6672 = vadd.f32 %v6479, %v6671
      %v6673 = vpop.f32.mrb[0].mxu0
      %v6674 = vadd.f32 %v6481, %v6673
      %v6675 = vpop.f32.mrb[0].mxu0
      %v6676 = vadd.f32 %v6483, %v6675
      %6677 = vmatprep.mubr.bf16.mxu0 %v6068
      %6678 = vmatmul.mubr.bf16.gmra.mrb[0].mxu0 %v6067
      %v6679 = vpop.f32.mrb[0].mxu0
      %v6680 = vadd.f32 %v6487, %v6679
      %v6681 = vpop.f32.mrb[0].mxu0
      %v6682 = vadd.f32 %v6489, %v6681
      %v6683 = vpop.f32.mrb[0].mxu0
      %v6684 = vadd.f32 %v6491, %v6683
      %v6685 = vpop.f32.mrb[0].mxu0
      %v6686 = vadd.f32 %v6493, %v6685
      %6687 = vmatprep.mubr.bf16.mxu0 %v6074
      %6688 = vmatmul.mubr.bf16.gmra.mrb[0].mxu0 %v6073
      %v6689 = vpop.f32.mrb[0].mxu0
      %v6690 = vadd.f32 %v6497, %v6689
      %v6691 = vpop.f32.mrb[0].mxu0
      %v6692 = vadd.f32 %v6499, %v6691
      %v6693 = vpop.f32.mrb[0].mxu0
      %v6694 = vadd.f32 %v6501, %v6693
      %v6695 = vpop.f32.mrb[0].mxu0
      %v6696 = vadd.f32 %v6503, %v6695
      %6697 = vmatprep.mubr.bf16.mxu0 %v6080
      %6698 = vmatmul.mubr.bf16.gmra.mrb[0].mxu0 %v6079
      %v6699 = vpop.f32.mrb[0].mxu0
      %v6700 = vadd.f32 %v6507, %v6699
      %v6701 = vpop.f32.mrb[0].mxu0
      %v6702 = vadd.f32 %v6509, %v6701
      %v6703 = vpop.f32.mrb[0].mxu0
      %v6704 = vadd.f32 %v6511, %v6703
      %v6705 = vpop.f32.mrb[0].mxu0
      %v6706 = vadd.f32 %v6513, %v6705
      %6707 = vmatprep.mubr.bf16.mxu0 %v6086
      %6708 = vmatmul.mubr.bf16.gmra.mrb[0].mxu0 %v6085
      %v6709 = vpop.f32.mrb[0].mxu0
      %v6710 = vadd.f32 %v6517, %v6709
      %v6711 = vpop.f32.mrb[0].mxu0
      %v6712 = vadd.f32 %v6519, %v6711
      %v6713 = vpop.f32.mrb[0].mxu0
      %v6714 = vadd.f32 %v6521, %v6713
      %v6715 = vpop.f32.mrb[0].mxu0
      %v6716 = vadd.f32 %v6523, %v6715
      %6717 = vmatprep.mubr.bf16.mxu0 %v6092
      %6718 = vmatmul.mubr.bf16.gmra.mrb[0].mxu0 %v6091
      %v6719 = vpop.f32.mrb[0].mxu0
      %v6720 = vadd.f32 %v6527, %v6719
      %v6721 = vpop.f32.mrb[0].mxu0
      %v6722 = vadd.f32 %v6529, %v6721
      %v6723 = vpop.f32.mrb[0].mxu0
      %v6724 = vadd.f32 %v6531, %v6723
      %v6725 = vpop.f32.mrb[0].mxu0
      %v6726 = vadd.f32 %v6533, %v6725
      %6727 = vmatprep.mubr.bf16.mxu0 %v6098
      %6728 = vmatmul.mubr.bf16.gmra.mrb[0].mxu0 %v6097
      %v6729 = vpop.f32.mrb[0].mxu0
      %v6730 = vadd.f32 %v6537, %v6729
      %v6731 = vpop.f32.mrb[0].mxu0
      %v6732 = vadd.f32 %v6539, %v6731
      %v6733 = vpop.f32.mrb[0].mxu0
      %v6734 = vadd.f32 %v6541, %v6733
      %v6735 = vpop.f32.mrb[0].mxu0
      %v6736 = vadd.f32 %v6543, %v6735
      %6737 = vmatprep.mubr.bf16.mxu0 %v6104
      %6738 = vmatmul.mubr.bf16.gmra.mrb[0].mxu0 %v6103
      %v6739 = vpop.f32.mrb[0].mxu0
      %v6740 = vadd.f32 %v6547, %v6739
      %v6741 = vpop.f32.mrb[0].mxu0
      %v6742 = vadd.f32 %v6549, %v6741
      %v6743 = vpop.f32.mrb[0].mxu0
      %v6744 = vadd.f32 %v6551, %v6743
      %v6745 = vpop.f32.mrb[0].mxu0
      %v6746 = vadd.f32 %v6553, %v6745
      %6747 = vmatprep.mubr.bf16.mxu0 %v6110
      %6748 = vmatmul.mubr.bf16.gmra.mrb[0].mxu0 %v6109
      %v6749 = vpop.f32.mrb[0].mxu0
      %v6750 = vadd.f32 %v6557, %v6749
      %v6751 = vpop.f32.mrb[0].mxu0
      %v6752 = vadd.f32 %v6559, %v6751
      %v6753 = vpop.f32.mrb[0].mxu0
      %v6754 = vadd.f32 %v6561, %v6753
      %v6755 = vpop.f32.mrb[0].mxu0
      %v6756 = vadd.f32 %v6563, %v6755
      %6757 = vmatprep.mubr.bf16.mxu0 %v6116
      %6758 = vmatmul.mubr.bf16.gmra.mrb[0].mxu0 %v6115
      %v6759 = vpop.f32.mrb[0].mxu0
      %v6760 = vadd.f32 %v6567, %v6759
      %v6761 = vpop.f32.mrb[0].mxu0
      %v6762 = vadd.f32 %v6569, %v6761
      %v6763 = vpop.f32.mrb[0].mxu0
      %v6764 = vadd.f32 %v6571, %v6763
      %v6765 = vpop.f32.mrb[0].mxu0
      %v6766 = vadd.f32 %v6573, %v6765
      %6767 = vmatprep.mubr.bf16.mxu0 %v6122
      %6768 = vmatmul.mubr.bf16.gmra.mrb[0].mxu0 %v6121
      %v6769 = vpop.f32.mrb[0].mxu0
      %v6770 = vadd.f32 %v6577, %v6769
      %v6771 = vpop.f32.mrb[0].mxu0
      %v6772 = vadd.f32 %v6579, %v6771
      %v6773 = vpop.f32.mrb[0].mxu0
      %v6774 = vadd.f32 %v6581, %v6773
      %v6775 = vpop.f32.mrb[0].mxu0
      %v6776 = vadd.f32 %v6583, %v6775
      %6777 = vmatprep.mubr.bf16.mxu0 %v6128
      %6778 = vmatmul.mubr.bf16.gmra.mrb[0].mxu0 %v6127
      %v6779 = vpop.f32.mrb[0].mxu0
      %v6780 = vadd.f32 %v6587, %v6779
      %v6781 = vpop.f32.mrb[0].mxu0
      %v6782 = vadd.f32 %v6589, %v6781
      %v6783 = vpop.f32.mrb[0].mxu0
      %v6784 = vadd.f32 %v6591, %v6783
      %v6785 = vpop.f32.mrb[0].mxu0
      %v6786 = vadd.f32 %v6593, %v6785
      %6787 = vmatprep.mubr.bf16.mxu0 %v6134
      %6788 = vmatmul.mubr.bf16.gmra.mrb[0].mxu0 %v6133
      %v6789 = vpop.f32.mrb[0].mxu0
      %v6790 = vadd.f32 %v6597, %v6789
      %v6791 = vpop.f32.mrb[0].mxu0
      %v6792 = vadd.f32 %v6599, %v6791
      %v6793 = vpop.f32.mrb[0].mxu0
      %v6794 = vadd.f32 %v6601, %v6793
      %v6795 = vpop.f32.mrb[0].mxu0
      %v6796 = vadd.f32 %v6603, %v6795
      %6797 = vmatprep.mubr.bf16.mxu0 %v6140
      %6798 = vmatmul.mubr.bf16.gmra.mrb[0].mxu0 %v6139
      %v6799 = vpop.f32.mrb[0].mxu0
      %v6800 = vadd.f32 %v6607, %v6799
      %v6801 = vpop.f32.mrb[0].mxu0
      %v6802 = vadd.f32 %v6609, %v6801
      %v6803 = vpop.f32.mrb[0].mxu0
      %v6804 = vadd.f32 %v6611, %v6803
      %v6805 = vpop.f32.mrb[0].mxu0
      %v6806 = vadd.f32 %v6613, %v6805
      %6807 = vmatprep.mubr.bf16.mxu0 %v6146
      %6808 = vmatmul.mubr.bf16.gmra.mrb[0].mxu0 %v6145
      %v6809 = vpop.f32.mrb[0].mxu0
      %v6810 = vadd.f32 %v6617, %v6809
      %v6811 = vpop.f32.mrb[0].mxu0
      %v6812 = vadd.f32 %v6619, %v6811
      %v6813 = vpop.f32.mrb[0].mxu0
      %v6814 = vadd.f32 %v6621, %v6813
      %v6815 = vpop.f32.mrb[0].mxu0
      %v6816 = vadd.f32 %v6623, %v6815
      %6817 = vmatprep.mubr.bf16.mxu0 %v6152
      %6818 = vmatmul.mubr.bf16.gmra.mrb[0].mxu0 %v6151
      %v6819 = vpop.f32.mrb[0].mxu0
      %v6820 = vadd.f32 %v6627, %v6819
      %v6821 = vpop.f32.mrb[0].mxu0
      %v6822 = vadd.f32 %v6629, %v6821
      %v6823 = vpop.f32.mrb[0].mxu0
      %v6824 = vadd.f32 %v6631, %v6823
      %v6825 = vpop.f32.mrb[0].mxu0
      %v6826 = vadd.f32 %v6633, %v6825
      %6827 = vdwg.mxu0
      %6828 = vst [vmem:[%s258] sm:$0xff] %v6670
      %6829 = vst [vmem:[%s258 + $0x8] sm:$0xff] %v6672
      %6830 = vst [vmem:[%s258 + $0x10] sm:$0xff] %v6674
      %6831 = vst [vmem:[%s258 + $0x18] sm:$0xff] %v6676
      %6832 = vst [vmem:[%s258 + $0x20] sm:$0xff] %v6680
      %6833 = vst [vmem:[%s258 + $0x28] sm:$0xff] %v6682
      %6834 = vst [vmem:[%s258 + $0x30] sm:$0xff] %v6684
      %6835 = vst [vmem:[%s258 + $0x38] sm:$0xff] %v6686
      %6836 = vst [vmem:[%s258 + $0x40] sm:$0xff] %v6690
      %6837 = vst [vmem:[%s258 + $0x48] sm:$0xff] %v6692
      %6838 = vst [vmem:[%s258 + $0x50] sm:$0xff] %v6694
      %6839 = vst [vmem:[%s258 + $0x58] sm:$0xff] %v6696
      %6840 = vst [vmem:[%s258 + $0x60] sm:$0xff] %v6700
      %6841 = vst [vmem:[%s258 + $0x68] sm:$0xff] %v6702
      %6842 = vst [vmem:[%s258 + $0x70] sm:$0xff] %v6704
      %6843 = vst [vmem:[%s258 + $0x78] sm:$0xff] %v6706
      %6844 = vst [vmem:[%s258 + $0x80] sm:$0xff] %v6710
      %6845 = vst [vmem:[%s258 + $0x88] sm:$0xff] %v6712
      %6846 = vst [vmem:[%s258 + $0x90] sm:$0xff] %v6714
      %6847 = vst [vmem:[%s258 + $0x98] sm:$0xff] %v6716
      %6848 = vst [vmem:[%s258 + $0xa0] sm:$0xff] %v6720
      %6849 = vst [vmem:[%s258 + $0xa8] sm:$0xff] %v6722
      %6850 = vst [vmem:[%s258 + $0xb0] sm:$0xff] %v6724
      %6851 = vst [vmem:[%s258 + $0xb8] sm:$0xff] %v6726
      %6852 = vst [vmem:[%s258 + $0xc0] sm:$0xff] %v6730
      %6853 = vst [vmem:[%s258 + $0xc8] sm:$0xff] %v6732
      %6854 = vst [vmem:[%s258 + $0xd0] sm:$0xff] %v6734
      %6855 = vst [vmem:[%s258 + $0xd8] sm:$0xff] %v6736
      %6856 = vst [vmem:[%s258 + $0xe0] sm:$0xff] %v6740
      %6857 = vst [vmem:[%s258 + $0xe8] sm:$0xff] %v6742
      %6858 = vst [vmem:[%s258 + $0xf0] sm:$0xff] %v6744
      %6859 = vst [vmem:[%s258 + $0xf8] sm:$0xff] %v6746
      %6860 = vst [vmem:[%s258 + $0x100] sm:$0xff] %v6750
      %6861 = vst [vmem:[%s258 + $0x108] sm:$0xff] %v6752
      %6862 = vst [vmem:[%s258 + $0x110] sm:$0xff] %v6754
      %6863 = vst [vmem:[%s258 + $0x118] sm:$0xff] %v6756
      %6864 = vst [vmem:[%s258 + $0x120] sm:$0xff] %v6760
      %6865 = vst [vmem:[%s258 + $0x128] sm:$0xff] %v6762
      %6866 = vst [vmem:[%s258 + $0x130] sm:$0xff] %v6764
      %6867 = vst [vmem:[%s258 + $0x138] sm:$0xff] %v6766
      %6868 = vst [vmem:[%s258 + $0x140] sm:$0xff] %v6770
      %6869 = vst [vmem:[%s258 + $0x148] sm:$0xff] %v6772
      %6870 = vst [vmem:[%s258 + $0x150] sm:$0xff] %v6774
      %6871 = vst [vmem:[%s258 + $0x158] sm:$0xff] %v6776
      %6872 = vst [vmem:[%s258 + $0x160] sm:$0xff] %v6780
      %6873 = vst [vmem:[%s258 + $0x168] sm:$0xff] %v6782
      %6874 = vst [vmem:[%s258 + $0x170] sm:$0xff] %v6784
      %6875 = vst [vmem:[%s258 + $0x178] sm:$0xff] %v6786
      %6876 = vst [vmem:[%s258 + $0x180] sm:$0xff] %v6790
      %6877 = vst [vmem:[%s258 + $0x188] sm:$0xff] %v6792
      %6878 = vst [vmem:[%s258 + $0x190] sm:$0xff] %v6794
      %6879 = vst [vmem:[%s258 + $0x198] sm:$0xff] %v6796
      %6880 = vst [vmem:[%s258 + $0x1a0] sm:$0xff] %v6800
      %6881 = vst [vmem:[%s258 + $0x1a8] sm:$0xff] %v6802
      %6882 = vst [vmem:[%s258 + $0x1b0] sm:$0xff] %v6804
      %6883 = vst [vmem:[%s258 + $0x1b8] sm:$0xff] %v6806
      %6884 = vst [vmem:[%s258 + $0x1c0] sm:$0xff] %v6810
      %6885 = vst [vmem:[%s258 + $0x1c8] sm:$0xff] %v6812
      %6886 = vst [vmem:[%s258 + $0x1d0] sm:$0xff] %v6814
      %6887 = vst [vmem:[%s258 + $0x1d8] sm:$0xff] %v6816
      %6888 = vst [vmem:[%s258 + $0x1e0] sm:$0xff] %v6820
      %6889 = vst [vmem:[%s258 + $0x1e8] sm:$0xff] %v6822
      %6890 = vst [vmem:[%s258 + $0x1f0] sm:$0xff] %v6824
      %6891 = vst [vmem:[%s258 + $0x1f8] sm:$0xff] %v6826
      %s6892 = smul.u32 32, %s17
      %p6893 = scmp.lt.s32.totalorder %s6892, 95
      %s6894 = scalar_select %p6893, %s6892, 95
      %s6895 = smul.addr %s6894, 2
      %s6896 = smul.addr %s6895, 8
      %s6897 = scalar_lea.vmem %s6, %s6896
      // Predicated region
      $region49: #{fused_forward.1} parent=43 // pred_check
        %p6898 = pneg %p166
      $region50: #{fused_forward.1} parent=43 // pred_check_branch
        %6900 = sbr.rel (%p6898) target = $region52
      $region51: #{fused_forward.1} parent=43 // pred_region
        %s6901 = smul.u32 32, %s17
      $region52: #{fused_forward.1} parent=43 // pred_fallthru
        _
    $region44: #{fused_forward.1} parent=5 // pred_fallthru
      _
    %p6902 = scmp.le.s32.totalorder 2, %s12
    // Predicated region
    $region53: #{fused_forward.1} parent=5 // pred_check
      %p6903 = pneg %p6902
    $region54: #{fused_forward.1} parent=5 // pred_check_branch
      %6905 = sbr.rel (%p6903) target = $region56
    $region55: #{fused_forward.1} parent=5 // pred_region
      %s6906 = ssub.s32 %s12, 2
      // Predicated region
      $region57: #{fused_forward.1} parent=55 // pred_check
        %p6907 = pneg %p172
      $region58: #{fused_forward.1} parent=55 // pred_check_branch
        %6909 = sbr.rel (%p6907) target = $region60
      $region59: #{fused_forward.1} parent=55 // pred_region
        %s6910 = smul.u32 32, %s18
        %p6911 = scmp.lt.s32.totalorder %s6910, 95
        %s6912 = scalar_select %p6911, %s6910, 95
        %s6913 = smul.addr %s6912, 2
        %s6914 = smul.addr %s6913, 8
        %s6915 = scalar_lea.vmem %s6, %s6914
      $region60: #{fused_forward.1} parent=55 // pred_fallthru
        _
    $region56: #{fused_forward.1} parent=5 // pred_fallthru
      _
  $region6: #{fused_forward.1} parent=0 // loop_footer
    %s16 = sadd.s32 1, %s12
  $region7: #{fused_forward.1} parent=0 // loop_footer_branch
    %11 = sbr.rel target = $region3
  $region8: #{fused_forward.1} parent=0 // loop_exit
    _

</llo_original>
